<compile_context>
chip_gen: v6e
topology: v6e:2x2x1
jax: 0.10.0
libtpu: 0.0.40
codegen_flags: <defaults>
</compile_context>

<pallas_src>
import math
from functools import partial

import numpy as np
import jax
import jax.numpy as jnp
from jax import lax
from jax.experimental import pallas as pl
from jax.experimental.pallas import tpu as pltpu

LN_EPS = 1e-6            # LayerNorm eps in ConvNeXt Block
BN_EPS = 1e-5            # nn.BatchNorm2d default
_VMEM_LIMIT = 48 * 1024 * 1024


def _gelu(x):
    # TODO(synk): nn.GELU() default is exact erf; tanh approximation used here
    # (EUP-friendly, max deviation ~3e-4) to guarantee Mosaic lowering.
    return jax.nn.gelu(x, approximate=True)


def _row_chunk(H, W, target_rows=512):
    """Row-chunk size for the LN/MLP loops; no divisor requirement (tail chunk
    is simply smaller), keeping matmul M ~= target_rows."""
    return max(1, min(H, target_rows // max(W, 1)))


def _const_spec(shape):
    # full-array block whose index never changes (weights / small vectors)
    return pl.BlockSpec(shape, lambda *_, n=len(shape): (0,) * n)


# --------------------------------------------------------------------------
# Kernel 1: ConvNeXt Block — grid over batch, one image per program.
#           Also emits per-image channel sum / sum-of-squares of the output
#           so BatchNorm #1 statistics need no extra HBM pass.
# --------------------------------------------------------------------------
def _convnext_kernel(x_ref, wdw_ref, bdw_ref, lnw_ref, lnb_ref,
                     w1_ref, b1_ref, w2_ref, b2_ref,
                     o_ref, sum_ref, sq_ref, pad_ref, *, H, W, C, TH):
    # zero-pad the image into VMEM scratch (replaces the XLA jnp.pad HBM pass)
    pad_ref[...] = jnp.zeros((H + 6, W + 6, C), jnp.float32)
    pad_ref[3:3 + H, 3:3 + W, :] = x_ref[0]

    # depthwise 7x7 conv (padding=3, groups=C): fori over the 7 sublane(W)
    # shifts keeps only one shifted column copy live at a time; the 7 H shifts
    # are cheap static leading-axis slices.
    def dj_body(dj, acc):
        col = pad_ref[:, pl.ds(dj, W), :]            # (H+6, W, C)
        wcol = wdw_ref[:, pl.ds(dj, 1), :]           # (7, 1, C)
        for di in range(7):
            acc = acc + col[di:di + H] * wcol[di]
        return acc

    acc = lax.fori_loop(0, 7, dj_body, jnp.zeros((H, W, C), jnp.float32))
    acc = acc + bdw_ref[...].reshape(1, 1, C)

    lnw = lnw_ref[...]
    lnb = lnb_ref[...]
    w1 = w1_ref[...]
    b1 = b1_ref[...]
    w2 = w2_ref[...]
    b2 = b2_ref[...]

    ssum = jnp.zeros((1, C), jnp.float32)
    ssq = jnp.zeros((1, C), jnp.float32)
    # LayerNorm + MLP in row chunks: bounds the (rows*W, 4C) intermediate.
    for r0 in range(0, H, TH):
        rows = min(TH, H - r0)
        a = acc[r0:r0 + rows]                        # (rows, W, C)
        u = jnp.mean(a, axis=-1, keepdims=True)
        s = jnp.mean((a - u) ** 2, axis=-1, keepdims=True)
        xn = (a - u) * lax.rsqrt(s + LN_EPS) * lnw + lnb
        hf = xn.reshape(rows * W, C).astype(jnp.bfloat16)
        h1 = jnp.dot(hf, w1, preferred_element_type=jnp.float32) + b1
        h1 = _gelu(h1)
        # layer-scale gamma is folded into w2/b2 in the wrapper
        h2 = jnp.dot(h1.astype(jnp.bfloat16), w2,
                     preferred_element_type=jnp.float32) + b2
        out = x_ref[0, r0:r0 + rows] + h2.reshape(rows, W, C)    # residual
        o_ref[0, r0:r0 + rows] = out.astype(o_ref.dtype)
        of = out.reshape(rows * W, C)
        ssum = ssum + jnp.sum(of, axis=0, keepdims=True)
        ssq = ssq + jnp.sum(of * of, axis=0, keepdims=True)
    sum_ref[0] = ssum
    sq_ref[0] = ssq


def convnext_block(x, p):
    B, H, W, C = x.shape
    TH = _row_chunk(H, W)
    w1 = p["pw1_w"].astype(jnp.bfloat16)
    w2 = (p["pw2_w"] * p["gamma"][0]).astype(jnp.bfloat16)   # fold layer scale
    b2 = p["pw2_b"] * p["gamma"]
    kern = partial(_convnext_kernel, H=H, W=W, C=C, TH=TH)
    return pl.pallas_call(
        kern,
        out_shape=(jax.ShapeDtypeStruct((B, H, W, C), jnp.bfloat16),
                   jax.ShapeDtypeStruct((B, 1, C), jnp.float32),
                   jax.ShapeDtypeStruct((B, 1, C), jnp.float32)),
        grid=(B,),
        in_specs=[
            pl.BlockSpec((1, H, W, C), lambda b: (b, 0, 0, 0)),
            _const_spec((7, 7, C)),
            _const_spec((1, C)),
            _const_spec((1, C)),
            _const_spec((1, C)),
            _const_spec((C, 4 * C)),
            _const_spec((1, 4 * C)),
            _const_spec((4 * C, C)),
            _const_spec((1, C)),
        ],
        out_specs=[
            pl.BlockSpec((1, H, W, C), lambda b: (b, 0, 0, 0)),
            pl.BlockSpec((1, 1, C), lambda b: (b, 0, 0)),
            pl.BlockSpec((1, 1, C), lambda b: (b, 0, 0)),
        ],
        scratch_shapes=[pltpu.VMEM((H + 6, W + 6, C), jnp.float32)],
        compiler_params=pltpu.CompilerParams(
            dimension_semantics=("parallel",),
            vmem_limit_bytes=_VMEM_LIMIT),
    )(x, p["dw_w"], p["dw_b"], p["ln_w"], p["ln_b"],
      w1, p["pw1_b"], w2, b2)


# --------------------------------------------------------------------------
# Kernel 2: AttentionBlockB pre-attention path (per image, row-chunked):
#   BN1 (pre-folded scale/shift) -> GELU -> 1x1 conv (no bias)
#   + per-image channel sums of the conv output (for BN2 batch statistics)
# --------------------------------------------------------------------------
def _pre_attn_kernel(x_ref, a1_ref, c1_ref, wc_ref,
                     o_ref, sum_ref, sq_ref, *, H, W, C, TH):
    a1 = a1_ref[...]
    c1 = c1_ref[...]
    wc = wc_ref[...]
    ssum = jnp.zeros((1, C), jnp.float32)
    ssq = jnp.zeros((1, C), jnp.float32)
    for r0 in range(0, H, TH):
        rows = min(TH, H - r0)
        v = x_ref[0, r0:r0 + rows].astype(jnp.float32)        # (rows, W, C)
        xn = v * a1 + c1                                      # BatchNorm #1
        g = _gelu(xn).reshape(rows * W, C).astype(jnp.bfloat16)
        y = jnp.dot(g, wc, preferred_element_type=jnp.float32)
        o_ref[0, r0:r0 + rows] = y.reshape(rows, W, C).astype(o_ref.dtype)
        ssum = ssum + jnp.sum(y, axis=0, keepdims=True)
        ssq = ssq + jnp.sum(y * y, axis=0, keepdims=True)
    sum_ref[0] = ssum
    sq_ref[0] = ssq


def pre_attention(x, a1, c1, conv_w):
    B, H, W, C = x.shape
    TH = _row_chunk(H, W)
    kern = partial(_pre_attn_kernel, H=H, W=W, C=C, TH=TH)
    return pl.pallas_call(
        kern,
        out_shape=(jax.ShapeDtypeStruct((B, H, W, C), jnp.bfloat16),
                   jax.ShapeDtypeStruct((B, 1, C), jnp.float32),
                   jax.ShapeDtypeStruct((B, 1, C), jnp.float32)),
        grid=(B,),
        in_specs=[
            pl.BlockSpec((1, H, W, C), lambda b: (b, 0, 0, 0)),
            _const_spec((1, C)),
            _const_spec((1, C)),
            _const_spec((C, C)),
        ],
        out_specs=[
            pl.BlockSpec((1, H, W, C), lambda b: (b, 0, 0, 0)),
            pl.BlockSpec((1, 1, C), lambda b: (b, 0, 0)),
            pl.BlockSpec((1, 1, C), lambda b: (b, 0, 0)),
        ],
        compiler_params=pltpu.CompilerParams(
            dimension_semantics=("parallel",),
            vmem_limit_bytes=_VMEM_LIMIT),
    )(x, a1, c1, conv_w.astype(jnp.bfloat16))


# --------------------------------------------------------------------------
# Kernel 3: windowed LocalAttention — one row of n2 windows per program,
#   BN2 / window partition / window merge / residual all fused.
#   Partition & merge use explicit slice copies (no p-granular value reshapes).
# --------------------------------------------------------------------------
def _attn_kernel(z_ref, xc_ref, a2_ref, c2_ref, mask_ref,
                 wq_ref, wk_ref, wv_ref, wo_ref, bo_ref,
                 o_ref, zw_ref, ob_ref, *, p, n2, T, C, heads, dh):
    # BatchNorm #2 (pre-folded scale/shift) on the image-layout block
    zf = (z_ref[0].astype(jnp.float32) * a2_ref[...].reshape(1, 1, C)
          + c2_ref[...].reshape(1, 1, C))                     # (p, W, C)

    # window partition: image rows -> (n2*T, C) token matrix (VMEM scratch)
    for w in range(n2):
        for r in range(p):
            zw_ref[w * T + r * p: w * T + (r + 1) * p, :] = \
                zf[r, w * p:(w + 1) * p, :]

    flat = zw_ref[...].astype(jnp.bfloat16)                   # (n2*T, C)
    mask = mask_ref[...]                                      # (T, T) rel-pos bias

    # q/k/v projections fused over heads (wide MXU matmuls); softmax scale is
    # folded into wq in the wrapper.
    q = jnp.dot(flat, wq_ref[...], preferred_element_type=jnp.float32)
    k = jnp.dot(flat, wk_ref[...], preferred_element_type=jnp.float32)
    v = jnp.dot(flat, wv_ref[...], preferred_element_type=jnp.float32)

    # per-head softmax attention (cheap relative to the projections)
    for h in range(heads):
        sl = slice(h * dh, (h + 1) * dh)
        qh = q[:, sl].reshape(n2, T, dh).astype(jnp.bfloat16)
        kh = k[:, sl].reshape(n2, T, dh).astype(jnp.bfloat16)
        vh = v[:, sl].reshape(n2, T, dh).astype(jnp.bfloat16)
        dots = jnp.einsum('wtd,wsd->wts', qh, kh,
                          preferred_element_type=jnp.float32) + mask
        m = jnp.max(dots, axis=-1, keepdims=True)
        e = jnp.exp(dots - m)
        den = jnp.sum(e, axis=-1, keepdims=True)
        attn = e * pl.reciprocal(den, approx=True)
        oh = jnp.einsum('wts,wsd->wtd', attn.astype(jnp.bfloat16), vh,
                        preferred_element_type=jnp.float32)
        # stage per-head outputs into a VMEM buffer (lane-slice store) so the
        # output projection runs as one wide (n2*T,inner)@(inner,C) matmul
        ob_ref[:, sl] = oh.reshape(n2 * T, dh)

    oall = ob_ref[...].astype(jnp.bfloat16)                   # (n2*T, inner)
    out = jnp.dot(oall, wo_ref[...],
                  preferred_element_type=jnp.float32) + bo_ref[...]

    # window merge back to image layout + residual with the conv-block output
    for r in range(p):
        res = xc_ref[0, r].astype(jnp.float32)                # (W, C)
        for w in range(n2):
            seg = out[w * T + r * p: w * T + (r + 1) * p, :]  # (p, C)
            o_ref[0, r, w * p:(w + 1) * p, :] = (
                seg + res[w * p:(w + 1) * p, :]).astype(o_ref.dtype)


def attention_block(z, xc, a2, c2, mask, wq, wk, wv, wo, bo, *, p, heads, dh):
    B, H, W, C = z.shape
    n1, n2 = H // p, W // p
    T = p * p
    inner = heads * dh
    kern = partial(_attn_kernel, p=p, n2=n2, T=T, C=C, heads=heads, dh=dh)
    return pl.pallas_call(
        kern,
        out_shape=jax.ShapeDtypeStruct((B, H, W, C), jnp.bfloat16),
        grid=(B, n1),
        in_specs=[
            pl.BlockSpec((1, p, W, C), lambda b, i: (b, i, 0, 0)),   # z (post 1x1)
            pl.BlockSpec((1, p, W, C), lambda b, i: (b, i, 0, 0)),   # skip = xc
            _const_spec((1, C)),
            _const_spec((1, C)),
            _const_spec((T, T)),
            _const_spec((C, inner)),
            _const_spec((C, inner)),
            _const_spec((C, inner)),
            _const_spec((inner, C)),
            _const_spec((1, C)),
        ],
        out_specs=pl.BlockSpec((1, p, W, C), lambda b, i: (b, i, 0, 0)),
        scratch_shapes=[pltpu.VMEM((n2 * T, C), jnp.float32),
                        pltpu.VMEM((n2 * T, inner), jnp.float32)],
        compiler_params=pltpu.CompilerParams(
            dimension_semantics=("parallel", "parallel"),
            vmem_limit_bytes=_VMEM_LIMIT),
    )(z, xc, a2, c2, mask, wq, wk, wv, wo, bo)


# --------------------------------------------------------------------------
# Full CCTBlock forward
# --------------------------------------------------------------------------
def cct_block_forward(x_nchw, params, *, window_size, heads, dim_head,
                      scale_factor):
    B, C, H, W = x_nchw.shape
    p = window_size
    T = p * p
    inner = heads * dim_head

    x = jnp.transpose(x_nchw, (0, 2, 3, 1)).astype(jnp.float32)   # NCHW -> NHWC

    # ---- 1. ConvNeXt Block (+ fused BN1 channel sums) ----
    xc, s1, q1 = convnext_block(x, params["block"])               # xc: bf16

    ab = params["attnblk"]
    n_el = float(B * H * W)
    # BatchNorm #1, training-mode batch statistics, folded to scale/shift
    m1 = jnp.sum(s1[:, 0, :], axis=0) / n_el
    v1 = jnp.maximum(jnp.sum(q1[:, 0, :], axis=0) / n_el - m1 * m1, 0.0)
    a1 = ab["bn1_w"][0] * lax.rsqrt(v1 + BN_EPS)
    c1 = ab["bn1_b"][0] - m1 * a1

    # ---- 2. BN1 -> GELU -> 1x1 conv (+ BN2 partial stats) ----
    z, s2, q2 = pre_attention(xc, a1.reshape(1, C), c1.reshape(1, C),
                              ab["conv_w"])
    m2 = jnp.sum(s2[:, 0, :], axis=0) / n_el
    v2 = jnp.maximum(jnp.sum(q2[:, 0, :], axis=0) / n_el - m2 * m2, 0.0)
    a2 = ab["bn2_w"][0] * lax.rsqrt(v2 + BN_EPS)
    c2 = ab["bn2_b"][0] - m2 * a2

    # ---- 3. windowed LocalAttention (BN2/partition/merge/residual fused) ----
    coords = np.array([[i, j] for i in range(p) for j in range(p)])
    rel = coords[None, :, :] - coords[:, None, :] + (p - 1)
    mask = ab["pos_emb"][rel[:, :, 0], rel[:, :, 1]]              # (T, T)

    scale = dim_head ** -0.5
    wq = (ab["wq"] * scale).astype(jnp.bfloat16)                  # scale folded
    wk = ab["wkv"][:, :inner].astype(jnp.bfloat16)
    wv = ab["wkv"][:, inner:].astype(jnp.bfloat16)
    wo = ab["wo"].astype(jnp.bfloat16)

    y = attention_block(z, xc, a2.reshape(1, C), c2.reshape(1, C), mask,
                        wq, wk, wv, wo, ab["bo"],
                        p=p, heads=heads, dh=dim_head)            # (B,H,W,C) bf16

    # ---- 4. F.interpolate(scale_factor, mode='nearest') — pure gather (glue) ----
    Ho = int(math.floor(H * scale_factor))
    Wo = int(math.floor(W * scale_factor))
    sc = np.float32(1.0 / scale_factor)
    ih = np.minimum(np.floor(np.arange(Ho, dtype=np.float32) * sc).astype(np.int32), H - 1)
    iw = np.minimum(np.floor(np.arange(Wo, dtype=np.float32) * sc).astype(np.int32), W - 1)
    y = y[:, ih][:, :, iw]                                        # (B, Ho, Wo, C)

    return jnp.transpose(y, (0, 3, 1, 2)).astype(jnp.float32)     # back to NCHW


# --------------------------------------------------------------------------
# Deterministic parameter init (shapes per the module's __init__)
# --------------------------------------------------------------------------
def init_params(key, *, dim, window_size, heads, dim_head):
    C = dim
    inner = heads * dim_head
    keys = iter(jax.random.split(key, 24))

    def n(shape, s=0.02):
        return (s * jax.random.normal(next(keys), shape)).astype(jnp.float32)

    block = dict(
        dw_w=n((7, 7, C)),                      # torch (C,1,7,7) -> (kh,kw,C)
        dw_b=n((1, C)),
        ln_w=jnp.ones((1, C), jnp.float32),
        ln_b=jnp.zeros((1, C), jnp.float32),
        pw1_w=n((C, 4 * C)),                    # nn.Linear weight transposed
        pw1_b=n((1, 4 * C)),
        pw2_w=n((4 * C, C)),
        pw2_b=n((1, C)),
        gamma=jnp.full((1, C), 1e-6, jnp.float32),
    )
    attnblk = dict(
        bn1_w=1.0 + n((1, C), 0.1),
        bn1_b=n((1, C), 0.1),
        conv_w=n((C, C)),                       # 1x1 conv (Cin, Cout), no bias
        bn2_w=1.0 + n((1, C), 0.1),
        bn2_b=n((1, C), 0.1),
        pos_emb=n((2 * window_size - 1, 2 * window_size - 1)),
        wq=n((C, inner)),                       # to_q 1x1, no bias
        wkv=n((C, 2 * inner)),                  # to_kv 1x1 (k=1), no bias
        wo=n((inner, C)),                       # to_out 1x1
        bo=n((1, C)),                           # to_out bias
    )
    return dict(block=block, attnblk=attnblk)


if __name__ == "__main__":
    # small shapes consistent with the module (H,W divisible by window_size)
    B, C, H, W = 2, 16, 8, 8
    window_size, heads, dim_head = 4, 2, 8
    scale_factor = 0.8

    key = jax.random.PRNGKey(0)
    kx, kp = jax.random.split(key)
    x = jax.random.normal(kx, (B, C, H, W), dtype=jnp.float32)
    params = init_params(kp, dim=C, window_size=window_size,
                         heads=heads, dim_head=dim_head)

    fwd = jax.jit(partial(cct_block_forward, window_size=window_size,
                          heads=heads, dim_head=dim_head,
                          scale_factor=scale_factor))
    out = fwd(x, params)
    jax.block_until_ready(out)

    Ho = int(math.floor(H * scale_factor))
    Wo = int(math.floor(W * scale_factor))
    assert out.shape == (B, C, Ho, Wo), out.shape
    assert bool(jnp.all(jnp.isfinite(out)))
    print("KERNEL_OK")
</pallas_src>

<mosaic_0001>
module attributes {stable_mosaic.version = 11 : i64} {
  func.func @_pre_attn_kernel(%arg0: i32, %arg1: memref<1x8x8x16xbf16, #tpu.memory_space<vmem>>, %arg2: memref<1x16xf32, #tpu.memory_space<vmem>>, %arg3: memref<1x16xf32, #tpu.memory_space<vmem>>, %arg4: memref<16x16xbf16, #tpu.memory_space<vmem>>, %arg5: memref<1x8x8x16xbf16, #tpu.memory_space<vmem>>, %arg6: memref<1x1x16xf32, #tpu.memory_space<vmem>>, %arg7: memref<1x1x16xf32, #tpu.memory_space<vmem>>) attributes {dimension_semantics = [#tpu.dimension_semantics<parallel>], iteration_bounds = array<i64: 2>, scalar_prefetch = 0 : i64, scratch_operands = 0 : i64, tpu.core_type = #tpu.core_type<tc>, window_params = [{transform_indices = @transform_0, window_bounds = array<i64: 1, 8, 8, 16>}, {pipeline_mode = #tpu.pipeline_mode<synchronous>, transform_indices = @transform_1, window_bounds = array<i64: 1, 16>}, {pipeline_mode = #tpu.pipeline_mode<synchronous>, transform_indices = @transform_2, window_bounds = array<i64: 1, 16>}, {pipeline_mode = #tpu.pipeline_mode<synchronous>, transform_indices = @transform_3, window_bounds = array<i64: 16, 16>}, {transform_indices = @transform_4, window_bounds = array<i64: 1, 8, 8, 16>}, {transform_indices = @transform_5, window_bounds = array<i64: 1, 1, 16>}, {transform_indices = @transform_6, window_bounds = array<i64: 1, 1, 16>}]} {
    %c0 = arith.constant 0 : index
    %c0_0 = arith.constant 0 : index
    %0 = vector.load %arg2[%c0, %c0_0] : memref<1x16xf32, #tpu.memory_space<vmem>>, vector<1x16xf32>
    %c0_1 = arith.constant 0 : index
    %c0_2 = arith.constant 0 : index
    %1 = vector.load %arg3[%c0_1, %c0_2] : memref<1x16xf32, #tpu.memory_space<vmem>>, vector<1x16xf32>
    %c0_3 = arith.constant 0 : index
    %c0_4 = arith.constant 0 : index
    %2 = vector.load %arg4[%c0_3, %c0_4] : memref<16x16xbf16, #tpu.memory_space<vmem>>, vector<16x16xbf16>
    %cst = arith.constant 0.000000e+00 : f32
    %3 = vector.broadcast %cst : f32 to vector<1x16xf32>
    %cst_5 = arith.constant 0.000000e+00 : f32
    %4 = vector.broadcast %cst_5 : f32 to vector<1x16xf32>
    %c0_6 = arith.constant 0 : index
    %c0_7 = arith.constant 0 : index
    %c0_8 = arith.constant 0 : index
    %c0_9 = arith.constant 0 : index
    %5 = vector.load %arg1[%c0_6, %c0_7, %c0_8, %c0_9] : memref<1x8x8x16xbf16, #tpu.memory_space<vmem>>, vector<1x8x8x16xbf16>
    %6 = vector.shape_cast %5 : vector<1x8x8x16xbf16> to vector<8x8x16xbf16>
    %7 = arith.extf %6 : vector<8x8x16xbf16> to vector<8x8x16xf32>
    %8 = vector.shape_cast %0 : vector<1x16xf32> to vector<1x1x16xf32>
    %9 = vector.broadcast %8 : vector<1x1x16xf32> to vector<8x8x16xf32>
    %10 = arith.mulf %7, %9 : vector<8x8x16xf32>
    %11 = vector.shape_cast %1 : vector<1x16xf32> to vector<1x1x16xf32>
    %12 = vector.broadcast %11 : vector<1x1x16xf32> to vector<8x8x16xf32>
    %13 = arith.addf %10, %12 : vector<8x8x16xf32>
    %14 = arith.mulf %13, %13 : vector<8x8x16xf32>
    %15 = arith.mulf %13, %14 : vector<8x8x16xf32>
    %cst_10 = arith.constant 4.471500e-02 : f32
    %16 = vector.broadcast %cst_10 : f32 to vector<8x8x16xf32>
    %17 = arith.mulf %16, %15 : vector<8x8x16xf32>
    %18 = arith.addf %13, %17 : vector<8x8x16xf32>
    %cst_11 = arith.constant 0.797884583 : f32
    %19 = vector.broadcast %cst_11 : f32 to vector<8x8x16xf32>
    %20 = arith.mulf %19, %18 : vector<8x8x16xf32>
    %21 = math.tanh %20 : vector<8x8x16xf32>
    %cst_12 = arith.constant 1.000000e+00 : f32
    %22 = vector.broadcast %cst_12 : f32 to vector<8x8x16xf32>
    %23 = arith.addf %22, %21 : vector<8x8x16xf32>
    %cst_13 = arith.constant 5.000000e-01 : f32
    %24 = vector.broadcast %cst_13 : f32 to vector<8x8x16xf32>
    %25 = arith.mulf %24, %23 : vector<8x8x16xf32>
    %26 = arith.mulf %13, %25 : vector<8x8x16xf32>
    %27 = vector.shape_cast %26 : vector<8x8x16xf32> to vector<64x16xf32>
    %28 = arith.truncf %27 : vector<64x16xf32> to vector<64x16xbf16>
    %cst_14 = arith.constant dense<0.000000e+00> : vector<64x16xf32>
    %29 = tpu.matmul %28, %2, %cst_14 {dimension_numbers = #tpu.dot_dimension_numbers<[1], [0], [0], [1], [0, 0, 1, 1], [], []>} : vector<64x16xbf16>, vector<16x16xbf16>, vector<64x16xf32> -> vector<64x16xf32>
    %30 = vector.shape_cast %29 : vector<64x16xf32> to vector<8x8x16xf32>
    %31 = arith.truncf %30 : vector<8x8x16xf32> to vector<8x8x16xbf16>
    %c0_15 = arith.constant 0 : index
    %c0_16 = arith.constant 0 : index
    %c0_17 = arith.constant 0 : index
    %c0_18 = arith.constant 0 : index
    %32 = vector.load %arg5[%c0_15, %c0_16, %c0_17, %c0_18] : memref<1x8x8x16xbf16, #tpu.memory_space<vmem>>, vector<1x8x8x16xbf16>
    %33 = vector.shape_cast %32 : vector<1x8x8x16xbf16> to vector<8x8x16xbf16>
    %34 = vector.shape_cast %31 : vector<8x8x16xbf16> to vector<1x8x8x16xbf16>
    tpu.vector_store %arg5[%c0_15, %c0_16, %c0_17, %c0_18], %34 {strides = array<i32>} : memref<1x8x8x16xbf16, #tpu.memory_space<vmem>>, vector<1x8x8x16xbf16>,
    %cst_19 = arith.constant dense<0.000000e+00> : vector<16xf32>
    %35 = vector.multi_reduction <add>, %29, %cst_19 [0] : vector<64x16xf32> to vector<16xf32>
    %36 = vector.shape_cast %35 : vector<16xf32> to vector<1x16xf32>
    %37 = arith.addf %3, %36 : vector<1x16xf32>
    %38 = arith.mulf %29, %29 : vector<64x16xf32>
    %cst_20 = arith.constant dense<0.000000e+00> : vector<16xf32>
    %39 = vector.multi_reduction <add>, %38, %cst_20 [0] : vector<64x16xf32> to vector<16xf32>
    %40 = vector.shape_cast %39 : vector<16xf32> to vector<1x16xf32>
    %41 = arith.addf %4, %40 : vector<1x16xf32>
    %c0_21 = arith.constant 0 : index
    %c0_22 = arith.constant 0 : index
    %c0_23 = arith.constant 0 : index
    %42 = vector.load %arg6[%c0_21, %c0_22, %c0_23] : memref<1x1x16xf32, #tpu.memory_space<vmem>>, vector<1x1x16xf32>
    %43 = vector.shape_cast %42 : vector<1x1x16xf32> to vector<1x16xf32>
    %44 = vector.shape_cast %37 : vector<1x16xf32> to vector<1x1x16xf32>
    tpu.vector_store %arg6[%c0_21, %c0_22, %c0_23], %44 {strides = array<i32>} : memref<1x1x16xf32, #tpu.memory_space<vmem>>, vector<1x1x16xf32>,
    %c0_24 = arith.constant 0 : index
    %c0_25 = arith.constant 0 : index
    %c0_26 = arith.constant 0 : index
    %45 = vector.load %arg7[%c0_24, %c0_25, %c0_26] : memref<1x1x16xf32, #tpu.memory_space<vmem>>, vector<1x1x16xf32>
    %46 = vector.shape_cast %45 : vector<1x1x16xf32> to vector<1x16xf32>
    %47 = vector.shape_cast %41 : vector<1x16xf32> to vector<1x1x16xf32>
    tpu.vector_store %arg7[%c0_24, %c0_25, %c0_26], %47 {strides = array<i32>} : memref<1x1x16xf32, #tpu.memory_space<vmem>>, vector<1x1x16xf32>,
    return
  }
  func.func @transform_0(%arg0: i32) -> (i32, i32, i32, i32) {
    %c0_i32 = arith.constant 0 : i32
    %c0_i32_0 = arith.constant 0 : i32
    %c0_i32_1 = arith.constant 0 : i32
    %c0_i32_2 = arith.constant 0 : i32
    return %arg0, %c0_i32, %c0_i32_0, %c0_i32_1 : i32, i32, i32, i32
  }
  func.func @transform_1(%arg0: i32) -> (i32, i32) {
    %c0_i32 = arith.constant 0 : i32
    %c0_i32_0 = arith.constant 0 : i32
    %c0_i32_1 = arith.constant 0 : i32
    return %c0_i32, %c0_i32_0 : i32, i32
  }
  func.func @transform_2(%arg0: i32) -> (i32, i32) {
    %c0_i32 = arith.constant 0 : i32
    %c0_i32_0 = arith.constant 0 : i32
    %c0_i32_1 = arith.constant 0 : i32
    return %c0_i32, %c0_i32_0 : i32, i32
  }
  func.func @transform_3(%arg0: i32) -> (i32, i32) {
    %c0_i32 = arith.constant 0 : i32
    %c0_i32_0 = arith.constant 0 : i32
    %c0_i32_1 = arith.constant 0 : i32
    return %c0_i32, %c0_i32_0 : i32, i32
  }
  func.func @transform_4(%arg0: i32) -> (i32, i32, i32, i32) {
    %c0_i32 = arith.constant 0 : i32
    %c0_i32_0 = arith.constant 0 : i32
    %c0_i32_1 = arith.constant 0 : i32
    %c0_i32_2 = arith.constant 0 : i32
    return %arg0, %c0_i32, %c0_i32_0, %c0_i32_1 : i32, i32, i32, i32
  }
  func.func @transform_5(%arg0: i32) -> (i32, i32, i32) {
    %c0_i32 = arith.constant 0 : i32
    %c0_i32_0 = arith.constant 0 : i32
    %c0_i32_1 = arith.constant 0 : i32
    return %arg0, %c0_i32, %c0_i32_0 : i32, i32, i32
  }
  func.func @transform_6(%arg0: i32) -> (i32, i32, i32) {
    %c0_i32 = arith.constant 0 : i32
    %c0_i32_0 = arith.constant 0 : i32
    %c0_i32_1 = arith.constant 0 : i32
    return %arg0, %c0_i32, %c0_i32_0 : i32, i32, i32
  }
}

module attributes {stable_mosaic.version = 11 : i64} {
  func.func @_attn_kernel(%arg0: i32, %arg1: i32, %arg2: memref<1x4x8x16xbf16, #tpu.memory_space<vmem>>, %arg3: memref<1x4x8x16xbf16, #tpu.memory_space<vmem>>, %arg4: memref<1x16xf32, #tpu.memory_space<vmem>>, %arg5: memref<1x16xf32, #tpu.memory_space<vmem>>, %arg6: memref<16x16xf32, #tpu.memory_space<vmem>>, %arg7: memref<16x16xbf16, #tpu.memory_space<vmem>>, %arg8: memref<16x16xbf16, #tpu.memory_space<vmem>>, %arg9: memref<16x16xbf16, #tpu.memory_space<vmem>>, %arg10: memref<16x16xbf16, #tpu.memory_space<vmem>>, %arg11: memref<1x16xf32, #tpu.memory_space<vmem>>, %arg12: memref<1x4x8x16xbf16, #tpu.memory_space<vmem>>, %arg13: memref<32x16xf32, #tpu.memory_space<vmem>>, %arg14: memref<32x16xf32, #tpu.memory_space<vmem>>) attributes {dimension_semantics = [#tpu.dimension_semantics<parallel>, #tpu.dimension_semantics<parallel>], iteration_bounds = array<i64: 2, 2>, scalar_prefetch = 0 : i64, scratch_operands = 2 : i64, tpu.core_type = #tpu.core_type<tc>, window_params = [{transform_indices = @transform_0, window_bounds = array<i64: 1, 4, 8, 16>}, {transform_indices = @transform_1, window_bounds = array<i64: 1, 4, 8, 16>}, {pipeline_mode = #tpu.pipeline_mode<synchronous>, transform_indices = @transform_2, window_bounds = array<i64: 1, 16>}, {pipeline_mode = #tpu.pipeline_mode<synchronous>, transform_indices = @transform_3, window_bounds = array<i64: 1, 16>}, {pipeline_mode = #tpu.pipeline_mode<synchronous>, transform_indices = @transform_4, window_bounds = array<i64: 16, 16>}, {pipeline_mode = #tpu.pipeline_mode<synchronous>, transform_indices = @transform_5, window_bounds = array<i64: 16, 16>}, {pipeline_mode = #tpu.pipeline_mode<synchronous>, transform_indices = @transform_6, window_bounds = array<i64: 16, 16>}, {pipeline_mode = #tpu.pipeline_mode<synchronous>, transform_indices = @transform_7, window_bounds = array<i64: 16, 16>}, {pipeline_mode = #tpu.pipeline_mode<synchronous>, transform_indices = @transform_8, window_bounds = array<i64: 16, 16>}, {pipeline_mode = #tpu.pipeline_mode<synchronous>, transform_indices = @transform_9, window_bounds = array<i64: 1, 16>}, {transform_indices = @transform_10, window_bounds = array<i64: 1, 4, 8, 16>}]} {
    %c0 = arith.constant 0 : index
    %c0_0 = arith.constant 0 : index
    %c0_1 = arith.constant 0 : index
    %c0_2 = arith.constant 0 : index
    %0 = vector.load %arg2[%c0, %c0_0, %c0_1, %c0_2] : memref<1x4x8x16xbf16, #tpu.memory_space<vmem>>, vector<1x4x8x16xbf16>
    %1 = vector.shape_cast %0 : vector<1x4x8x16xbf16> to vector<4x8x16xbf16>
    %2 = arith.extf %1 : vector<4x8x16xbf16> to vector<4x8x16xf32>
    %c0_3 = arith.constant 0 : index
    %c0_4 = arith.constant 0 : index
    %3 = vector.load %arg4[%c0_3, %c0_4] : memref<1x16xf32, #tpu.memory_space<vmem>>, vector<1x16xf32>
    %4 = vector.shape_cast %3 : vector<1x16xf32> to vector<1x1x16xf32>
    %5 = vector.broadcast %4 : vector<1x1x16xf32> to vector<4x8x16xf32>
    %6 = arith.mulf %2, %5 : vector<4x8x16xf32>
    %c0_5 = arith.constant 0 : index
    %c0_6 = arith.constant 0 : index
    %7 = vector.load %arg5[%c0_5, %c0_6] : memref<1x16xf32, #tpu.memory_space<vmem>>, vector<1x16xf32>
    %8 = vector.shape_cast %7 : vector<1x16xf32> to vector<1x1x16xf32>
    %9 = vector.broadcast %8 : vector<1x1x16xf32> to vector<4x8x16xf32>
    %10 = arith.addf %6, %9 : vector<4x8x16xf32>
    %11 = vector.extract_strided_slice %10 {offsets = [0, 0, 0], sizes = [1, 4, 16], strides = [1, 1, 1]} : vector<4x8x16xf32> to vector<1x4x16xf32>
    %12 = vector.shape_cast %11 : vector<1x4x16xf32> to vector<4x16xf32>
    %c0_7 = arith.constant 0 : index
    %c0_8 = arith.constant 0 : index
    %13 = vector.load %arg13[%c0_7, %c0_8] : memref<32x16xf32, #tpu.memory_space<vmem>>, vector<4x16xf32>
    tpu.vector_store %arg13[%c0_7, %c0_8], %12 {strides = array<i32>} : memref<32x16xf32, #tpu.memory_space<vmem>>, vector<4x16xf32>,
    %14 = vector.extract_strided_slice %10 {offsets = [1, 0, 0], sizes = [1, 4, 16], strides = [1, 1, 1]} : vector<4x8x16xf32> to vector<1x4x16xf32>
    %15 = vector.shape_cast %14 : vector<1x4x16xf32> to vector<4x16xf32>
    %c4 = arith.constant 4 : index
    %c0_9 = arith.constant 0 : index
    %16 = vector.load %arg13[%c4, %c0_9] : memref<32x16xf32, #tpu.memory_space<vmem>>, vector<4x16xf32>
    tpu.vector_store %arg13[%c4, %c0_9], %15 {strides = array<i32>} : memref<32x16xf32, #tpu.memory_space<vmem>>, vector<4x16xf32>,
    %17 = vector.extract_strided_slice %10 {offsets = [2, 0, 0], sizes = [1, 4, 16], strides = [1, 1, 1]} : vector<4x8x16xf32> to vector<1x4x16xf32>
    %18 = vector.shape_cast %17 : vector<1x4x16xf32> to vector<4x16xf32>
    %c8 = arith.constant 8 : index
    %c0_10 = arith.constant 0 : index
    %19 = vector.load %arg13[%c8, %c0_10] : memref<32x16xf32, #tpu.memory_space<vmem>>, vector<4x16xf32>
    tpu.vector_store %arg13[%c8, %c0_10], %18 {strides = array<i32>} : memref<32x16xf32, #tpu.memory_space<vmem>>, vector<4x16xf32>,
    %20 = vector.extract_strided_slice %10 {offsets = [3, 0, 0], sizes = [1, 4, 16], strides = [1, 1, 1]} : vector<4x8x16xf32> to vector<1x4x16xf32>
    %21 = vector.shape_cast %20 : vector<1x4x16xf32> to vector<4x16xf32>
    %c12 = arith.constant 12 : index
    %c0_11 = arith.constant 0 : index
    %22 = vector.load %arg13[%c12, %c0_11] : memref<32x16xf32, #tpu.memory_space<vmem>>, vector<4x16xf32>
    tpu.vector_store %arg13[%c12, %c0_11], %21 {strides = array<i32>} : memref<32x16xf32, #tpu.memory_space<vmem>>, vector<4x16xf32>,
    %23 = vector.extract_strided_slice %10 {offsets = [0, 4, 0], sizes = [1, 4, 16], strides = [1, 1, 1]} : vector<4x8x16xf32> to vector<1x4x16xf32>
    %24 = vector.shape_cast %23 : vector<1x4x16xf32> to vector<4x16xf32>
    %c16 = arith.constant 16 : index
    %c0_12 = arith.constant 0 : index
    %25 = vector.load %arg13[%c16, %c0_12] : memref<32x16xf32, #tpu.memory_space<vmem>>, vector<4x16xf32>
    tpu.vector_store %arg13[%c16, %c0_12], %24 {strides = array<i32>} : memref<32x16xf32, #tpu.memory_space<vmem>>, vector<4x16xf32>,
    %26 = vector.extract_strided_slice %10 {offsets = [1, 4, 0], sizes = [1, 4, 16], strides = [1, 1, 1]} : vector<4x8x16xf32> to vector<1x4x16xf32>
    %27 = vector.shape_cast %26 : vector<1x4x16xf32> to vector<4x16xf32>
    %c20 = arith.constant 20 : index
    %c0_13 = arith.constant 0 : index
    %28 = vector.load %arg13[%c20, %c0_13] : memref<32x16xf32, #tpu.memory_space<vmem>>, vector<4x16xf32>
    tpu.vector_store %arg13[%c20, %c0_13], %27 {strides = array<i32>} : memref<32x16xf32, #tpu.memory_space<vmem>>, vector<4x16xf32>,
    %29 = vector.extract_strided_slice %10 {offsets = [2, 4, 0], sizes = [1, 4, 16], strides = [1, 1, 1]} : vector<4x8x16xf32> to vector<1x4x16xf32>
    %30 = vector.shape_cast %29 : vector<1x4x16xf32> to vector<4x16xf32>
    %c24 = arith.constant 24 : index
    %c0_14 = arith.constant 0 : index
    %31 = vector.load %arg13[%c24, %c0_14] : memref<32x16xf32, #tpu.memory_space<vmem>>, vector<4x16xf32>
    tpu.vector_store %arg13[%c24, %c0_14], %30 {strides = array<i32>} : memref<32x16xf32, #tpu.memory_space<vmem>>, vector<4x16xf32>,
    %32 = vector.extract_strided_slice %10 {offsets = [3, 4, 0], sizes = [1, 4, 16], strides = [1, 1, 1]} : vector<4x8x16xf32> to vector<1x4x16xf32>
    %33 = vector.shape_cast %32 : vector<1x4x16xf32> to vector<4x16xf32>
    %c28 = arith.constant 28 : index
    %c0_15 = arith.constant 0 : index
    %34 = vector.load %arg13[%c28, %c0_15] : memref<32x16xf32, #tpu.memory_space<vmem>>, vector<4x16xf32>
    tpu.vector_store %arg13[%c28, %c0_15], %33 {strides = array<i32>} : memref<32x16xf32, #tpu.memory_space<vmem>>, vector<4x16xf32>,
    %c0_16 = arith.constant 0 : index
    %c0_17 = arith.constant 0 : index
    %35 = vector.load %arg13[%c0_16, %c0_17] : memref<32x16xf32, #tpu.memory_space<vmem>>, vector<32x16xf32>
    %36 = arith.truncf %35 : vector<32x16xf32> to vector<32x16xbf16>
    %c0_18 = arith.constant 0 : index
    %c0_19 = arith.constant 0 : index
    %37 = vector.load %arg6[%c0_18, %c0_19] : memref<16x16xf32, #tpu.memory_space<vmem>>, vector<16x16xf32>
    %c0_20 = arith.constant 0 : index
    %c0_21 = arith.constant 0 : index
    %38 = vector.load %arg7[%c0_20, %c0_21] : memref<16x16xbf16, #tpu.memory_space<vmem>>, vector<16x16xbf16>
    %cst = arith.constant dense<0.000000e+00> : vector<32x16xf32>
    %39 = tpu.matmul %36, %38, %cst {dimension_numbers = #tpu.dot_dimension_numbers<[1], [0], [0], [1], [0, 0, 1, 1], [], []>} : vector<32x16xbf16>, vector<16x16xbf16>, vector<32x16xf32> -> vector<32x16xf32>
    %c0_22 = arith.constant 0 : index
    %c0_23 = arith.constant 0 : index
    %40 = vector.load %arg8[%c0_22, %c0_23] : memref<16x16xbf16, #tpu.memory_space<vmem>>, vector<16x16xbf16>
    %cst_24 = arith.constant dense<0.000000e+00> : vector<32x16xf32>
    %41 = tpu.matmul %36, %40, %cst_24 {dimension_numbers = #tpu.dot_dimension_numbers<[1], [0], [0], [1], [0, 0, 1, 1], [], []>} : vector<32x16xbf16>, vector<16x16xbf16>, vector<32x16xf32> -> vector<32x16xf32>
    %c0_25 = arith.constant 0 : index
    %c0_26 = arith.constant 0 : index
    %42 = vector.load %arg9[%c0_25, %c0_26] : memref<16x16xbf16, #tpu.memory_space<vmem>>, vector<16x16xbf16>
    %cst_27 = arith.constant dense<0.000000e+00> : vector<32x16xf32>
    %43 = tpu.matmul %36, %42, %cst_27 {dimension_numbers = #tpu.dot_dimension_numbers<[1], [0], [0], [1], [0, 0, 1, 1], [], []>} : vector<32x16xbf16>, vector<16x16xbf16>, vector<32x16xf32> -> vector<32x16xf32>
    %44 = vector.extract_strided_slice %39 {offsets = [0, 0], sizes = [32, 8], strides = [1, 1]} : vector<32x16xf32> to vector<32x8xf32>
    %45 = vector.shape_cast %44 : vector<32x8xf32> to vector<2x16x8xf32>
    %46 = arith.truncf %45 : vector<2x16x8xf32> to vector<2x16x8xbf16>
    %47 = vector.extract_strided_slice %41 {offsets = [0, 0], sizes = [32, 8], strides = [1, 1]} : vector<32x16xf32> to vector<32x8xf32>
    %48 = vector.shape_cast %47 : vector<32x8xf32> to vector<2x16x8xf32>
    %49 = arith.truncf %48 : vector<2x16x8xf32> to vector<2x16x8xbf16>
    %50 = vector.extract_strided_slice %43 {offsets = [0, 0], sizes = [32, 8], strides = [1, 1]} : vector<32x16xf32> to vector<32x8xf32>
    %51 = vector.shape_cast %50 : vector<32x8xf32> to vector<2x16x8xf32>
    %52 = arith.truncf %51 : vector<2x16x8xf32> to vector<2x16x8xbf16>
    "tpu.trace_start"() <{level = 10 : i32, message = "wtd,wsd->wts"}> : () -> ()
    %cst_28 = arith.constant dense<0.000000e+00> : vector<2x16x16xf32>
    %53 = tpu.matmul %46, %49, %cst_28 {dimension_numbers = #tpu.dot_dimension_numbers<[2], [2], [1], [1], [0, 0, 0, 1, 1, 1], [0], [0]>} : vector<2x16x8xbf16>, vector<2x16x8xbf16>, vector<2x16x16xf32> -> vector<2x16x16xf32>
    "tpu.trace_stop"() : () -> ()
    %54 = vector.shape_cast %37 : vector<16x16xf32> to vector<1x16x16xf32>
    %55 = vector.broadcast %54 : vector<1x16x16xf32> to vector<2x16x16xf32>
    %56 = arith.addf %53, %55 : vector<2x16x16xf32>
    %cst_29 = arith.constant dense<0xFF800000> : vector<2x16xf32>
    %57 = vector.multi_reduction <maximumf>, %56, %cst_29 [2] : vector<2x16x16xf32> to vector<2x16xf32>
    %58 = vector.shape_cast %57 : vector<2x16xf32> to vector<2x16x1xf32>
    %59 = vector.broadcast %58 : vector<2x16x1xf32> to vector<2x16x16xf32>
    %60 = arith.subf %56, %59 : vector<2x16x16xf32>
    %61 = math.exp %60 : vector<2x16x16xf32>
    %cst_30 = arith.constant dense<0.000000e+00> : vector<2x16xf32>
    %62 = vector.multi_reduction <add>, %61, %cst_30 [2] : vector<2x16x16xf32> to vector<2x16xf32>
    %63 = vector.shape_cast %62 : vector<2x16xf32> to vector<2x16x1xf32>
    %64 = tpu.reciprocal %63 {approx = true} : vector<2x16x1xf32> -> vector<2x16x1xf32>
    %65 = vector.broadcast %64 : vector<2x16x1xf32> to vector<2x16x16xf32>
    %66 = arith.mulf %61, %65 : vector<2x16x16xf32>
    %67 = arith.truncf %66 : vector<2x16x16xf32> to vector<2x16x16xbf16>
    "tpu.trace_start"() <{level = 10 : i32, message = "wts,wsd->wtd"}> : () -> ()
    %cst_31 = arith.constant dense<0.000000e+00> : vector<2x16x8xf32>
    %68 = tpu.matmul %67, %52, %cst_31 {dimension_numbers = #tpu.dot_dimension_numbers<[2], [1], [1], [2], [0, 0, 0, 1, 1, 2], [0], [0]>} : vector<2x16x16xbf16>, vector<2x16x8xbf16>, vector<2x16x8xf32> -> vector<2x16x8xf32>
    "tpu.trace_stop"() : () -> ()
    %69 = vector.shape_cast %68 : vector<2x16x8xf32> to vector<32x8xf32>
    %c0_32 = arith.constant 0 : index
    %c0_33 = arith.constant 0 : index
    %70 = vector.load %arg14[%c0_32, %c0_33] : memref<32x16xf32, #tpu.memory_space<vmem>>, vector<32x8xf32>
    tpu.vector_store %arg14[%c0_32, %c0_33], %69 {strides = array<i32>} : memref<32x16xf32, #tpu.memory_space<vmem>>, vector<32x8xf32>,
    %71 = vector.extract_strided_slice %39 {offsets = [0, 8], sizes = [32, 8], strides = [1, 1]} : vector<32x16xf32> to vector<32x8xf32>
    %72 = vector.shape_cast %71 : vector<32x8xf32> to vector<2x16x8xf32>
    %73 = arith.truncf %72 : vector<2x16x8xf32> to vector<2x16x8xbf16>
    %74 = vector.extract_strided_slice %41 {offsets = [0, 8], sizes = [32, 8], strides = [1, 1]} : vector<32x16xf32> to vector<32x8xf32>
    %75 = vector.shape_cast %74 : vector<32x8xf32> to vector<2x16x8xf32>
    %76 = arith.truncf %75 : vector<2x16x8xf32> to vector<2x16x8xbf16>
    %77 = vector.extract_strided_slice %43 {offsets = [0, 8], sizes = [32, 8], strides = [1, 1]} : vector<32x16xf32> to vector<32x8xf32>
    %78 = vector.shape_cast %77 : vector<32x8xf32> to vector<2x16x8xf32>
    %79 = arith.truncf %78 : vector<2x16x8xf32> to vector<2x16x8xbf16>
    "tpu.trace_start"() <{level = 10 : i32, message = "wtd,wsd->wts"}> : () -> ()
    %cst_34 = arith.constant dense<0.000000e+00> : vector<2x16x16xf32>
    %80 = tpu.matmul %73, %76, %cst_34 {dimension_numbers = #tpu.dot_dimension_numbers<[2], [2], [1], [1], [0, 0, 0, 1, 1, 1], [0], [0]>} : vector<2x16x8xbf16>, vector<2x16x8xbf16>, vector<2x16x16xf32> -> vector<2x16x16xf32>
    "tpu.trace_stop"() : () -> ()
    %81 = vector.shape_cast %37 : vector<16x16xf32> to vector<1x16x16xf32>
    %82 = vector.broadcast %81 : vector<1x16x16xf32> to vector<2x16x16xf32>
    %83 = arith.addf %80, %82 : vector<2x16x16xf32>
    %cst_35 = arith.constant dense<0xFF800000> : vector<2x16xf32>
    %84 = vector.multi_reduction <maximumf>, %83, %cst_35 [2] : vector<2x16x16xf32> to vector<2x16xf32>
    %85 = vector.shape_cast %84 : vector<2x16xf32> to vector<2x16x1xf32>
    %86 = vector.broadcast %85 : vector<2x16x1xf32> to vector<2x16x16xf32>
    %87 = arith.subf %83, %86 : vector<2x16x16xf32>
    %88 = math.exp %87 : vector<2x16x16xf32>
    %cst_36 = arith.constant dense<0.000000e+00> : vector<2x16xf32>
    %89 = vector.multi_reduction <add>, %88, %cst_36 [2] : vector<2x16x16xf32> to vector<2x16xf32>
    %90 = vector.shape_cast %89 : vector<2x16xf32> to vector<2x16x1xf32>
    %91 = tpu.reciprocal %90 {approx = true} : vector<2x16x1xf32> -> vector<2x16x1xf32>
    %92 = vector.broadcast %91 : vector<2x16x1xf32> to vector<2x16x16xf32>
    %93 = arith.mulf %88, %92 : vector<2x16x16xf32>
    %94 = arith.truncf %93 : vector<2x16x16xf32> to vector<2x16x16xbf16>
    "tpu.trace_start"() <{level = 10 : i32, message = "wts,wsd->wtd"}> : () -> ()
    %cst_37 = arith.constant dense<0.000000e+00> : vector<2x16x8xf32>
    %95 = tpu.matmul %94, %79, %cst_37 {dimension_numbers = #tpu.dot_dimension_numbers<[2], [1], [1], [2], [0, 0, 0, 1, 1, 2], [0], [0]>} : vector<2x16x16xbf16>, vector<2x16x8xbf16>, vector<2x16x8xf32> -> vector<2x16x8xf32>
    "tpu.trace_stop"() : () -> ()
    %96 = vector.shape_cast %95 : vector<2x16x8xf32> to vector<32x8xf32>
    %c0_38 = arith.constant 0 : index
    %c8_39 = arith.constant 8 : index
    %97 = vector.load %arg14[%c0_38, %c8_39] : memref<32x16xf32, #tpu.memory_space<vmem>>, vector<32x8xf32>
    tpu.vector_store %arg14[%c0_38, %c8_39], %96 {strides = array<i32>} : memref<32x16xf32, #tpu.memory_space<vmem>>, vector<32x8xf32>,
    %c0_40 = arith.constant 0 : index
    %c0_41 = arith.constant 0 : index
    %98 = vector.load %arg14[%c0_40, %c0_41] : memref<32x16xf32, #tpu.memory_space<vmem>>, vector<32x16xf32>
    %99 = arith.truncf %98 : vector<32x16xf32> to vector<32x16xbf16>
    %c0_42 = arith.constant 0 : index
    %c0_43 = arith.constant 0 : index
    %100 = vector.load %arg10[%c0_42, %c0_43] : memref<16x16xbf16, #tpu.memory_space<vmem>>, vector<16x16xbf16>
    %cst_44 = arith.constant dense<0.000000e+00> : vector<32x16xf32>
    %101 = tpu.matmul %99, %100, %cst_44 {dimension_numbers = #tpu.dot_dimension_numbers<[1], [0], [0], [1], [0, 0, 1, 1], [], []>} : vector<32x16xbf16>, vector<16x16xbf16>, vector<32x16xf32> -> vector<32x16xf32>
    %c0_45 = arith.constant 0 : index
    %c0_46 = arith.constant 0 : index
    %102 = vector.load %arg11[%c0_45, %c0_46] : memref<1x16xf32, #tpu.memory_space<vmem>>, vector<1x16xf32>
    %103 = vector.broadcast %102 : vector<1x16xf32> to vector<32x16xf32>
    %104 = arith.addf %101, %103 : vector<32x16xf32>
    %c0_47 = arith.constant 0 : index
    %c0_48 = arith.constant 0 : index
    %c0_49 = arith.constant 0 : index
    %c0_50 = arith.constant 0 : index
    %105 = vector.load %arg3[%c0_47, %c0_48, %c0_49, %c0_50] : memref<1x4x8x16xbf16, #tpu.memory_space<vmem>>, vector<1x1x8x16xbf16>
    %106 = vector.shape_cast %105 : vector<1x1x8x16xbf16> to vector<8x16xbf16>
    %107 = arith.extf %106 : vector<8x16xbf16> to vector<8x16xf32>
    %108 = vector.extract_strided_slice %104 {offsets = [0, 0], sizes = [4, 16], strides = [1, 1]} : vector<32x16xf32> to vector<4x16xf32>
    %109 = vector.extract_strided_slice %107 {offsets = [0, 0], sizes = [4, 16], strides = [1, 1]} : vector<8x16xf32> to vector<4x16xf32>
    %110 = arith.addf %108, %109 : vector<4x16xf32>
    %111 = arith.truncf %110 : vector<4x16xf32> to vector<4x16xbf16>
    %c0_51 = arith.constant 0 : index
    %c0_52 = arith.constant 0 : index
    %c0_53 = arith.constant 0 : index
    %c0_54 = arith.constant 0 : index
    %112 = vector.load %arg12[%c0_51, %c0_52, %c0_53, %c0_54] : memref<1x4x8x16xbf16, #tpu.memory_space<vmem>>, vector<1x1x4x16xbf16>
    %113 = vector.shape_cast %112 : vector<1x1x4x16xbf16> to vector<4x16xbf16>
    %114 = vector.shape_cast %111 : vector<4x16xbf16> to vector<1x1x4x16xbf16>
    tpu.vector_store %arg12[%c0_51, %c0_52, %c0_53, %c0_54], %114 {strides = array<i32>} : memref<1x4x8x16xbf16, #tpu.memory_space<vmem>>, vector<1x1x4x16xbf16>,
    %115 = vector.extract_strided_slice %104 {offsets = [16, 0], sizes = [4, 16], strides = [1, 1]} : vector<32x16xf32> to vector<4x16xf32>
    %116 = vector.extract_strided_slice %107 {offsets = [4, 0], sizes = [4, 16], strides = [1, 1]} : vector<8x16xf32> to vector<4x16xf32>
    %117 = arith.addf %115, %116 : vector<4x16xf32>
    %118 = arith.truncf %117 : vector<4x16xf32> to vector<4x16xbf16>
    %c0_55 = arith.constant 0 : index
    %c0_56 = arith.constant 0 : index
    %c4_57 = arith.constant 4 : index
    %c0_58 = arith.constant 0 : index
    %119 = vector.load %arg12[%c0_55, %c0_56, %c4_57, %c0_58] : memref<1x4x8x16xbf16, #tpu.memory_space<vmem>>, vector<1x1x4x16xbf16>
    %120 = vector.shape_cast %119 : vector<1x1x4x16xbf16> to vector<4x16xbf16>
    %121 = vector.shape_cast %118 : vector<4x16xbf16> to vector<1x1x4x16xbf16>
    tpu.vector_store %arg12[%c0_55, %c0_56, %c4_57, %c0_58], %121 {strides = array<i32>} : memref<1x4x8x16xbf16, #tpu.memory_space<vmem>>, vector<1x1x4x16xbf16>,
    %c0_59 = arith.constant 0 : index
    %c1 = arith.constant 1 : index
    %c0_60 = arith.constant 0 : index
    %c0_61 = arith.constant 0 : index
    %122 = vector.load %arg3[%c0_59, %c1, %c0_60, %c0_61] : memref<1x4x8x16xbf16, #tpu.memory_space<vmem>>, vector<1x1x8x16xbf16>
    %123 = vector.shape_cast %122 : vector<1x1x8x16xbf16> to vector<8x16xbf16>
    %124 = arith.extf %123 : vector<8x16xbf16> to vector<8x16xf32>
    %125 = vector.extract_strided_slice %104 {offsets = [4, 0], sizes = [4, 16], strides = [1, 1]} : vector<32x16xf32> to vector<4x16xf32>
    %126 = vector.extract_strided_slice %124 {offsets = [0, 0], sizes = [4, 16], strides = [1, 1]} : vector<8x16xf32> to vector<4x16xf32>
    %127 = arith.addf %125, %126 : vector<4x16xf32>
    %128 = arith.truncf %127 : vector<4x16xf32> to vector<4x16xbf16>
    %c0_62 = arith.constant 0 : index
    %c1_63 = arith.constant 1 : index
    %c0_64 = arith.constant 0 : index
    %c0_65 = arith.constant 0 : index
    %129 = vector.load %arg12[%c0_62, %c1_63, %c0_64, %c0_65] : memref<1x4x8x16xbf16, #tpu.memory_space<vmem>>, vector<1x1x4x16xbf16>
    %130 = vector.shape_cast %129 : vector<1x1x4x16xbf16> to vector<4x16xbf16>
    %131 = vector.shape_cast %128 : vector<4x16xbf16> to vector<1x1x4x16xbf16>
    tpu.vector_store %arg12[%c0_62, %c1_63, %c0_64, %c0_65], %131 {strides = array<i32>} : memref<1x4x8x16xbf16, #tpu.memory_space<vmem>>, vector<1x1x4x16xbf16>,
    %132 = vector.extract_strided_slice %104 {offsets = [20, 0], sizes = [4, 16], strides = [1, 1]} : vector<32x16xf32> to vector<4x16xf32>
    %133 = vector.extract_strided_slice %124 {offsets = [4, 0], sizes = [4, 16], strides = [1, 1]} : vector<8x16xf32> to vector<4x16xf32>
    %134 = arith.addf %132, %133 : vector<4x16xf32>
    %135 = arith.truncf %134 : vector<4x16xf32> to vector<4x16xbf16>
    %c0_66 = arith.constant 0 : index
    %c1_67 = arith.constant 1 : index
    %c4_68 = arith.constant 4 : index
    %c0_69 = arith.constant 0 : index
    %136 = vector.load %arg12[%c0_66, %c1_67, %c4_68, %c0_69] : memref<1x4x8x16xbf16, #tpu.memory_space<vmem>>, vector<1x1x4x16xbf16>
    %137 = vector.shape_cast %136 : vector<1x1x4x16xbf16> to vector<4x16xbf16>
    %138 = vector.shape_cast %135 : vector<4x16xbf16> to vector<1x1x4x16xbf16>
    tpu.vector_store %arg12[%c0_66, %c1_67, %c4_68, %c0_69], %138 {strides = array<i32>} : memref<1x4x8x16xbf16, #tpu.memory_space<vmem>>, vector<1x1x4x16xbf16>,
    %c0_70 = arith.constant 0 : index
    %c2 = arith.constant 2 : index
    %c0_71 = arith.constant 0 : index
    %c0_72 = arith.constant 0 : index
    %139 = vector.load %arg3[%c0_70, %c2, %c0_71, %c0_72] : memref<1x4x8x16xbf16, #tpu.memory_space<vmem>>, vector<1x1x8x16xbf16>
    %140 = vector.shape_cast %139 : vector<1x1x8x16xbf16> to vector<8x16xbf16>
    %141 = arith.extf %140 : vector<8x16xbf16> to vector<8x16xf32>
    %142 = vector.extract_strided_slice %104 {offsets = [8, 0], sizes = [4, 16], strides = [1, 1]} : vector<32x16xf32> to vector<4x16xf32>
    %143 = vector.extract_strided_slice %141 {offsets = [0, 0], sizes = [4, 16], strides = [1, 1]} : vector<8x16xf32> to vector<4x16xf32>
    %144 = arith.addf %142, %143 : vector<4x16xf32>
    %145 = arith.truncf %144 : vector<4x16xf32> to vector<4x16xbf16>
    %c0_73 = arith.constant 0 : index
    %c2_74 = arith.constant 2 : index
    %c0_75 = arith.constant 0 : index
    %c0_76 = arith.constant 0 : index
    %146 = vector.load %arg12[%c0_73, %c2_74, %c0_75, %c0_76] : memref<1x4x8x16xbf16, #tpu.memory_space<vmem>>, vector<1x1x4x16xbf16>
    %147 = vector.shape_cast %146 : vector<1x1x4x16xbf16> to vector<4x16xbf16>
    %148 = vector.shape_cast %145 : vector<4x16xbf16> to vector<1x1x4x16xbf16>
    tpu.vector_store %arg12[%c0_73, %c2_74, %c0_75, %c0_76], %148 {strides = array<i32>} : memref<1x4x8x16xbf16, #tpu.memory_space<vmem>>, vector<1x1x4x16xbf16>,
    %149 = vector.extract_strided_slice %104 {offsets = [24, 0], sizes = [4, 16], strides = [1, 1]} : vector<32x16xf32> to vector<4x16xf32>
    %150 = vector.extract_strided_slice %141 {offsets = [4, 0], sizes = [4, 16], strides = [1, 1]} : vector<8x16xf32> to vector<4x16xf32>
    %151 = arith.addf %149, %150 : vector<4x16xf32>
    %152 = arith.truncf %151 : vector<4x16xf32> to vector<4x16xbf16>
    %c0_77 = arith.constant 0 : index
    %c2_78 = arith.constant 2 : index
    %c4_79 = arith.constant 4 : index
    %c0_80 = arith.constant 0 : index
    %153 = vector.load %arg12[%c0_77, %c2_78, %c4_79, %c0_80] : memref<1x4x8x16xbf16, #tpu.memory_space<vmem>>, vector<1x1x4x16xbf16>
    %154 = vector.shape_cast %153 : vector<1x1x4x16xbf16> to vector<4x16xbf16>
    %155 = vector.shape_cast %152 : vector<4x16xbf16> to vector<1x1x4x16xbf16>
    tpu.vector_store %arg12[%c0_77, %c2_78, %c4_79, %c0_80], %155 {strides = array<i32>} : memref<1x4x8x16xbf16, #tpu.memory_space<vmem>>, vector<1x1x4x16xbf16>,
    %c0_81 = arith.constant 0 : index
    %c3 = arith.constant 3 : index
    %c0_82 = arith.constant 0 : index
    %c0_83 = arith.constant 0 : index
    %156 = vector.load %arg3[%c0_81, %c3, %c0_82, %c0_83] : memref<1x4x8x16xbf16, #tpu.memory_space<vmem>>, vector<1x1x8x16xbf16>
    %157 = vector.shape_cast %156 : vector<1x1x8x16xbf16> to vector<8x16xbf16>
    %158 = arith.extf %157 : vector<8x16xbf16> to vector<8x16xf32>
    %159 = vector.extract_strided_slice %104 {offsets = [12, 0], sizes = [4, 16], strides = [1, 1]} : vector<32x16xf32> to vector<4x16xf32>
    %160 = vector.extract_strided_slice %158 {offsets = [0, 0], sizes = [4, 16], strides = [1, 1]} : vector<8x16xf32> to vector<4x16xf32>
    %161 = arith.addf %159, %160 : vector<4x16xf32>
    %162 = arith.truncf %161 : vector<4x16xf32> to vector<4x16xbf16>
    %c0_84 = arith.constant 0 : index
    %c3_85 = arith.constant 3 : index
    %c0_86 = arith.constant 0 : index
    %c0_87 = arith.constant 0 : index
    %163 = vector.load %arg12[%c0_84, %c3_85, %c0_86, %c0_87] : memref<1x4x8x16xbf16, #tpu.memory_space<vmem>>, vector<1x1x4x16xbf16>
    %164 = vector.shape_cast %163 : vector<1x1x4x16xbf16> to vector<4x16xbf16>
    %165 = vector.shape_cast %162 : vector<4x16xbf16> to vector<1x1x4x16xbf16>
    tpu.vector_store %arg12[%c0_84, %c3_85, %c0_86, %c0_87], %165 {strides = array<i32>} : memref<1x4x8x16xbf16, #tpu.memory_space<vmem>>, vector<1x1x4x16xbf16>,
    %166 = vector.extract_strided_slice %104 {offsets = [28, 0], sizes = [4, 16], strides = [1, 1]} : vector<32x16xf32> to vector<4x16xf32>
    %167 = vector.extract_strided_slice %158 {offsets = [4, 0], sizes = [4, 16], strides = [1, 1]} : vector<8x16xf32> to vector<4x16xf32>
    %168 = arith.addf %166, %167 : vector<4x16xf32>
    %169 = arith.truncf %168 : vector<4x16xf32> to vector<4x16xbf16>
    %c0_88 = arith.constant 0 : index
    %c3_89 = arith.constant 3 : index
    %c4_90 = arith.constant 4 : index
    %c0_91 = arith.constant 0 : index
    %170 = vector.load %arg12[%c0_88, %c3_89, %c4_90, %c0_91] : memref<1x4x8x16xbf16, #tpu.memory_space<vmem>>, vector<1x1x4x16xbf16>
    %171 = vector.shape_cast %170 : vector<1x1x4x16xbf16> to vector<4x16xbf16>
    %172 = vector.shape_cast %169 : vector<4x16xbf16> to vector<1x1x4x16xbf16>
    tpu.vector_store %arg12[%c0_88, %c3_89, %c4_90, %c0_91], %172 {strides = array<i32>} : memref<1x4x8x16xbf16, #tpu.memory_space<vmem>>, vector<1x1x4x16xbf16>,
    return
  }
  func.func @transform_0(%arg0: i32, %arg1: i32) -> (i32, i32, i32, i32) {
    %c0_i32 = arith.constant 0 : i32
    %c0_i32_0 = arith.constant 0 : i32
    %c0_i32_1 = arith.constant 0 : i32
    return %arg0, %arg1, %c0_i32, %c0_i32_0 : i32, i32, i32, i32
  }
  func.func @transform_1(%arg0: i32, %arg1: i32) -> (i32, i32, i32, i32) {
    %c0_i32 = arith.constant 0 : i32
    %c0_i32_0 = arith.constant 0 : i32
    %c0_i32_1 = arith.constant 0 : i32
    return %arg0, %arg1, %c0_i32, %c0_i32_0 : i32, i32, i32, i32
  }
  func.func @transform_2(%arg0: i32, %arg1: i32) -> (i32, i32) {
    %c0_i32 = arith.constant 0 : i32
    %c0_i32_0 = arith.constant 0 : i32
    %c0_i32_1 = arith.constant 0 : i32
    return %c0_i32, %c0_i32_0 : i32, i32
  }
  func.func @transform_3(%arg0: i32, %arg1: i32) -> (i32, i32) {
    %c0_i32 = arith.constant 0 : i32
    %c0_i32_0 = arith.constant 0 : i32
    %c0_i32_1 = arith.constant 0 : i32
    return %c0_i32, %c0_i32_0 : i32, i32
  }
  func.func @transform_4(%arg0: i32, %arg1: i32) -> (i32, i32) {
    %c0_i32 = arith.constant 0 : i32
    %c0_i32_0 = arith.constant 0 : i32
    %c0_i32_1 = arith.constant 0 : i32
    return %c0_i32, %c0_i32_0 : i32, i32
  }
  func.func @transform_5(%arg0: i32, %arg1: i32) -> (i32, i32) {
    %c0_i32 = arith.constant 0 : i32
    %c0_i32_0 = arith.constant 0 : i32
    %c0_i32_1 = arith.constant 0 : i32
    return %c0_i32, %c0_i32_0 : i32, i32
  }
  func.func @transform_6(%arg0: i32, %arg1: i32) -> (i32, i32) {
    %c0_i32 = arith.constant 0 : i32
    %c0_i32_0 = arith.constant 0 : i32
    %c0_i32_1 = arith.constant 0 : i32
    return %c0_i32, %c0_i32_0 : i32, i32
  }
  func.func @transform_7(%arg0: i32, %arg1: i32) -> (i32, i32) {
    %c0_i32 = arith.constant 0 : i32
    %c0_i32_0 = arith.constant 0 : i32
    %c0_i32_1 = arith.constant 0 : i32
    return %c0_i32, %c0_i32_0 : i32, i32
  }
  func.func @transform_8(%arg0: i32, %arg1: i32) -> (i32, i32) {
    %c0_i32 = arith.constant 0 : i32
    %c0_i32_0 = arith.constant 0 : i32
    %c0_i32_1 = arith.constant 0 : i32
    return %c0_i32, %c0_i32_0 : i32, i32
  }
  func.func @transform_9(%arg0: i32, %arg1: i32) -> (i32, i32) {
    %c0_i32 = arith.constant 0 : i32
    %c0_i32_0 = arith.constant 0 : i32
    %c0_i32_1 = arith.constant 0 : i32
    return %c0_i32, %c0_i32_0 : i32, i32
  }
  func.func @transform_10(%arg0: i32, %arg1: i32) -> (i32, i32, i32, i32) {
    %c0_i32 = arith.constant 0 : i32
    %c0_i32_0 = arith.constant 0 : i32
    %c0_i32_1 = arith.constant 0 : i32
    return %arg0, %arg1, %c0_i32, %c0_i32_0 : i32, i32, i32, i32
  }
}

module attributes {stable_mosaic.version = 11 : i64} {
  func.func @_convnext_kernel(%arg0: i32, %arg1: memref<1x8x8x16xf32, #tpu.memory_space<vmem>>, %arg2: memref<7x7x16xf32, #tpu.memory_space<vmem>>, %arg3: memref<1x16xf32, #tpu.memory_space<vmem>>, %arg4: memref<1x16xf32, #tpu.memory_space<vmem>>, %arg5: memref<1x16xf32, #tpu.memory_space<vmem>>, %arg6: memref<16x64xbf16, #tpu.memory_space<vmem>>, %arg7: memref<1x64xf32, #tpu.memory_space<vmem>>, %arg8: memref<64x16xbf16, #tpu.memory_space<vmem>>, %arg9: memref<1x16xf32, #tpu.memory_space<vmem>>, %arg10: memref<1x8x8x16xbf16, #tpu.memory_space<vmem>>, %arg11: memref<1x1x16xf32, #tpu.memory_space<vmem>>, %arg12: memref<1x1x16xf32, #tpu.memory_space<vmem>>, %arg13: memref<14x14x16xf32, #tpu.memory_space<vmem>>) attributes {dimension_semantics = [#tpu.dimension_semantics<parallel>], iteration_bounds = array<i64: 2>, scalar_prefetch = 0 : i64, scratch_operands = 1 : i64, tpu.core_type = #tpu.core_type<tc>, window_params = [{transform_indices = @transform_0, window_bounds = array<i64: 1, 8, 8, 16>}, {pipeline_mode = #tpu.pipeline_mode<synchronous>, transform_indices = @transform_1, window_bounds = array<i64: 7, 7, 16>}, {pipeline_mode = #tpu.pipeline_mode<synchronous>, transform_indices = @transform_2, window_bounds = array<i64: 1, 16>}, {pipeline_mode = #tpu.pipeline_mode<synchronous>, transform_indices = @transform_3, window_bounds = array<i64: 1, 16>}, {pipeline_mode = #tpu.pipeline_mode<synchronous>, transform_indices = @transform_4, window_bounds = array<i64: 1, 16>}, {pipeline_mode = #tpu.pipeline_mode<synchronous>, transform_indices = @transform_5, window_bounds = array<i64: 16, 64>}, {pipeline_mode = #tpu.pipeline_mode<synchronous>, transform_indices = @transform_6, window_bounds = array<i64: 1, 64>}, {pipeline_mode = #tpu.pipeline_mode<synchronous>, transform_indices = @transform_7, window_bounds = array<i64: 64, 16>}, {pipeline_mode = #tpu.pipeline_mode<synchronous>, transform_indices = @transform_8, window_bounds = array<i64: 1, 16>}, {transform_indices = @transform_9, window_bounds = array<i64: 1, 8, 8, 16>}, {transform_indices = @transform_10, window_bounds = array<i64: 1, 1, 16>}, {transform_indices = @transform_11, window_bounds = array<i64: 1, 1, 16>}]} {
    %cst = arith.constant 0.000000e+00 : f32
    %0 = vector.broadcast %cst : f32 to vector<14x14x16xf32>
    %c0 = arith.constant 0 : index
    %c0_0 = arith.constant 0 : index
    %c0_1 = arith.constant 0 : index
    %1 = vector.load %arg13[%c0, %c0_0, %c0_1] : memref<14x14x16xf32, #tpu.memory_space<vmem>>, vector<14x14x16xf32>
    tpu.vector_store %arg13[%c0, %c0_0, %c0_1], %0 {strides = array<i32>} : memref<14x14x16xf32, #tpu.memory_space<vmem>>, vector<14x14x16xf32>,
    %c0_2 = arith.constant 0 : index
    %c0_3 = arith.constant 0 : index
    %c0_4 = arith.constant 0 : index
    %c0_5 = arith.constant 0 : index
    %2 = vector.load %arg1[%c0_2, %c0_3, %c0_4, %c0_5] : memref<1x8x8x16xf32, #tpu.memory_space<vmem>>, vector<1x8x8x16xf32>
    %3 = vector.shape_cast %2 : vector<1x8x8x16xf32> to vector<8x8x16xf32>
    %c3 = arith.constant 3 : index
    %c3_6 = arith.constant 3 : index
    %c0_7 = arith.constant 0 : index
    %4 = vector.load %arg13[%c3, %c3_6, %c0_7] : memref<14x14x16xf32, #tpu.memory_space<vmem>>, vector<8x8x16xf32>
    tpu.vector_store %arg13[%c3, %c3_6, %c0_7], %3 {strides = array<i32>} : memref<14x14x16xf32, #tpu.memory_space<vmem>>, vector<8x8x16xf32>,
    %cst_8 = arith.constant 0.000000e+00 : f32
    %5 = vector.broadcast %cst_8 : f32 to vector<8x8x16xf32>
    %c0_i32 = arith.constant 0 : i32
    %c7_i32 = arith.constant 7 : i32
    %6 = arith.addi %c0_i32, %c7_i32 : i32
    %c1_i32 = arith.constant 1 : i32
    %7 = scf.for %arg14 = %c0_i32 to %6 step %c1_i32 iter_args(%arg15 = %5) -> (vector<8x8x16xf32>)  : i32 {
      %c0_53 = arith.constant 0 : index
      %88 = arith.index_cast %arg14 : i32 to index
      %c0_54 = arith.constant 0 : index
      %89 = vector.load %arg13[%c0_53, %88, %c0_54] : memref<14x14x16xf32, #tpu.memory_space<vmem>>, vector<14x8x16xf32>
      %c0_55 = arith.constant 0 : index
      %90 = arith.index_cast %arg14 : i32 to index
      %c0_56 = arith.constant 0 : index
      %91 = vector.load %arg2[%c0_55, %90, %c0_56] : memref<7x7x16xf32, #tpu.memory_space<vmem>>, vector<7x1x16xf32>
      %92 = vector.extract_strided_slice %89 {offsets = [0, 0, 0], sizes = [8, 8, 16], strides = [1, 1, 1]} : vector<14x8x16xf32> to vector<8x8x16xf32>
      %93 = vector.extract_strided_slice %91 {offsets = [0, 0, 0], sizes = [1, 1, 16], strides = [1, 1, 1]} : vector<7x1x16xf32> to vector<1x1x16xf32>
      %94 = vector.shape_cast %93 : vector<1x1x16xf32> to vector<1x16xf32>
      %95 = vector.shape_cast %94 : vector<1x16xf32> to vector<1x1x16xf32>
      %96 = vector.broadcast %95 : vector<1x1x16xf32> to vector<8x8x16xf32>
      %97 = arith.mulf %92, %96 : vector<8x8x16xf32>
      %98 = arith.addf %arg15, %97 : vector<8x8x16xf32>
      %99 = vector.extract_strided_slice %89 {offsets = [1, 0, 0], sizes = [8, 8, 16], strides = [1, 1, 1]} : vector<14x8x16xf32> to vector<8x8x16xf32>
      %100 = vector.extract_strided_slice %91 {offsets = [1, 0, 0], sizes = [1, 1, 16], strides = [1, 1, 1]} : vector<7x1x16xf32> to vector<1x1x16xf32>
      %101 = vector.shape_cast %100 : vector<1x1x16xf32> to vector<1x16xf32>
      %102 = vector.shape_cast %101 : vector<1x16xf32> to vector<1x1x16xf32>
      %103 = vector.broadcast %102 : vector<1x1x16xf32> to vector<8x8x16xf32>
      %104 = arith.mulf %99, %103 : vector<8x8x16xf32>
      %105 = arith.addf %98, %104 : vector<8x8x16xf32>
      %106 = vector.extract_strided_slice %89 {offsets = [2, 0, 0], sizes = [8, 8, 16], strides = [1, 1, 1]} : vector<14x8x16xf32> to vector<8x8x16xf32>
      %107 = vector.extract_strided_slice %91 {offsets = [2, 0, 0], sizes = [1, 1, 16], strides = [1, 1, 1]} : vector<7x1x16xf32> to vector<1x1x16xf32>
      %108 = vector.shape_cast %107 : vector<1x1x16xf32> to vector<1x16xf32>
      %109 = vector.shape_cast %108 : vector<1x16xf32> to vector<1x1x16xf32>
      %110 = vector.broadcast %109 : vector<1x1x16xf32> to vector<8x8x16xf32>
      %111 = arith.mulf %106, %110 : vector<8x8x16xf32>
      %112 = arith.addf %105, %111 : vector<8x8x16xf32>
      %113 = vector.extract_strided_slice %89 {offsets = [3, 0, 0], sizes = [8, 8, 16], strides = [1, 1, 1]} : vector<14x8x16xf32> to vector<8x8x16xf32>
      %114 = vector.extract_strided_slice %91 {offsets = [3, 0, 0], sizes = [1, 1, 16], strides = [1, 1, 1]} : vector<7x1x16xf32> to vector<1x1x16xf32>
      %115 = vector.shape_cast %114 : vector<1x1x16xf32> to vector<1x16xf32>
      %116 = vector.shape_cast %115 : vector<1x16xf32> to vector<1x1x16xf32>
      %117 = vector.broadcast %116 : vector<1x1x16xf32> to vector<8x8x16xf32>
      %118 = arith.mulf %113, %117 : vector<8x8x16xf32>
      %119 = arith.addf %112, %118 : vector<8x8x16xf32>
      %120 = vector.extract_strided_slice %89 {offsets = [4, 0, 0], sizes = [8, 8, 16], strides = [1, 1, 1]} : vector<14x8x16xf32> to vector<8x8x16xf32>
      %121 = vector.extract_strided_slice %91 {offsets = [4, 0, 0], sizes = [1, 1, 16], strides = [1, 1, 1]} : vector<7x1x16xf32> to vector<1x1x16xf32>
      %122 = vector.shape_cast %121 : vector<1x1x16xf32> to vector<1x16xf32>
      %123 = vector.shape_cast %122 : vector<1x16xf32> to vector<1x1x16xf32>
      %124 = vector.broadcast %123 : vector<1x1x16xf32> to vector<8x8x16xf32>
      %125 = arith.mulf %120, %124 : vector<8x8x16xf32>
      %126 = arith.addf %119, %125 : vector<8x8x16xf32>
      %127 = vector.extract_strided_slice %89 {offsets = [5, 0, 0], sizes = [8, 8, 16], strides = [1, 1, 1]} : vector<14x8x16xf32> to vector<8x8x16xf32>
      %128 = vector.extract_strided_slice %91 {offsets = [5, 0, 0], sizes = [1, 1, 16], strides = [1, 1, 1]} : vector<7x1x16xf32> to vector<1x1x16xf32>
      %129 = vector.shape_cast %128 : vector<1x1x16xf32> to vector<1x16xf32>
      %130 = vector.shape_cast %129 : vector<1x16xf32> to vector<1x1x16xf32>
      %131 = vector.broadcast %130 : vector<1x1x16xf32> to vector<8x8x16xf32>
      %132 = arith.mulf %127, %131 : vector<8x8x16xf32>
      %133 = arith.addf %126, %132 : vector<8x8x16xf32>
      %134 = vector.extract_strided_slice %89 {offsets = [6, 0, 0], sizes = [8, 8, 16], strides = [1, 1, 1]} : vector<14x8x16xf32> to vector<8x8x16xf32>
      %135 = vector.extract_strided_slice %91 {offsets = [6, 0, 0], sizes = [1, 1, 16], strides = [1, 1, 1]} : vector<7x1x16xf32> to vector<1x1x16xf32>
      %136 = vector.shape_cast %135 : vector<1x1x16xf32> to vector<1x16xf32>
      %137 = vector.shape_cast %136 : vector<1x16xf32> to vector<1x1x16xf32>
      %138 = vector.broadcast %137 : vector<1x1x16xf32> to vector<8x8x16xf32>
      %139 = arith.mulf %134, %138 : vector<8x8x16xf32>
      %140 = arith.addf %133, %139 : vector<8x8x16xf32>
      scf.yield %140 : vector<8x8x16xf32>
    }
    %c7_i32_9 = arith.constant 7 : i32
    %c0_10 = arith.constant 0 : index
    %c0_11 = arith.constant 0 : index
    %8 = vector.load %arg3[%c0_10, %c0_11] : memref<1x16xf32, #tpu.memory_space<vmem>>, vector<1x16xf32>
    %9 = vector.shape_cast %8 : vector<1x16xf32> to vector<1x1x16xf32>
    %10 = vector.broadcast %9 : vector<1x1x16xf32> to vector<8x8x16xf32>
    %11 = arith.addf %7, %10 : vector<8x8x16xf32>
    %c0_12 = arith.constant 0 : index
    %c0_13 = arith.constant 0 : index
    %12 = vector.load %arg4[%c0_12, %c0_13] : memref<1x16xf32, #tpu.memory_space<vmem>>, vector<1x16xf32>
    %c0_14 = arith.constant 0 : index
    %c0_15 = arith.constant 0 : index
    %13 = vector.load %arg5[%c0_14, %c0_15] : memref<1x16xf32, #tpu.memory_space<vmem>>, vector<1x16xf32>
    %c0_16 = arith.constant 0 : index
    %c0_17 = arith.constant 0 : index
    %14 = vector.load %arg6[%c0_16, %c0_17] : memref<16x64xbf16, #tpu.memory_space<vmem>>, vector<16x64xbf16>
    %c0_18 = arith.constant 0 : index
    %c0_19 = arith.constant 0 : index
    %15 = vector.load %arg7[%c0_18, %c0_19] : memref<1x64xf32, #tpu.memory_space<vmem>>, vector<1x64xf32>
    %c0_20 = arith.constant 0 : index
    %c0_21 = arith.constant 0 : index
    %16 = vector.load %arg8[%c0_20, %c0_21] : memref<64x16xbf16, #tpu.memory_space<vmem>>, vector<64x16xbf16>
    %c0_22 = arith.constant 0 : index
    %c0_23 = arith.constant 0 : index
    %17 = vector.load %arg9[%c0_22, %c0_23] : memref<1x16xf32, #tpu.memory_space<vmem>>, vector<1x16xf32>
    %cst_24 = arith.constant 0.000000e+00 : f32
    %18 = vector.broadcast %cst_24 : f32 to vector<1x16xf32>
    %cst_25 = arith.constant 0.000000e+00 : f32
    %19 = vector.broadcast %cst_25 : f32 to vector<1x16xf32>
    %cst_26 = arith.constant dense<0.000000e+00> : vector<8x8xf32>
    %20 = vector.multi_reduction <add>, %11, %cst_26 [2] : vector<8x8x16xf32> to vector<8x8xf32>
    %21 = vector.shape_cast %20 : vector<8x8xf32> to vector<8x8x1xf32>
    %cst_27 = arith.constant 1.600000e+01 : f32
    %22 = vector.broadcast %cst_27 : f32 to vector<8x8x1xf32>
    %23 = arith.divf %21, %22 : vector<8x8x1xf32>
    %24 = vector.broadcast %23 : vector<8x8x1xf32> to vector<8x8x16xf32>
    %25 = arith.subf %11, %24 : vector<8x8x16xf32>
    %26 = arith.mulf %25, %25 : vector<8x8x16xf32>
    %cst_28 = arith.constant dense<0.000000e+00> : vector<8x8xf32>
    %27 = vector.multi_reduction <add>, %26, %cst_28 [2] : vector<8x8x16xf32> to vector<8x8xf32>
    %28 = vector.shape_cast %27 : vector<8x8xf32> to vector<8x8x1xf32>
    %cst_29 = arith.constant 1.600000e+01 : f32
    %29 = vector.broadcast %cst_29 : f32 to vector<8x8x1xf32>
    %30 = arith.divf %28, %29 : vector<8x8x1xf32>
    %31 = vector.broadcast %23 : vector<8x8x1xf32> to vector<8x8x16xf32>
    %32 = arith.subf %11, %31 : vector<8x8x16xf32>
    %cst_30 = arith.constant 9.99999997E-7 : f32
    %33 = vector.broadcast %cst_30 : f32 to vector<8x8x1xf32>
    %34 = arith.addf %30, %33 : vector<8x8x1xf32>
    %35 = math.rsqrt %34 : vector<8x8x1xf32>
    %36 = vector.broadcast %35 : vector<8x8x1xf32> to vector<8x8x16xf32>
    %37 = arith.mulf %32, %36 : vector<8x8x16xf32>
    %38 = vector.shape_cast %12 : vector<1x16xf32> to vector<1x1x16xf32>
    %39 = vector.broadcast %38 : vector<1x1x16xf32> to vector<8x8x16xf32>
    %40 = arith.mulf %37, %39 : vector<8x8x16xf32>
    %41 = vector.shape_cast %13 : vector<1x16xf32> to vector<1x1x16xf32>
    %42 = vector.broadcast %41 : vector<1x1x16xf32> to vector<8x8x16xf32>
    %43 = arith.addf %40, %42 : vector<8x8x16xf32>
    %44 = vector.shape_cast %43 : vector<8x8x16xf32> to vector<64x16xf32>
    %45 = arith.truncf %44 : vector<64x16xf32> to vector<64x16xbf16>
    %cst_31 = arith.constant dense<0.000000e+00> : vector<64x64xf32>
    %46 = tpu.matmul %45, %14, %cst_31 {dimension_numbers = #tpu.dot_dimension_numbers<[1], [0], [0], [1], [0, 0, 1, 1], [], []>} : vector<64x16xbf16>, vector<16x64xbf16>, vector<64x64xf32> -> vector<64x64xf32>
    %47 = vector.broadcast %15 : vector<1x64xf32> to vector<64x64xf32>
    %48 = arith.addf %46, %47 : vector<64x64xf32>
    %49 = arith.mulf %48, %48 : vector<64x64xf32>
    %50 = arith.mulf %48, %49 : vector<64x64xf32>
    %cst_32 = arith.constant 4.471500e-02 : f32
    %51 = vector.broadcast %cst_32 : f32 to vector<64x64xf32>
    %52 = arith.mulf %51, %50 : vector<64x64xf32>
    %53 = arith.addf %48, %52 : vector<64x64xf32>
    %cst_33 = arith.constant 0.797884583 : f32
    %54 = vector.broadcast %cst_33 : f32 to vector<64x64xf32>
    %55 = arith.mulf %54, %53 : vector<64x64xf32>
    %56 = math.tanh %55 : vector<64x64xf32>
    %cst_34 = arith.constant 1.000000e+00 : f32
    %57 = vector.broadcast %cst_34 : f32 to vector<64x64xf32>
    %58 = arith.addf %57, %56 : vector<64x64xf32>
    %cst_35 = arith.constant 5.000000e-01 : f32
    %59 = vector.broadcast %cst_35 : f32 to vector<64x64xf32>
    %60 = arith.mulf %59, %58 : vector<64x64xf32>
    %61 = arith.mulf %48, %60 : vector<64x64xf32>
    %62 = arith.truncf %61 : vector<64x64xf32> to vector<64x64xbf16>
    %cst_36 = arith.constant dense<0.000000e+00> : vector<64x16xf32>
    %63 = tpu.matmul %62, %16, %cst_36 {dimension_numbers = #tpu.dot_dimension_numbers<[1], [0], [0], [1], [0, 0, 1, 1], [], []>} : vector<64x64xbf16>, vector<64x16xbf16>, vector<64x16xf32> -> vector<64x16xf32>
    %64 = vector.broadcast %17 : vector<1x16xf32> to vector<64x16xf32>
    %65 = arith.addf %63, %64 : vector<64x16xf32>
    %c0_37 = arith.constant 0 : index
    %c0_38 = arith.constant 0 : index
    %c0_39 = arith.constant 0 : index
    %c0_40 = arith.constant 0 : index
    %66 = vector.load %arg1[%c0_37, %c0_38, %c0_39, %c0_40] : memref<1x8x8x16xf32, #tpu.memory_space<vmem>>, vector<1x8x8x16xf32>
    %67 = vector.shape_cast %66 : vector<1x8x8x16xf32> to vector<8x8x16xf32>
    %68 = vector.shape_cast %65 : vector<64x16xf32> to vector<8x8x16xf32>
    %69 = arith.addf %67, %68 : vector<8x8x16xf32>
    %70 = arith.truncf %69 : vector<8x8x16xf32> to vector<8x8x16xbf16>
    %c0_41 = arith.constant 0 : index
    %c0_42 = arith.constant 0 : index
    %c0_43 = arith.constant 0 : index
    %c0_44 = arith.constant 0 : index
    %71 = vector.load %arg10[%c0_41, %c0_42, %c0_43, %c0_44] : memref<1x8x8x16xbf16, #tpu.memory_space<vmem>>, vector<1x8x8x16xbf16>
    %72 = vector.shape_cast %71 : vector<1x8x8x16xbf16> to vector<8x8x16xbf16>
    %73 = vector.shape_cast %70 : vector<8x8x16xbf16> to vector<1x8x8x16xbf16>
    tpu.vector_store %arg10[%c0_41, %c0_42, %c0_43, %c0_44], %73 {strides = array<i32>} : memref<1x8x8x16xbf16, #tpu.memory_space<vmem>>, vector<1x8x8x16xbf16>,
    %74 = vector.shape_cast %69 : vector<8x8x16xf32> to vector<64x16xf32>
    %cst_45 = arith.constant dense<0.000000e+00> : vector<16xf32>
    %75 = vector.multi_reduction <add>, %74, %cst_45 [0] : vector<64x16xf32> to vector<16xf32>
    %76 = vector.shape_cast %75 : vector<16xf32> to vector<1x16xf32>
    %77 = arith.addf %18, %76 : vector<1x16xf32>
    %78 = arith.mulf %74, %74 : vector<64x16xf32>
    %cst_46 = arith.constant dense<0.000000e+00> : vector<16xf32>
    %79 = vector.multi_reduction <add>, %78, %cst_46 [0] : vector<64x16xf32> to vector<16xf32>
    %80 = vector.shape_cast %79 : vector<16xf32> to vector<1x16xf32>
    %81 = arith.addf %19, %80 : vector<1x16xf32>
    %c0_47 = arith.constant 0 : index
    %c0_48 = arith.constant 0 : index
    %c0_49 = arith.constant 0 : index
    %82 = vector.load %arg11[%c0_47, %c0_48, %c0_49] : memref<1x1x16xf32, #tpu.memory_space<vmem>>, vector<1x1x16xf32>
    %83 = vector.shape_cast %82 : vector<1x1x16xf32> to vector<1x16xf32>
    %84 = vector.shape_cast %77 : vector<1x16xf32> to vector<1x1x16xf32>
    tpu.vector_store %arg11[%c0_47, %c0_48, %c0_49], %84 {strides = array<i32>} : memref<1x1x16xf32, #tpu.memory_space<vmem>>, vector<1x1x16xf32>,
    %c0_50 = arith.constant 0 : index
    %c0_51 = arith.constant 0 : index
    %c0_52 = arith.constant 0 : index
    %85 = vector.load %arg12[%c0_50, %c0_51, %c0_52] : memref<1x1x16xf32, #tpu.memory_space<vmem>>, vector<1x1x16xf32>
    %86 = vector.shape_cast %85 : vector<1x1x16xf32> to vector<1x16xf32>
    %87 = vector.shape_cast %81 : vector<1x16xf32> to vector<1x1x16xf32>
    tpu.vector_store %arg12[%c0_50, %c0_51, %c0_52], %87 {strides = array<i32>} : memref<1x1x16xf32, #tpu.memory_space<vmem>>, vector<1x1x16xf32>,
    return
  }
  func.func @transform_0(%arg0: i32) -> (i32, i32, i32, i32) {
    %c0_i32 = arith.constant 0 : i32
    %c0_i32_0 = arith.constant 0 : i32
    %c0_i32_1 = arith.constant 0 : i32
    %c0_i32_2 = arith.constant 0 : i32
    return %arg0, %c0_i32, %c0_i32_0, %c0_i32_1 : i32, i32, i32, i32
  }
  func.func @transform_1(%arg0: i32) -> (i32, i32, i32) {
    %c0_i32 = arith.constant 0 : i32
    %c0_i32_0 = arith.constant 0 : i32
    %c0_i32_1 = arith.constant 0 : i32
    %c0_i32_2 = arith.constant 0 : i32
    return %c0_i32, %c0_i32_0, %c0_i32_1 : i32, i32, i32
  }
  func.func @transform_2(%arg0: i32) -> (i32, i32) {
    %c0_i32 = arith.constant 0 : i32
    %c0_i32_0 = arith.constant 0 : i32
    %c0_i32_1 = arith.constant 0 : i32
    return %c0_i32, %c0_i32_0 : i32, i32
  }
  func.func @transform_3(%arg0: i32) -> (i32, i32) {
    %c0_i32 = arith.constant 0 : i32
    %c0_i32_0 = arith.constant 0 : i32
    %c0_i32_1 = arith.constant 0 : i32
    return %c0_i32, %c0_i32_0 : i32, i32
  }
  func.func @transform_4(%arg0: i32) -> (i32, i32) {
    %c0_i32 = arith.constant 0 : i32
    %c0_i32_0 = arith.constant 0 : i32
    %c0_i32_1 = arith.constant 0 : i32
    return %c0_i32, %c0_i32_0 : i32, i32
  }
  func.func @transform_5(%arg0: i32) -> (i32, i32) {
    %c0_i32 = arith.constant 0 : i32
    %c0_i32_0 = arith.constant 0 : i32
    %c0_i32_1 = arith.constant 0 : i32
    return %c0_i32, %c0_i32_0 : i32, i32
  }
  func.func @transform_6(%arg0: i32) -> (i32, i32) {
    %c0_i32 = arith.constant 0 : i32
    %c0_i32_0 = arith.constant 0 : i32
    %c0_i32_1 = arith.constant 0 : i32
    return %c0_i32, %c0_i32_0 : i32, i32
  }
  func.func @transform_7(%arg0: i32) -> (i32, i32) {
    %c0_i32 = arith.constant 0 : i32
    %c0_i32_0 = arith.constant 0 : i32
    %c0_i32_1 = arith.constant 0 : i32
    return %c0_i32, %c0_i32_0 : i32, i32
  }
  func.func @transform_8(%arg0: i32) -> (i32, i32) {
    %c0_i32 = arith.constant 0 : i32
    %c0_i32_0 = arith.constant 0 : i32
    %c0_i32_1 = arith.constant 0 : i32
    return %c0_i32, %c0_i32_0 : i32, i32
  }
  func.func @transform_9(%arg0: i32) -> (i32, i32, i32, i32) {
    %c0_i32 = arith.constant 0 : i32
    %c0_i32_0 = arith.constant 0 : i32
    %c0_i32_1 = arith.constant 0 : i32
    %c0_i32_2 = arith.constant 0 : i32
    return %arg0, %c0_i32, %c0_i32_0, %c0_i32_1 : i32, i32, i32, i32
  }
  func.func @transform_10(%arg0: i32) -> (i32, i32, i32) {
    %c0_i32 = arith.constant 0 : i32
    %c0_i32_0 = arith.constant 0 : i32
    %c0_i32_1 = arith.constant 0 : i32
    return %arg0, %c0_i32, %c0_i32_0 : i32, i32, i32
  }
  func.func @transform_11(%arg0: i32) -> (i32, i32, i32) {
    %c0_i32 = arith.constant 0 : i32
    %c0_i32_0 = arith.constant 0 : i32
    %c0_i32_1 = arith.constant 0 : i32
    return %arg0, %c0_i32, %c0_i32_0 : i32, i32, i32
  }
}

</mosaic_0001>

<llo_original>
// kernel: mul.18
$region0: #{mul.18}
  #allocation0 [shape = 's32[1]{0}', space=sflag, size = 0x4, scoped, tag = 'scoped memory for mul.18']
  %s0 = inlined_call_operand.vmem [shape: f32[1,16], index: 0, kind: input, shape index: {}]
  %s1 = inlined_call_operand.vmem [shape: f32[1,16], index: 1, kind: input, shape index: {}]
  %s2 = inlined_call_operand.vmem [shape: f32[1,16], index: 2, kind: output, shape index: {}]
  %v3 = vld [vmem:[%s0] sm:$0x1]
  %v4 = vld [vmem:[%s1] sm:$0x1]
  %5 = xla_tuple %v3, %v4
  %6 = xla_tuple %5
  %v7 = vmul.f32 %v3, %v4
  %8 = xla_tuple %v7
  %9 = vst [vmem:[%s2] sm:$0x1] %v7

// kernel: cct_block_forward.4
$region0: #{cct_block_forward.4}
  #allocation0 [shape = 'u32[]', space=smem, size = 0x4, offset = 0x4, fixed_abs, tag = 'smem constant byte address 0x4 - core index']
  #allocation1 [shape = 'u32[144,128]{1,0:T(1,128)}', space=vmem, size = 0x12000, scoped, tag = 'internal scratch']
  %s0 = inlined_call_operand.vmem [shape: bf16[2,8,8,16], index: 0, kind: input, shape index: {}]
  %s1 = inlined_call_operand.vmem [shape: f32[1,16], index: 1, kind: input, shape index: {}]
  %s2 = inlined_call_operand.vmem [shape: f32[1,16], index: 2, kind: input, shape index: {}]
  %s3 = inlined_call_operand.vmem [shape: bf16[16,16], index: 3, kind: input, shape index: {}]
  %s4 = inlined_call_operand.vmem [shape: bf16[2,8,8,16], index: 4, kind: output, shape index: {0}]
  %s5 = inlined_call_operand.vmem [shape: f32[2,1,16], index: 5, kind: output, shape index: {1}]
  %s6 = inlined_call_operand.vmem [shape: f32[2,1,16], index: 6, kind: output, shape index: {2}]
  %7 = xla_tuple %s4, %s5, %s6
  %s8 = sld [smem:[#allocation0]]
  $region65: #{cct_block_forward.4} parent=0
    _
  %s10 = ssub.s32 1, %s8
  %s11 = scalar_select 0, %s10, %s8
  loop: start=0, step=1, limit=4
  $region2: #{cct_block_forward.4} parent=0 // loop_pre_header
    _
  $region3: #{cct_block_forward.4} parent=0 // loop_header
    %s13 = sphi 0, %s17
    %p14 = scmp.ge.s32.totalorder %s13, 4
    %s23 = sphi 0, %s25
    %s26 = sphi 0, %s23
    %s27 = sphi 0, %s26
    %s43 = sphi 0, %s27
    %s47 = sphi 0, %s47
    %s49 = sphi 0, %s47
    %s50 = sphi 0, %s49
    %s64 = sphi 0, %s50
    %s68 = sphi 0, %s68
    %s70 = sphi 0, %s68
    %s71 = sphi 0, %s70
    %s85 = sphi 0, %s71
    %s89 = sphi 0, %s89
    %s91 = sphi 0, %s89
    %s92 = sphi 0, %s91
    %s106 = sphi 0, %s92
    %s112 = sphi 0, %s114
    %s115 = sphi 0, %s112
    %s116 = sphi 0, %s115
    %s132 = sphi 0, %s116
    %s138 = sphi 0, %s140
    %s141 = sphi 0, %s138
    %s142 = sphi 0, %s141
    %s158 = sphi 0, %s142
    %s164 = sphi 0, %s166
    %s167 = sphi 0, %s164
    %s168 = sphi 0, %s167
    %s184 = sphi 0, %s168
  $region4: #{cct_block_forward.4} parent=0 // loop_header_branch
    %16 = sbr.rel (%p14) target = $region8
  $region5: #{cct_block_forward.4} parent=0 // loop_body
    %s18 = ssub.s32 %s13, 1
    %s19 = ssub.s32 %s13, 2
    %s20 = sadd.s32 %s13, 1
    %s21 = ssub.s32 %s13, %s20
    %p22 = scmp.eq.s32.totalorder %s21, 0
    %s24 = sadd.s32 %s23, 1
    %s25 = scalar_select %p22, %s23, %s24
    %p28 = pneg %p22
    %p29 = scmp.eq.s32.totalorder %s13, 1
    %p30 = por %p28, %p29
    %p31 = scmp.ne.s32.totalorder %s23, %s26
    %p32 = scmp.eq.s32.totalorder %s13, 0
    %p33 = por %p31, %p32
    %p34 = scmp.ne.s32.totalorder %s23, %s26
    %p35 = scmp.eq.s32.totalorder %s18, 1
    %p36 = por %p34, %p35
    %p37 = scmp.ne.s32.totalorder %s26, %s27
    %p38 = scmp.eq.s32.totalorder %s18, 0
    %p39 = por %p37, %p38
    %p40 = scmp.ne.s32.totalorder %s26, %s27
    %p41 = scmp.eq.s32.totalorder %s19, 1
    %p42 = por %p40, %p41
    %p44 = scmp.ne.s32.totalorder %s27, %s43
    %p45 = scmp.eq.s32.totalorder %s19, 0
    %p46 = por %p44, %p45
    %s48 = sadd.s32 %s47, 1
    %p51 = scmp.eq.s32.totalorder %s13, 1
    %p52 = scmp.ne.s32.totalorder %s47, %s49
    %p53 = scmp.eq.s32.totalorder %s13, 0
    %p54 = por %p52, %p53
    %p55 = scmp.ne.s32.totalorder %s47, %s49
    %p56 = scmp.eq.s32.totalorder %s18, 1
    %p57 = por %p55, %p56
    %p58 = scmp.ne.s32.totalorder %s49, %s50
    %p59 = scmp.eq.s32.totalorder %s18, 0
    %p60 = por %p58, %p59
    %p61 = scmp.ne.s32.totalorder %s49, %s50
    %p62 = scmp.eq.s32.totalorder %s19, 1
    %p63 = por %p61, %p62
    %p65 = scmp.ne.s32.totalorder %s50, %s64
    %p66 = scmp.eq.s32.totalorder %s19, 0
    %p67 = por %p65, %p66
    %s69 = sadd.s32 %s68, 1
    %p72 = scmp.eq.s32.totalorder %s13, 1
    %p73 = scmp.ne.s32.totalorder %s68, %s70
    %p74 = scmp.eq.s32.totalorder %s13, 0
    %p75 = por %p73, %p74
    %p76 = scmp.ne.s32.totalorder %s68, %s70
    %p77 = scmp.eq.s32.totalorder %s18, 1
    %p78 = por %p76, %p77
    %p79 = scmp.ne.s32.totalorder %s70, %s71
    %p80 = scmp.eq.s32.totalorder %s18, 0
    %p81 = por %p79, %p80
    %p82 = scmp.ne.s32.totalorder %s70, %s71
    %p83 = scmp.eq.s32.totalorder %s19, 1
    %p84 = por %p82, %p83
    %p86 = scmp.ne.s32.totalorder %s71, %s85
    %p87 = scmp.eq.s32.totalorder %s19, 0
    %p88 = por %p86, %p87
    %s90 = sadd.s32 %s89, 1
    %p93 = scmp.eq.s32.totalorder %s13, 1
    %p94 = scmp.ne.s32.totalorder %s89, %s91
    %p95 = scmp.eq.s32.totalorder %s13, 0
    %p96 = por %p94, %p95
    %p97 = scmp.ne.s32.totalorder %s89, %s91
    %p98 = scmp.eq.s32.totalorder %s18, 1
    %p99 = por %p97, %p98
    %p100 = scmp.ne.s32.totalorder %s91, %s92
    %p101 = scmp.eq.s32.totalorder %s18, 0
    %p102 = por %p100, %p101
    %p103 = scmp.ne.s32.totalorder %s91, %s92
    %p104 = scmp.eq.s32.totalorder %s19, 1
    %p105 = por %p103, %p104
    %p107 = scmp.ne.s32.totalorder %s92, %s106
    %p108 = scmp.eq.s32.totalorder %s19, 0
    %p109 = por %p107, %p108
    %s110 = ssub.s32 %s13, %s20
    %p111 = scmp.eq.s32.totalorder %s110, 0
    %s113 = sadd.s32 %s112, 1
    %s114 = scalar_select %p111, %s112, %s113
    %p117 = pneg %p111
    %p118 = scmp.eq.s32.totalorder %s13, 1
    %p119 = por %p117, %p118
    %p120 = scmp.ne.s32.totalorder %s112, %s115
    %p121 = scmp.eq.s32.totalorder %s13, 0
    %p122 = por %p120, %p121
    %p123 = scmp.ne.s32.totalorder %s112, %s115
    %p124 = scmp.eq.s32.totalorder %s18, 1
    %p125 = por %p123, %p124
    %p126 = scmp.ne.s32.totalorder %s115, %s116
    %p127 = scmp.eq.s32.totalorder %s18, 0
    %p128 = por %p126, %p127
    %p129 = scmp.ne.s32.totalorder %s115, %s116
    %p130 = scmp.eq.s32.totalorder %s19, 1
    %p131 = por %p129, %p130
    %p133 = scmp.ne.s32.totalorder %s116, %s132
    %p134 = scmp.eq.s32.totalorder %s19, 0
    %p135 = por %p133, %p134
    %s136 = ssub.s32 %s13, %s20
    %p137 = scmp.eq.s32.totalorder %s136, 0
    %s139 = sadd.s32 %s138, 1
    %s140 = scalar_select %p137, %s138, %s139
    %p143 = pneg %p137
    %p144 = scmp.eq.s32.totalorder %s13, 1
    %p145 = por %p143, %p144
    %p146 = scmp.ne.s32.totalorder %s138, %s141
    %p147 = scmp.eq.s32.totalorder %s13, 0
    %p148 = por %p146, %p147
    %p149 = scmp.ne.s32.totalorder %s138, %s141
    %p150 = scmp.eq.s32.totalorder %s18, 1
    %p151 = por %p149, %p150
    %p152 = scmp.ne.s32.totalorder %s141, %s142
    %p153 = scmp.eq.s32.totalorder %s18, 0
    %p154 = por %p152, %p153
    %p155 = scmp.ne.s32.totalorder %s141, %s142
    %p156 = scmp.eq.s32.totalorder %s19, 1
    %p157 = por %p155, %p156
    %p159 = scmp.ne.s32.totalorder %s142, %s158
    %p160 = scmp.eq.s32.totalorder %s19, 0
    %p161 = por %p159, %p160
    %s162 = ssub.s32 %s13, %s20
    %p163 = scmp.eq.s32.totalorder %s162, 0
    %s165 = sadd.s32 %s164, 1
    %s166 = scalar_select %p163, %s164, %s165
    %p169 = pneg %p163
    %p170 = scmp.eq.s32.totalorder %s13, 1
    %p171 = por %p169, %p170
    %p172 = scmp.ne.s32.totalorder %s164, %s167
    %p173 = scmp.eq.s32.totalorder %s13, 0
    %p174 = por %p172, %p173
    %p175 = scmp.ne.s32.totalorder %s164, %s167
    %p176 = scmp.eq.s32.totalorder %s18, 1
    %p177 = por %p175, %p176
    %p178 = scmp.ne.s32.totalorder %s167, %s168
    %p179 = scmp.eq.s32.totalorder %s18, 0
    %p180 = por %p178, %p179
    %p181 = scmp.ne.s32.totalorder %s167, %s168
    %p182 = scmp.eq.s32.totalorder %s19, 1
    %p183 = por %p181, %p182
    %p185 = scmp.ne.s32.totalorder %s168, %s184
    %p186 = scmp.eq.s32.totalorder %s19, 0
    %p187 = por %p185, %p186
    %p188 = scmp.le.s32.totalorder 1, %s13
    %p189 = scmp.lt.s32.totalorder %s13, 3
    %p190 = pnand %p188, %p189
    %p191 = pneg %p190
    // Predicated region
    $region9: #{cct_block_forward.4} parent=5 // pred_check
      _
    $region10: #{cct_block_forward.4} parent=5 // pred_check_branch
      %193 = sbr.rel (%p190) target = $region12
    $region11: #{cct_block_forward.4} parent=5 // pred_region
      %s194 = ssub.s32 %s13, 1
      // Predicated region
      $region13: #{cct_block_forward.4} parent=11 // pred_check
        %p195 = pneg %p60
      $region14: #{cct_block_forward.4} parent=11 // pred_check_branch
        %197 = sbr.rel (%p195) target = $region16
      $region15: #{cct_block_forward.4} parent=11 // pred_region
        _
      $region16: #{cct_block_forward.4} parent=11 // pred_fallthru
        _
      // Predicated region
      $region17: #{cct_block_forward.4} parent=11 // pred_check
        %p198 = pneg %p81
      $region18: #{cct_block_forward.4} parent=11 // pred_check_branch
        %200 = sbr.rel (%p198) target = $region20
      $region19: #{cct_block_forward.4} parent=11 // pred_region
        _
      $region20: #{cct_block_forward.4} parent=11 // pred_fallthru
        _
      // Predicated region
      $region21: #{cct_block_forward.4} parent=11 // pred_check
        %p201 = pneg %p102
      $region22: #{cct_block_forward.4} parent=11 // pred_check_branch
        %203 = sbr.rel (%p201) target = $region24
      $region23: #{cct_block_forward.4} parent=11 // pred_region
        _
      $region24: #{cct_block_forward.4} parent=11 // pred_fallthru
        _
    $region12: #{cct_block_forward.4} parent=5 // pred_fallthru
      _
    %p204 = scmp.lt.s32.totalorder %s13, 2
    // Predicated region
    $region25: #{cct_block_forward.4} parent=5 // pred_check
      %p205 = pneg %p204
    $region26: #{cct_block_forward.4} parent=5 // pred_check_branch
      %207 = sbr.rel (%p205) target = $region28
    $region27: #{cct_block_forward.4} parent=5 // pred_region
      // Predicated region
      $region29: #{cct_block_forward.4} parent=27 // pred_check
        %p208 = pneg %p33
      $region30: #{cct_block_forward.4} parent=27 // pred_check_branch
        %210 = sbr.rel (%p208) target = $region32
      $region31: #{cct_block_forward.4} parent=27 // pred_region
        %p211 = scmp.lt.s32.totalorder %s13, 1
        %s212 = scalar_select %p211, %s13, 1
        %s213 = smul.addr %s212, 8
        %s214 = smul.addr %s213, 4
        %s215 = scalar_lea.vmem %s0, %s214
      $region32: #{cct_block_forward.4} parent=27 // pred_fallthru
        _
    $region28: #{cct_block_forward.4} parent=5 // pred_fallthru
      _
    %p216 = scmp.le.s32.totalorder 1, %s13
    %p217 = scmp.lt.s32.totalorder %s13, 3
    %p218 = pnand %p216, %p217
    %p219 = pneg %p218
    // Predicated region
    $region33: #{cct_block_forward.4} parent=5 // pred_check
      _
    $region34: #{cct_block_forward.4} parent=5 // pred_check_branch
      %221 = sbr.rel (%p218) target = $region36
    $region35: #{cct_block_forward.4} parent=5 // pred_region
      %s222 = ssub.s32 %s13, 1
      %p223 = scmp.lt.s32.totalorder %s18, 1
      %s224 = scalar_select %p223, %s18, 1
      %s225 = smul.addr %s224, 8
      %s226 = smul.addr %s225, 4
      %s227 = scalar_lea.vmem %s0, %s226
      %p228 = pneg %p39
      %p229 = pneg %p36
      %p230 = pneg %p60
      %p231 = pneg %p57
      %p232 = pneg %p81
      %p233 = pneg %p78
      %p234 = pneg %p102
      %p235 = pneg %p99
      %p236 = pneg %p128
      %p237 = pneg %p125
      %p238 = scmp.lt.s32.totalorder %s18, 1
      %s239 = scalar_select %p238, %s18, 1
      %s240 = smul.addr %s239, 8
      %s241 = smul.addr %s240, 4
      %s242 = scalar_lea.vmem %s4, %s241
      %p243 = pneg %p154
      %p244 = pneg %p151
      %p245 = scmp.lt.s32.totalorder %s18, 1
      %s246 = scalar_select %p245, %s18, 1
      %s247 = scalar_lea.vmem %s5, %s246
      %p248 = pneg %p180
      %p249 = pneg %p177
      %p250 = scmp.lt.s32.totalorder %s18, 1
      %s251 = scalar_select %p250, %s18, 1
      %s252 = scalar_lea.vmem %s6, %s251
      %p253 = scmp.lt.s32.totalorder %s18, 1
      %s254 = scalar_select %p253, %s18, 1
      %s255 = smul.addr %s254, 8
      %s256 = smul.addr %s255, 4
      %s257 = scalar_lea.vmem %s0, %s256
      %p258 = scmp.lt.s32.totalorder %s18, 1
      %s259 = scalar_select %p258, %s18, 1
      %s260 = smul.addr %s259, 8
      %s261 = smul.addr %s260, 4
      %s262 = scalar_lea.vmem %s4, %s261
      %p263 = scmp.lt.s32.totalorder %s18, 1
      %s264 = scalar_select %p263, %s18, 1
      %s265 = scalar_lea.vmem %s5, %s264
      %p266 = scmp.lt.s32.totalorder %s18, 1
      %s267 = scalar_select %p266, %s18, 1
      %s268 = scalar_lea.vmem %s6, %s267
      %v270 = vld [vmem:[%s1] sm:$0x1]
      %v271 = vld [vmem:[%s2] sm:$0x1]
      %v272 = vld [vmem:[%s3] sm:$0xf]
      %v273 = vld [vmem:[%s3 + $0x4] sm:$0xf]
      %v274 = vld [vmem:[%s257] sm:$0xf]
      %v275 = vld [vmem:[%s257 + $0x4] sm:$0xf]
      %v276 = vld [vmem:[%s257 + $0x8] sm:$0xf]
      %v277 = vld [vmem:[%s257 + $0xc] sm:$0xf]
      %v278 = vld [vmem:[%s257 + $0x10] sm:$0xf]
      %v279 = vld [vmem:[%s257 + $0x14] sm:$0xf]
      %v280 = vld [vmem:[%s257 + $0x18] sm:$0xf]
      %v281 = vld [vmem:[%s257 + $0x1c] sm:$0xf]
      %v282 = vunpack.c.l.bf16 %v274
      %v283 = vunpack.c.l.bf16 %v275
      %v284 = vunpack.c.l.bf16 %v276
      %v285 = vunpack.c.l.bf16 %v277
      %v286 = vunpack.c.l.bf16 %v278
      %v287 = vunpack.c.l.bf16 %v279
      %v288 = vunpack.c.l.bf16 %v280
      %v289 = vunpack.c.l.bf16 %v281
      %v291 = vlaneseq
      %v292 = vshrl.u32 %v291, 7
      %v293 = vsub.s32 0, %v292
      %v294 = vrot.slane %v270, %v293
      %v296 = vmul.f32 %v282, %v294
      %v297 = vmul.f32 %v283, %v294
      %v298 = vmul.f32 %v284, %v294
      %v299 = vmul.f32 %v285, %v294
      %v300 = vmul.f32 %v286, %v294
      %v301 = vmul.f32 %v287, %v294
      %v302 = vmul.f32 %v288, %v294
      %v303 = vmul.f32 %v289, %v294
      %v305 = vlaneseq
      %v306 = vshrl.u32 %v305, 7
      %v307 = vsub.s32 0, %v306
      %v308 = vrot.slane %v271, %v307
      %v310 = vadd.f32 %v296, %v308
      %v311 = vadd.f32 %v297, %v308
      %v312 = vadd.f32 %v298, %v308
      %v313 = vadd.f32 %v299, %v308
      %v314 = vadd.f32 %v300, %v308
      %v315 = vadd.f32 %v301, %v308
      %v316 = vadd.f32 %v302, %v308
      %v317 = vadd.f32 %v303, %v308
      %v318 = vmul.f32 %v310, %v310
      %v319 = vmul.f32 %v311, %v311
      %v320 = vmul.f32 %v312, %v312
      %v321 = vmul.f32 %v313, %v313
      %v322 = vmul.f32 %v314, %v314
      %v323 = vmul.f32 %v315, %v315
      %v324 = vmul.f32 %v316, %v316
      %v325 = vmul.f32 %v317, %v317
      %v326 = vmul.f32 %v310, %v318
      %v327 = vmul.f32 %v311, %v319
      %v328 = vmul.f32 %v312, %v320
      %v329 = vmul.f32 %v313, %v321
      %v330 = vmul.f32 %v314, %v322
      %v331 = vmul.f32 %v315, %v323
      %v332 = vmul.f32 %v316, %v324
      %v333 = vmul.f32 %v317, %v325
      %v334 = vmul.f32 %v326, 0.044715
      %v335 = vmul.f32 %v327, 0.044715
      %v336 = vmul.f32 %v328, 0.044715
      %v337 = vmul.f32 %v329, 0.044715
      %v338 = vmul.f32 %v330, 0.044715
      %v339 = vmul.f32 %v331, 0.044715
      %v340 = vmul.f32 %v332, 0.044715
      %v341 = vmul.f32 %v333, 0.044715
      %v342 = vadd.f32 %v310, %v334
      %v343 = vadd.f32 %v311, %v335
      %v344 = vadd.f32 %v312, %v336
      %v345 = vadd.f32 %v313, %v337
      %v346 = vadd.f32 %v314, %v338
      %v347 = vadd.f32 %v315, %v339
      %v348 = vadd.f32 %v316, %v340
      %v349 = vadd.f32 %v317, %v341
      %v350 = vmul.f32 %v342, 0.7978846
      %v351 = vmul.f32 %v343, 0.7978846
      %v352 = vmul.f32 %v344, 0.7978846
      %v353 = vmul.f32 %v345, 0.7978846
      %v354 = vmul.f32 %v346, 0.7978846
      %v355 = vmul.f32 %v347, 0.7978846
      %v356 = vmul.f32 %v348, 0.7978846
      %v357 = vmul.f32 %v349, 0.7978846
      %v358 = vtanh.pop %v350
      %v359 = vtanh.pop %v351
      %v360 = vtanh.pop %v352
      %v361 = vtanh.pop %v353
      %v362 = vtanh.pop %v354
      %v363 = vtanh.pop %v355
      %v364 = vtanh.pop %v356
      %v365 = vtanh.pop %v357
      %v366 = vadd.f32 %v358, 1.0
      %v367 = vadd.f32 %v359, 1.0
      %v368 = vadd.f32 %v360, 1.0
      %v369 = vadd.f32 %v361, 1.0
      %v370 = vadd.f32 %v362, 1.0
      %v371 = vadd.f32 %v363, 1.0
      %v372 = vadd.f32 %v364, 1.0
      %v373 = vadd.f32 %v365, 1.0
      %v374 = vmul.f32 %v366, 0.5
      %v375 = vmul.f32 %v367, 0.5
      %v376 = vmul.f32 %v368, 0.5
      %v377 = vmul.f32 %v369, 0.5
      %v378 = vmul.f32 %v370, 0.5
      %v379 = vmul.f32 %v371, 0.5
      %v380 = vmul.f32 %v372, 0.5
      %v381 = vmul.f32 %v373, 0.5
      %v382 = vmul.f32 %v310, %v374
      %v383 = vmul.f32 %v311, %v375
      %v384 = vmul.f32 %v312, %v376
      %v385 = vmul.f32 %v313, %v377
      %v386 = vmul.f32 %v314, %v378
      %v387 = vmul.f32 %v315, %v379
      %v388 = vmul.f32 %v316, %v380
      %v389 = vmul.f32 %v317, %v381
      %v390 = vpack.c.bf16 %v383, %v382
      %v391 = vpack.c.bf16 %v385, %v384
      %v392 = vpack.c.bf16 %v387, %v386
      %v393 = vpack.c.bf16 %v389, %v388
      %v396 = vunpack.c.l.b16 %v272
      %v397 = vunpack.c.l.b16 %v273
      %v398 = vpack.c.b16 %v397, %v396
      %vm400 = vcmask 130048
      %v402 = vsel %vm400, %v390, 0
      %v405 = vsel %vm400, %v391, 0
      %v408 = vsel %vm400, %v392, 0
      %v411 = vsel %vm400, %v393, 0
      %413 = vmatprep.subr.bf16.mxu0 0
      %414 = vmatpush1.bf16.msra.mxu0 0
      %415 = vmatprep.subr.bf16.mxu0 0
      %416 = vmatpush1.bf16.msra.mxu0 0
      %417 = vmatprep.subr.bf16.mxu0 0
      %418 = vmatpush1.bf16.msra.mxu0 0
      %419 = vmatprep.subr.bf16.mxu0 0
      %420 = vmatpush1.bf16.msra.mxu0 0
      %421 = vmatprep.subr.bf16.mxu0 0
      %422 = vmatpush1.bf16.msra.mxu0 0
      %423 = vmatprep.subr.bf16.mxu0 0
      %424 = vmatpush1.bf16.msra.mxu0 0
      %425 = vmatprep.subr.bf16.mxu0 0
      %426 = vmatpush1.bf16.msra.mxu0 0
      %427 = vmatprep.subr.bf16.mxu0 0
      %428 = vmatpush1.bf16.msra.mxu0 %v398
      %429 = vmatprep.subr.bf16.mxu0 0
      %430 = vmatpush2.bf16.msra.mxu0 0
      %431 = vmatprep.subr.bf16.mxu0 0
      %432 = vmatpush2.bf16.msra.mxu0 0
      %433 = vmatprep.subr.bf16.mxu0 0
      %434 = vmatpush2.bf16.msra.mxu0 0
      %435 = vmatprep.subr.bf16.mxu0 0
      %436 = vmatpush2.bf16.msra.mxu0 0
      %437 = vmatprep.subr.bf16.mxu0 0
      %438 = vmatpush2.bf16.msra.mxu0 0
      %439 = vmatprep.subr.bf16.mxu0 0
      %440 = vmatpush2.bf16.msra.mxu0 0
      %441 = vmatprep.subr.bf16.mxu0 0
      %442 = vmatpush2.bf16.msra.mxu0 0
      %443 = vmatprep.subr.bf16.mxu0 0
      %444 = vmatpush2.bf16.msra.mxu0 0
      %445 = vmatprep.mubr.bf16.mxu0 0
      %446 = vmatmul.mubr.bf16.gmra.mxu0 %v402
      %v447 = vpop.f32.mrf.mxu0
      %v448 = vadd.f32 0.0, %v447
      %v449 = vpop.f32.mrf.mxu0
      %v450 = vpop.f32.mrf.mxu0
      %v451 = vadd.f32 0.0, %v450
      %v452 = vpop.f32.mrf.mxu0
      %453 = vmatprep.mubr.bf16.mxu0 0
      %454 = vmatmul.mubr.bf16.gmra.mxu0 %v405
      %v455 = vpop.f32.mrf.mxu0
      %v456 = vadd.f32 0.0, %v455
      %v457 = vpop.f32.mrf.mxu0
      %v458 = vpop.f32.mrf.mxu0
      %v459 = vadd.f32 0.0, %v458
      %v460 = vpop.f32.mrf.mxu0
      %461 = vmatprep.mubr.bf16.mxu0 0
      %462 = vmatmul.mubr.bf16.gmra.mxu0 %v408
      %v463 = vpop.f32.mrf.mxu0
      %v464 = vadd.f32 0.0, %v463
      %v465 = vpop.f32.mrf.mxu0
      %v466 = vpop.f32.mrf.mxu0
      %v467 = vadd.f32 0.0, %v466
      %v468 = vpop.f32.mrf.mxu0
      %469 = vmatprep.mubr.bf16.mxu0 0
      %470 = vmatmul.mubr.bf16.gmra.mxu0 %v411
      %v471 = vpop.f32.mrf.mxu0
      %v472 = vadd.f32 0.0, %v471
      %v473 = vpop.f32.mrf.mxu0
      %v474 = vpop.f32.mrf.mxu0
      %v475 = vadd.f32 0.0, %v474
      %v476 = vpop.f32.mrf.mxu0
      %477 = vdwg.mxu0
      %v478 = vpack.c.bf16 %v448, %v448
      %v479 = vpack.c.bf16 %v451, %v451
      %v480 = vpack.c.bf16 %v456, %v456
      %v481 = vpack.c.bf16 %v459, %v459
      %v482 = vpack.c.bf16 %v464, %v464
      %v483 = vpack.c.bf16 %v467, %v467
      %v484 = vpack.c.bf16 %v472, %v472
      %v485 = vpack.c.bf16 %v475, %v475
      %vm486 = vcmask 125952
      %487 = vst.msk [vmem:[%s262] sm:$0xf] %vm486, %v478
      %488 = vst.msk [vmem:[%s262 + $0x4] sm:$0xf] %vm486, %v479
      %489 = vst.msk [vmem:[%s262 + $0x8] sm:$0xf] %vm486, %v480
      %490 = vst.msk [vmem:[%s262 + $0xc] sm:$0xf] %vm486, %v481
      %491 = vst.msk [vmem:[%s262 + $0x10] sm:$0xf] %vm486, %v482
      %492 = vst.msk [vmem:[%s262 + $0x14] sm:$0xf] %vm486, %v483
      %493 = vst.msk [vmem:[%s262 + $0x18] sm:$0xf] %vm486, %v484
      %494 = vst.msk [vmem:[%s262 + $0x1c] sm:$0xf] %vm486, %v485
      %v495 = vsel %vm400, %v448, 0.0
      %v496 = vsel %vm400, %v451, 0.0
      %v497 = vadd.f32 %v495, %v496
      %v498 = vsel %vm400, %v456, 0.0
      %v499 = vadd.f32 %v497, %v498
      %v500 = vsel %vm400, %v459, 0.0
      %v501 = vadd.f32 %v499, %v500
      %v502 = vsel %vm400, %v464, 0.0
      %v503 = vadd.f32 %v501, %v502
      %v504 = vsel %vm400, %v467, 0.0
      %v505 = vadd.f32 %v503, %v504
      %v506 = vsel %vm400, %v472, 0.0
      %v507 = vadd.f32 %v505, %v506
      %v508 = vsel %vm400, %v475, 0.0
      %v509 = vadd.f32 %v507, %v508
      %v510 = vrot.slane %v509, 4
      %v511 = vadd.f32 %v509, %v510
      %v512 = vrot.slane %v511, 2
      %v513 = vadd.f32 %v511, %v512
      %v514 = vrot.slane %v513, 1
      %v515 = vadd.f32 %v513, %v514
      %v516 = vadd.f32 %v515, 0.0
      %v517 = vmul.f32 %v448, %v448
      %v518 = vmul.f32 %v451, %v451
      %v519 = vmul.f32 %v456, %v456
      %v520 = vmul.f32 %v459, %v459
      %v521 = vmul.f32 %v464, %v464
      %v522 = vmul.f32 %v467, %v467
      %v523 = vmul.f32 %v472, %v472
      %v524 = vmul.f32 %v475, %v475
      %v525 = vsel %vm400, %v517, 0.0
      %v526 = vsel %vm400, %v518, 0.0
      %v527 = vadd.f32 %v525, %v526
      %v528 = vsel %vm400, %v519, 0.0
      %v529 = vadd.f32 %v527, %v528
      %v530 = vsel %vm400, %v520, 0.0
      %v531 = vadd.f32 %v529, %v530
      %v532 = vsel %vm400, %v521, 0.0
      %v533 = vadd.f32 %v531, %v532
      %v534 = vsel %vm400, %v522, 0.0
      %v535 = vadd.f32 %v533, %v534
      %v536 = vsel %vm400, %v523, 0.0
      %v537 = vadd.f32 %v535, %v536
      %v538 = vsel %vm400, %v524, 0.0
      %v539 = vadd.f32 %v537, %v538
      %v540 = vrot.slane %v539, 4
      %v541 = vadd.f32 %v539, %v540
      %v542 = vrot.slane %v541, 2
      %v543 = vadd.f32 %v541, %v542
      %v544 = vrot.slane %v543, 1
      %v545 = vadd.f32 %v543, %v544
      %v546 = vadd.f32 %v545, 0.0
      %vm547 = vcmask 122880
      %548 = vst.msk [vmem:[%s265] sm:$0x1] %vm547, %v516
      %549 = vst.msk [vmem:[%s268] sm:$0x1] %vm547, %v546
      %p550 = scmp.lt.s32.totalorder %s18, 1
      %s551 = scalar_select %p550, %s18, 1
      %s552 = smul.addr %s551, 8
      %s553 = smul.addr %s552, 4
      %s554 = scalar_lea.vmem %s4, %s553
      %p555 = scmp.lt.s32.totalorder %s18, 1
      %s556 = scalar_select %p555, %s18, 1
      %s557 = scalar_lea.vmem %s5, %s556
      %p558 = scmp.lt.s32.totalorder %s18, 1
      %s559 = scalar_select %p558, %s18, 1
      %s560 = scalar_lea.vmem %s6, %s559
      // Predicated region
      $region37: #{cct_block_forward.4} parent=35 // pred_check
        %p561 = pneg %p125
      $region38: #{cct_block_forward.4} parent=35 // pred_check_branch
        %563 = sbr.rel (%p561) target = $region40
      $region39: #{cct_block_forward.4} parent=35 // pred_region
        _
      $region40: #{cct_block_forward.4} parent=35 // pred_fallthru
        _
      // Predicated region
      $region41: #{cct_block_forward.4} parent=35 // pred_check
        %p564 = pneg %p151
      $region42: #{cct_block_forward.4} parent=35 // pred_check_branch
        %566 = sbr.rel (%p564) target = $region44
      $region43: #{cct_block_forward.4} parent=35 // pred_region
        _
      $region44: #{cct_block_forward.4} parent=35 // pred_fallthru
        _
      // Predicated region
      $region45: #{cct_block_forward.4} parent=35 // pred_check
        %p567 = pneg %p177
      $region46: #{cct_block_forward.4} parent=35 // pred_check_branch
        %569 = sbr.rel (%p567) target = $region48
      $region47: #{cct_block_forward.4} parent=35 // pred_region
        _
      $region48: #{cct_block_forward.4} parent=35 // pred_fallthru
        _
    $region36: #{cct_block_forward.4} parent=5 // pred_fallthru
      _
    %p570 = scmp.le.s32.totalorder 2, %s13
    // Predicated region
    $region49: #{cct_block_forward.4} parent=5 // pred_check
      %p571 = pneg %p570
    $region50: #{cct_block_forward.4} parent=5 // pred_check_branch
      %573 = sbr.rel (%p571) target = $region52
    $region51: #{cct_block_forward.4} parent=5 // pred_region
      %s574 = ssub.s32 %s13, 2
      // Predicated region
      $region53: #{cct_block_forward.4} parent=51 // pred_check
        %p575 = pneg %p131
      $region54: #{cct_block_forward.4} parent=51 // pred_check_branch
        %577 = sbr.rel (%p575) target = $region56
      $region55: #{cct_block_forward.4} parent=51 // pred_region
        %p578 = scmp.lt.s32.totalorder %s19, 1
        %s579 = scalar_select %p578, %s19, 1
        %s580 = smul.addr %s579, 8
        %s581 = smul.addr %s580, 4
        %s582 = scalar_lea.vmem %s4, %s581
      $region56: #{cct_block_forward.4} parent=51 // pred_fallthru
        _
      // Predicated region
      $region57: #{cct_block_forward.4} parent=51 // pred_check
        %p583 = pneg %p157
      $region58: #{cct_block_forward.4} parent=51 // pred_check_branch
        %585 = sbr.rel (%p583) target = $region60
      $region59: #{cct_block_forward.4} parent=51 // pred_region
        %p586 = scmp.lt.s32.totalorder %s19, 1
        %s587 = scalar_select %p586, %s19, 1
        %s588 = scalar_lea.vmem %s5, %s587
      $region60: #{cct_block_forward.4} parent=51 // pred_fallthru
        _
      // Predicated region
      $region61: #{cct_block_forward.4} parent=51 // pred_check
        %p589 = pneg %p183
      $region62: #{cct_block_forward.4} parent=51 // pred_check_branch
        %591 = sbr.rel (%p589) target = $region64
      $region63: #{cct_block_forward.4} parent=51 // pred_region
        %p592 = scmp.lt.s32.totalorder %s19, 1
        %s593 = scalar_select %p592, %s19, 1
        %s594 = scalar_lea.vmem %s6, %s593
      $region64: #{cct_block_forward.4} parent=51 // pred_fallthru
        _
    $region52: #{cct_block_forward.4} parent=5 // pred_fallthru
      _
  $region6: #{cct_block_forward.4} parent=0 // loop_footer
    %s17 = sadd.s32 1, %s13
  $region7: #{cct_block_forward.4} parent=0 // loop_footer_branch
    %12 = sbr.rel target = $region3
  $region8: #{cct_block_forward.4} parent=0 // loop_exit
    _

// kernel: cct_block_forward.5
$region0: #{cct_block_forward.5}
  #allocation0 [shape = 'u32[]', space=smem, size = 0x4, offset = 0x4, fixed_abs, tag = 'smem constant byte address 0x4 - core index']
  #allocation1 [shape = 'u32[144,128]{1,0:T(1,128)}', space=vmem, size = 0x12000, scoped, tag = 'internal scratch']
  #allocation2 [shape = 'f32[32,16]{1,0:T(8,128)}', space=vmem, size = 0x4000, scoped, tag = 'scratch operand']
  #allocation3 [shape = 'f32[32,16]{1,0:T(8,128)}', space=vmem, size = 0x4000, scoped, tag = 'scratch operand']
  %s0 = inlined_call_operand.vmem [shape: bf16[2,8,8,16], index: 0, kind: input, shape index: {}]
  %s1 = inlined_call_operand.vmem [shape: bf16[2,8,8,16], index: 1, kind: input, shape index: {}]
  %s2 = inlined_call_operand.vmem [shape: f32[1,16], index: 2, kind: input, shape index: {}]
  %s3 = inlined_call_operand.vmem [shape: f32[1,16], index: 3, kind: input, shape index: {}]
  %s4 = inlined_call_operand.vmem [shape: f32[16,16], index: 4, kind: input, shape index: {}]
  %s5 = inlined_call_operand.vmem [shape: bf16[16,16], index: 5, kind: input, shape index: {}]
  %s6 = inlined_call_operand.vmem [shape: bf16[16,16], index: 6, kind: input, shape index: {}]
  %s7 = inlined_call_operand.vmem [shape: bf16[16,16], index: 7, kind: input, shape index: {}]
  %s8 = inlined_call_operand.vmem [shape: bf16[16,16], index: 8, kind: input, shape index: {}]
  %s9 = inlined_call_operand.vmem [shape: f32[1,16], index: 9, kind: input, shape index: {}]
  %s10 = inlined_call_operand.vmem [shape: bf16[2,8,8,16], index: 10, kind: output, shape index: {}]
  %s11 = sld [smem:[#allocation0]]
  $region73: #{cct_block_forward.5} parent=0
    _
  %s13 = ssub.s32 1, %s11
  %s14 = scalar_select 0, %s13, %s11
  loop: start=0, step=1, limit=6
  $region2: #{cct_block_forward.5} parent=0 // loop_pre_header
    _
  $region3: #{cct_block_forward.5} parent=0 // loop_header
    %s16 = sphi 0, %s20
    %p17 = scmp.ge.s32.totalorder %s16, 6
    %s23 = sphi 0, %s35
    %s24 = sphi 0, %s31
    %s25 = sphi 0, %s23
    %s26 = sphi 0, %s24
    %s27 = sphi 0, %s25
    %s28 = sphi 0, %s26
    %s40 = sphi 0, %s42
    %s43 = sphi 0, %s40
    %s44 = sphi 0, %s43
    %s60 = sphi 0, %s44
    %s68 = sphi 0, %s70
    %s71 = sphi 0, %s68
    %s72 = sphi 0, %s71
    %s88 = sphi 0, %s72
    %s92 = sphi 0, %s92
    %s94 = sphi 0, %s92
    %s95 = sphi 0, %s94
    %s109 = sphi 0, %s95
    %s113 = sphi 0, %s113
    %s115 = sphi 0, %s113
    %s116 = sphi 0, %s115
    %s130 = sphi 0, %s116
    %s134 = sphi 0, %s134
    %s136 = sphi 0, %s134
    %s137 = sphi 0, %s136
    %s151 = sphi 0, %s137
    %s155 = sphi 0, %s155
    %s157 = sphi 0, %s155
    %s158 = sphi 0, %s157
    %s172 = sphi 0, %s158
    %s176 = sphi 0, %s176
    %s178 = sphi 0, %s176
    %s179 = sphi 0, %s178
    %s193 = sphi 0, %s179
    %s197 = sphi 0, %s197
    %s199 = sphi 0, %s197
    %s200 = sphi 0, %s199
    %s214 = sphi 0, %s200
    %s218 = sphi 0, %s218
    %s220 = sphi 0, %s218
    %s221 = sphi 0, %s220
    %s235 = sphi 0, %s221
    %s239 = sphi 0, %s239
    %s241 = sphi 0, %s239
    %s242 = sphi 0, %s241
    %s256 = sphi 0, %s242
    %s264 = sphi 0, %s266
    %s267 = sphi 0, %s264
    %s268 = sphi 0, %s267
    %s284 = sphi 0, %s268
  $region4: #{cct_block_forward.5} parent=0 // loop_header_branch
    %19 = sbr.rel (%p17) target = $region8
  $region5: #{cct_block_forward.5} parent=0 // loop_body
    %s21 = ssub.s32 %s16, 1
    %s22 = ssub.s32 %s16, 2
    %s29 = sadd.s32 1, %s24
    %p30 = scmp.ge.s32.totalorder %s29, 2
    %s31 = scalar_select %p30, 0, %s29
    %s32 = sadd.s32 1, %s23
    %s33 = scalar_select %p30, %s32, %s23
    %p34 = scmp.ge.s32.totalorder %s33, 2
    %s35 = scalar_select %p34, 0, %s33
    %s36 = ssub.s32 %s23, %s35
    %s37 = ssub.s32 %s24, %s31
    %s38 = sor.u32 %s36, %s37
    %p39 = scmp.eq.s32.totalorder %s38, 0
    %s41 = sadd.s32 %s40, 1
    %s42 = scalar_select %p39, %s40, %s41
    %p45 = pneg %p39
    %p46 = scmp.eq.s32.totalorder %s16, 3
    %p47 = por %p45, %p46
    %p48 = scmp.ne.s32.totalorder %s40, %s43
    %p49 = scmp.eq.s32.totalorder %s16, 0
    %p50 = por %p48, %p49
    %p51 = scmp.ne.s32.totalorder %s40, %s43
    %p52 = scmp.eq.s32.totalorder %s21, 3
    %p53 = por %p51, %p52
    %p54 = scmp.ne.s32.totalorder %s43, %s44
    %p55 = scmp.eq.s32.totalorder %s21, 0
    %p56 = por %p54, %p55
    %p57 = scmp.ne.s32.totalorder %s43, %s44
    %p58 = scmp.eq.s32.totalorder %s22, 3
    %p59 = por %p57, %p58
    %p61 = scmp.ne.s32.totalorder %s44, %s60
    %p62 = scmp.eq.s32.totalorder %s22, 0
    %p63 = por %p61, %p62
    %s64 = ssub.s32 %s23, %s35
    %s65 = ssub.s32 %s24, %s31
    %s66 = sor.u32 %s64, %s65
    %p67 = scmp.eq.s32.totalorder %s66, 0
    %s69 = sadd.s32 %s68, 1
    %s70 = scalar_select %p67, %s68, %s69
    %p73 = pneg %p67
    %p74 = scmp.eq.s32.totalorder %s16, 3
    %p75 = por %p73, %p74
    %p76 = scmp.ne.s32.totalorder %s68, %s71
    %p77 = scmp.eq.s32.totalorder %s16, 0
    %p78 = por %p76, %p77
    %p79 = scmp.ne.s32.totalorder %s68, %s71
    %p80 = scmp.eq.s32.totalorder %s21, 3
    %p81 = por %p79, %p80
    %p82 = scmp.ne.s32.totalorder %s71, %s72
    %p83 = scmp.eq.s32.totalorder %s21, 0
    %p84 = por %p82, %p83
    %p85 = scmp.ne.s32.totalorder %s71, %s72
    %p86 = scmp.eq.s32.totalorder %s22, 3
    %p87 = por %p85, %p86
    %p89 = scmp.ne.s32.totalorder %s72, %s88
    %p90 = scmp.eq.s32.totalorder %s22, 0
    %p91 = por %p89, %p90
    %s93 = sadd.s32 %s92, 1
    %p96 = scmp.eq.s32.totalorder %s16, 3
    %p97 = scmp.ne.s32.totalorder %s92, %s94
    %p98 = scmp.eq.s32.totalorder %s16, 0
    %p99 = por %p97, %p98
    %p100 = scmp.ne.s32.totalorder %s92, %s94
    %p101 = scmp.eq.s32.totalorder %s21, 3
    %p102 = por %p100, %p101
    %p103 = scmp.ne.s32.totalorder %s94, %s95
    %p104 = scmp.eq.s32.totalorder %s21, 0
    %p105 = por %p103, %p104
    %p106 = scmp.ne.s32.totalorder %s94, %s95
    %p107 = scmp.eq.s32.totalorder %s22, 3
    %p108 = por %p106, %p107
    %p110 = scmp.ne.s32.totalorder %s95, %s109
    %p111 = scmp.eq.s32.totalorder %s22, 0
    %p112 = por %p110, %p111
    %s114 = sadd.s32 %s113, 1
    %p117 = scmp.eq.s32.totalorder %s16, 3
    %p118 = scmp.ne.s32.totalorder %s113, %s115
    %p119 = scmp.eq.s32.totalorder %s16, 0
    %p120 = por %p118, %p119
    %p121 = scmp.ne.s32.totalorder %s113, %s115
    %p122 = scmp.eq.s32.totalorder %s21, 3
    %p123 = por %p121, %p122
    %p124 = scmp.ne.s32.totalorder %s115, %s116
    %p125 = scmp.eq.s32.totalorder %s21, 0
    %p126 = por %p124, %p125
    %p127 = scmp.ne.s32.totalorder %s115, %s116
    %p128 = scmp.eq.s32.totalorder %s22, 3
    %p129 = por %p127, %p128
    %p131 = scmp.ne.s32.totalorder %s116, %s130
    %p132 = scmp.eq.s32.totalorder %s22, 0
    %p133 = por %p131, %p132
    %s135 = sadd.s32 %s134, 1
    %p138 = scmp.eq.s32.totalorder %s16, 3
    %p139 = scmp.ne.s32.totalorder %s134, %s136
    %p140 = scmp.eq.s32.totalorder %s16, 0
    %p141 = por %p139, %p140
    %p142 = scmp.ne.s32.totalorder %s134, %s136
    %p143 = scmp.eq.s32.totalorder %s21, 3
    %p144 = por %p142, %p143
    %p145 = scmp.ne.s32.totalorder %s136, %s137
    %p146 = scmp.eq.s32.totalorder %s21, 0
    %p147 = por %p145, %p146
    %p148 = scmp.ne.s32.totalorder %s136, %s137
    %p149 = scmp.eq.s32.totalorder %s22, 3
    %p150 = por %p148, %p149
    %p152 = scmp.ne.s32.totalorder %s137, %s151
    %p153 = scmp.eq.s32.totalorder %s22, 0
    %p154 = por %p152, %p153
    %s156 = sadd.s32 %s155, 1
    %p159 = scmp.eq.s32.totalorder %s16, 3
    %p160 = scmp.ne.s32.totalorder %s155, %s157
    %p161 = scmp.eq.s32.totalorder %s16, 0
    %p162 = por %p160, %p161
    %p163 = scmp.ne.s32.totalorder %s155, %s157
    %p164 = scmp.eq.s32.totalorder %s21, 3
    %p165 = por %p163, %p164
    %p166 = scmp.ne.s32.totalorder %s157, %s158
    %p167 = scmp.eq.s32.totalorder %s21, 0
    %p168 = por %p166, %p167
    %p169 = scmp.ne.s32.totalorder %s157, %s158
    %p170 = scmp.eq.s32.totalorder %s22, 3
    %p171 = por %p169, %p170
    %p173 = scmp.ne.s32.totalorder %s158, %s172
    %p174 = scmp.eq.s32.totalorder %s22, 0
    %p175 = por %p173, %p174
    %s177 = sadd.s32 %s176, 1
    %p180 = scmp.eq.s32.totalorder %s16, 3
    %p181 = scmp.ne.s32.totalorder %s176, %s178
    %p182 = scmp.eq.s32.totalorder %s16, 0
    %p183 = por %p181, %p182
    %p184 = scmp.ne.s32.totalorder %s176, %s178
    %p185 = scmp.eq.s32.totalorder %s21, 3
    %p186 = por %p184, %p185
    %p187 = scmp.ne.s32.totalorder %s178, %s179
    %p188 = scmp.eq.s32.totalorder %s21, 0
    %p189 = por %p187, %p188
    %p190 = scmp.ne.s32.totalorder %s178, %s179
    %p191 = scmp.eq.s32.totalorder %s22, 3
    %p192 = por %p190, %p191
    %p194 = scmp.ne.s32.totalorder %s179, %s193
    %p195 = scmp.eq.s32.totalorder %s22, 0
    %p196 = por %p194, %p195
    %s198 = sadd.s32 %s197, 1
    %p201 = scmp.eq.s32.totalorder %s16, 3
    %p202 = scmp.ne.s32.totalorder %s197, %s199
    %p203 = scmp.eq.s32.totalorder %s16, 0
    %p204 = por %p202, %p203
    %p205 = scmp.ne.s32.totalorder %s197, %s199
    %p206 = scmp.eq.s32.totalorder %s21, 3
    %p207 = por %p205, %p206
    %p208 = scmp.ne.s32.totalorder %s199, %s200
    %p209 = scmp.eq.s32.totalorder %s21, 0
    %p210 = por %p208, %p209
    %p211 = scmp.ne.s32.totalorder %s199, %s200
    %p212 = scmp.eq.s32.totalorder %s22, 3
    %p213 = por %p211, %p212
    %p215 = scmp.ne.s32.totalorder %s200, %s214
    %p216 = scmp.eq.s32.totalorder %s22, 0
    %p217 = por %p215, %p216
    %s219 = sadd.s32 %s218, 1
    %p222 = scmp.eq.s32.totalorder %s16, 3
    %p223 = scmp.ne.s32.totalorder %s218, %s220
    %p224 = scmp.eq.s32.totalorder %s16, 0
    %p225 = por %p223, %p224
    %p226 = scmp.ne.s32.totalorder %s218, %s220
    %p227 = scmp.eq.s32.totalorder %s21, 3
    %p228 = por %p226, %p227
    %p229 = scmp.ne.s32.totalorder %s220, %s221
    %p230 = scmp.eq.s32.totalorder %s21, 0
    %p231 = por %p229, %p230
    %p232 = scmp.ne.s32.totalorder %s220, %s221
    %p233 = scmp.eq.s32.totalorder %s22, 3
    %p234 = por %p232, %p233
    %p236 = scmp.ne.s32.totalorder %s221, %s235
    %p237 = scmp.eq.s32.totalorder %s22, 0
    %p238 = por %p236, %p237
    %s240 = sadd.s32 %s239, 1
    %p243 = scmp.eq.s32.totalorder %s16, 3
    %p244 = scmp.ne.s32.totalorder %s239, %s241
    %p245 = scmp.eq.s32.totalorder %s16, 0
    %p246 = por %p244, %p245
    %p247 = scmp.ne.s32.totalorder %s239, %s241
    %p248 = scmp.eq.s32.totalorder %s21, 3
    %p249 = por %p247, %p248
    %p250 = scmp.ne.s32.totalorder %s241, %s242
    %p251 = scmp.eq.s32.totalorder %s21, 0
    %p252 = por %p250, %p251
    %p253 = scmp.ne.s32.totalorder %s241, %s242
    %p254 = scmp.eq.s32.totalorder %s22, 3
    %p255 = por %p253, %p254
    %p257 = scmp.ne.s32.totalorder %s242, %s256
    %p258 = scmp.eq.s32.totalorder %s22, 0
    %p259 = por %p257, %p258
    %s260 = ssub.s32 %s23, %s35
    %s261 = ssub.s32 %s24, %s31
    %s262 = sor.u32 %s260, %s261
    %p263 = scmp.eq.s32.totalorder %s262, 0
    %s265 = sadd.s32 %s264, 1
    %s266 = scalar_select %p263, %s264, %s265
    %p269 = pneg %p263
    %p270 = scmp.eq.s32.totalorder %s16, 3
    %p271 = por %p269, %p270
    %p272 = scmp.ne.s32.totalorder %s264, %s267
    %p273 = scmp.eq.s32.totalorder %s16, 0
    %p274 = por %p272, %p273
    %p275 = scmp.ne.s32.totalorder %s264, %s267
    %p276 = scmp.eq.s32.totalorder %s21, 3
    %p277 = por %p275, %p276
    %p278 = scmp.ne.s32.totalorder %s267, %s268
    %p279 = scmp.eq.s32.totalorder %s21, 0
    %p280 = por %p278, %p279
    %p281 = scmp.ne.s32.totalorder %s267, %s268
    %p282 = scmp.eq.s32.totalorder %s22, 3
    %p283 = por %p281, %p282
    %p285 = scmp.ne.s32.totalorder %s268, %s284
    %p286 = scmp.eq.s32.totalorder %s22, 0
    %p287 = por %p285, %p286
    %p288 = scmp.le.s32.totalorder 1, %s16
    %p289 = scmp.lt.s32.totalorder %s16, 5
    %p290 = pnand %p288, %p289
    %p291 = pneg %p290
    // Predicated region
    $region9: #{cct_block_forward.5} parent=5 // pred_check
      _
    $region10: #{cct_block_forward.5} parent=5 // pred_check_branch
      %293 = sbr.rel (%p290) target = $region12
    $region11: #{cct_block_forward.5} parent=5 // pred_region
      %s294 = ssub.s32 %s16, 1
      // Predicated region
      $region13: #{cct_block_forward.5} parent=11 // pred_check
        %p295 = pneg %p105
      $region14: #{cct_block_forward.5} parent=11 // pred_check_branch
        %297 = sbr.rel (%p295) target = $region16
      $region15: #{cct_block_forward.5} parent=11 // pred_region
        _
      $region16: #{cct_block_forward.5} parent=11 // pred_fallthru
        _
      // Predicated region
      $region17: #{cct_block_forward.5} parent=11 // pred_check
        %p298 = pneg %p126
      $region18: #{cct_block_forward.5} parent=11 // pred_check_branch
        %300 = sbr.rel (%p298) target = $region20
      $region19: #{cct_block_forward.5} parent=11 // pred_region
        _
      $region20: #{cct_block_forward.5} parent=11 // pred_fallthru
        _
      // Predicated region
      $region21: #{cct_block_forward.5} parent=11 // pred_check
        %p301 = pneg %p147
      $region22: #{cct_block_forward.5} parent=11 // pred_check_branch
        %303 = sbr.rel (%p301) target = $region24
      $region23: #{cct_block_forward.5} parent=11 // pred_region
        _
      $region24: #{cct_block_forward.5} parent=11 // pred_fallthru
        _
      // Predicated region
      $region25: #{cct_block_forward.5} parent=11 // pred_check
        %p304 = pneg %p168
      $region26: #{cct_block_forward.5} parent=11 // pred_check_branch
        %306 = sbr.rel (%p304) target = $region28
      $region27: #{cct_block_forward.5} parent=11 // pred_region
        _
      $region28: #{cct_block_forward.5} parent=11 // pred_fallthru
        _
      // Predicated region
      $region29: #{cct_block_forward.5} parent=11 // pred_check
        %p307 = pneg %p189
      $region30: #{cct_block_forward.5} parent=11 // pred_check_branch
        %309 = sbr.rel (%p307) target = $region32
      $region31: #{cct_block_forward.5} parent=11 // pred_region
        _
      $region32: #{cct_block_forward.5} parent=11 // pred_fallthru
        _
      // Predicated region
      $region33: #{cct_block_forward.5} parent=11 // pred_check
        %p310 = pneg %p210
      $region34: #{cct_block_forward.5} parent=11 // pred_check_branch
        %312 = sbr.rel (%p310) target = $region36
      $region35: #{cct_block_forward.5} parent=11 // pred_region
        _
      $region36: #{cct_block_forward.5} parent=11 // pred_fallthru
        _
      // Predicated region
      $region37: #{cct_block_forward.5} parent=11 // pred_check
        %p313 = pneg %p231
      $region38: #{cct_block_forward.5} parent=11 // pred_check_branch
        %315 = sbr.rel (%p313) target = $region40
      $region39: #{cct_block_forward.5} parent=11 // pred_region
        _
      $region40: #{cct_block_forward.5} parent=11 // pred_fallthru
        _
      // Predicated region
      $region41: #{cct_block_forward.5} parent=11 // pred_check
        %p316 = pneg %p252
      $region42: #{cct_block_forward.5} parent=11 // pred_check_branch
        %318 = sbr.rel (%p316) target = $region44
      $region43: #{cct_block_forward.5} parent=11 // pred_region
        _
      $region44: #{cct_block_forward.5} parent=11 // pred_fallthru
        _
    $region12: #{cct_block_forward.5} parent=5 // pred_fallthru
      _
    %p319 = scmp.lt.s32.totalorder %s16, 4
    // Predicated region
    $region45: #{cct_block_forward.5} parent=5 // pred_check
      %p320 = pneg %p319
    $region46: #{cct_block_forward.5} parent=5 // pred_check_branch
      %322 = sbr.rel (%p320) target = $region48
    $region47: #{cct_block_forward.5} parent=5 // pred_region
      // Predicated region
      $region49: #{cct_block_forward.5} parent=47 // pred_check
        %p323 = pneg %p50
      $region50: #{cct_block_forward.5} parent=47 // pred_check_branch
        %325 = sbr.rel (%p323) target = $region52
      $region51: #{cct_block_forward.5} parent=47 // pred_region
        %s326 = smul.u32 4, %s24
        %p327 = scmp.lt.s32.totalorder %s23, 1
        %s328 = scalar_select %p327, %s23, 1
        %p329 = scmp.lt.s32.totalorder %s326, 7
        %s330 = scalar_select %p329, %s326, 7
        %s331 = smul.addr %s328, 8
        %s332 = sadd.s32 %s330, %s331
        %s333 = smul.addr %s332, 4
        %s334 = scalar_lea.vmem %s0, %s333
        %s335 = smul.u32 4, %s24
      $region52: #{cct_block_forward.5} parent=47 // pred_fallthru
        _
      // Predicated region
      $region53: #{cct_block_forward.5} parent=47 // pred_check
        %p336 = pneg %p78
      $region54: #{cct_block_forward.5} parent=47 // pred_check_branch
        %338 = sbr.rel (%p336) target = $region56
      $region55: #{cct_block_forward.5} parent=47 // pred_region
        %s339 = smul.u32 4, %s24
        %p340 = scmp.lt.s32.totalorder %s23, 1
        %s341 = scalar_select %p340, %s23, 1
        %p342 = scmp.lt.s32.totalorder %s339, 7
        %s343 = scalar_select %p342, %s339, 7
        %s344 = smul.addr %s341, 8
        %s345 = sadd.s32 %s343, %s344
        %s346 = smul.addr %s345, 4
        %s347 = scalar_lea.vmem %s1, %s346
        %s348 = smul.u32 4, %s24
      $region56: #{cct_block_forward.5} parent=47 // pred_fallthru
        _
    $region48: #{cct_block_forward.5} parent=5 // pred_fallthru
      _
    %p349 = scmp.le.s32.totalorder 1, %s16
    %p350 = scmp.lt.s32.totalorder %s16, 5
    %p351 = pnand %p349, %p350
    %p352 = pneg %p351
    // Predicated region
    $region57: #{cct_block_forward.5} parent=5 // pred_check
      _
    $region58: #{cct_block_forward.5} parent=5 // pred_check_branch
      %354 = sbr.rel (%p351) target = $region60
    $region59: #{cct_block_forward.5} parent=5 // pred_region
      %s355 = ssub.s32 %s16, 1
      %s356 = smul.u32 4, %s26
      %p357 = scmp.lt.s32.totalorder %s25, 1
      %s358 = scalar_select %p357, %s25, 1
      %p359 = scmp.lt.s32.totalorder %s356, 7
      %s360 = scalar_select %p359, %s356, 7
      %s361 = smul.addr %s358, 8
      %s362 = sadd.s32 %s360, %s361
      %s363 = smul.addr %s362, 4
      %s364 = scalar_lea.vmem %s0, %s363
      %p365 = pneg %p56
      %p366 = pneg %p53
      %s367 = smul.u32 4, %s26
      %p368 = scmp.lt.s32.totalorder %s25, 1
      %s369 = scalar_select %p368, %s25, 1
      %p370 = scmp.lt.s32.totalorder %s367, 7
      %s371 = scalar_select %p370, %s367, 7
      %s372 = smul.addr %s369, 8
      %s373 = sadd.s32 %s371, %s372
      %s374 = smul.addr %s373, 4
      %s375 = scalar_lea.vmem %s1, %s374
      %p376 = pneg %p84
      %p377 = pneg %p81
      %p378 = pneg %p105
      %p379 = pneg %p102
      %p380 = pneg %p126
      %p381 = pneg %p123
      %p382 = pneg %p147
      %p383 = pneg %p144
      %p384 = pneg %p168
      %p385 = pneg %p165
      %p386 = pneg %p189
      %p387 = pneg %p186
      %p388 = pneg %p210
      %p389 = pneg %p207
      %p390 = pneg %p231
      %p391 = pneg %p228
      %p392 = pneg %p252
      %p393 = pneg %p249
      %p394 = pneg %p280
      %p395 = pneg %p277
      %s396 = smul.u32 4, %s26
      %p397 = scmp.lt.s32.totalorder %s25, 1
      %s398 = scalar_select %p397, %s25, 1
      %p399 = scmp.lt.s32.totalorder %s396, 7
      %s400 = scalar_select %p399, %s396, 7
      %s401 = smul.addr %s398, 8
      %s402 = sadd.s32 %s400, %s401
      %s403 = smul.addr %s402, 4
      %s404 = scalar_lea.vmem %s10, %s403
      %s405 = smul.u32 4, %s26
      %p406 = scmp.lt.s32.totalorder %s25, 1
      %s407 = scalar_select %p406, %s25, 1
      %p408 = scmp.lt.s32.totalorder %s405, 7
      %s409 = scalar_select %p408, %s405, 7
      %s410 = smul.addr %s407, 8
      %s411 = sadd.s32 %s409, %s410
      %s412 = smul.addr %s411, 4
      %s413 = scalar_lea.vmem %s0, %s412
      %s414 = smul.u32 4, %s26
      %s415 = smul.u32 4, %s26
      %p416 = scmp.lt.s32.totalorder %s25, 1
      %s417 = scalar_select %p416, %s25, 1
      %p418 = scmp.lt.s32.totalorder %s415, 7
      %s419 = scalar_select %p418, %s415, 7
      %s420 = smul.addr %s417, 8
      %s421 = sadd.s32 %s419, %s420
      %s422 = smul.addr %s421, 4
      %s423 = scalar_lea.vmem %s1, %s422
      %s424 = smul.u32 4, %s26
      %s425 = smul.u32 4, %s26
      %p426 = scmp.lt.s32.totalorder %s25, 1
      %s427 = scalar_select %p426, %s25, 1
      %p428 = scmp.lt.s32.totalorder %s425, 7
      %s429 = scalar_select %p428, %s425, 7
      %s430 = smul.addr %s427, 8
      %s431 = sadd.s32 %s429, %s430
      %s432 = smul.addr %s431, 4
      %s433 = scalar_lea.vmem %s10, %s432
      %s434 = smul.u32 4, %s26
      %v436 = vld [vmem:[%s413] sm:$0xf]
      %v437 = vld [vmem:[%s413 + $0x4] sm:$0xf]
      %v438 = vld [vmem:[%s413 + $0x8] sm:$0xf]
      %v439 = vld [vmem:[%s413 + $0xc] sm:$0xf]
      %v440 = vunpack.c.l.bf16 %v436
      %v441 = vunpack.c.l.bf16 %v437
      %v442 = vunpack.c.l.bf16 %v438
      %v443 = vunpack.c.l.bf16 %v439
      %v444 = vld [vmem:[%s2] sm:$0x1]
      %v446 = vlaneseq
      %v447 = vshrl.u32 %v446, 7
      %v448 = vsub.s32 0, %v447
      %v449 = vrot.slane %v444, %v448
      %v451 = vmul.f32 %v440, %v449
      %v452 = vmul.f32 %v441, %v449
      %v453 = vmul.f32 %v442, %v449
      %v454 = vmul.f32 %v443, %v449
      %v455 = vld [vmem:[%s3] sm:$0x1]
      %v457 = vlaneseq
      %v458 = vshrl.u32 %v457, 7
      %v459 = vsub.s32 0, %v458
      %v460 = vrot.slane %v455, %v459
      %v462 = vadd.f32 %v451, %v460
      %v463 = vadd.f32 %v452, %v460
      %v464 = vadd.f32 %v453, %v460
      %v465 = vadd.f32 %v454, %v460
      %vm466 = vcmask 125952
      %467 = vst.msk [vmem:[#allocation2] sm:$0xf] %vm466, %v462
      %468 = vst.msk [vmem:[#allocation2 + $0x4] sm:$0xf] %vm466, %v463
      %469 = vst.msk [vmem:[#allocation2 + $0x8] sm:$0xf] %vm466, %v464
      %470 = vst.msk [vmem:[#allocation2 + $0xc] sm:$0xf] %vm466, %v465
      %vm471 = vcmask 130052
      %472 = vst.msk [vmem:[#allocation2 + $0xc] sm:$0xf0] %vm471, %v462
      %473 = vst.msk [vmem:[#allocation2 + $0x10] sm:$0xf0] %vm471, %v463
      %474 = vst.msk [vmem:[#allocation2 + $0x14] sm:$0xf0] %vm471, %v464
      %475 = vst.msk [vmem:[#allocation2 + $0x18] sm:$0xf0] %vm471, %v465
      %v476 = vld [vmem:[#allocation2] sm:$0xff]
      %v477 = vld [vmem:[#allocation2 + $0x8] sm:$0xff]
      %v478 = vld [vmem:[#allocation2 + $0x10] sm:$0xff]
      %v479 = vld [vmem:[#allocation2 + $0x18] sm:$0xff]
      %v480 = vpack.c.bf16 %v477, %v476
      %v481 = vpack.c.bf16 %v479, %v478
      %v482 = vld [vmem:[%s4] sm:$0xff]
      %v483 = vld [vmem:[%s4 + $0x8] sm:$0xff]
      %v484 = vld [vmem:[%s5] sm:$0xf]
      %v485 = vld [vmem:[%s5 + $0x4] sm:$0xf]
      %v488 = vunpack.c.l.b16 %v484
      %v489 = vunpack.c.l.b16 %v485
      %v490 = vpack.c.b16 %v489, %v488
      %vm492 = vcmask 130048
      %v494 = vsel %vm492, %v480, 0
      %v497 = vsel %vm492, %v481, 0
      %499 = vmatprep.subr.bf16.mxu0 0
      %500 = vmatpush1.bf16.msra.mxu0 0
      %501 = vmatprep.subr.bf16.mxu0 0
      %502 = vmatpush1.bf16.msra.mxu0 0
      %503 = vmatprep.subr.bf16.mxu0 0
      %504 = vmatpush1.bf16.msra.mxu0 0
      %505 = vmatprep.subr.bf16.mxu0 0
      %506 = vmatpush1.bf16.msra.mxu0 0
      %507 = vmatprep.subr.bf16.mxu0 0
      %508 = vmatpush1.bf16.msra.mxu0 0
      %509 = vmatprep.subr.bf16.mxu0 0
      %510 = vmatpush1.bf16.msra.mxu0 0
      %511 = vmatprep.subr.bf16.mxu0 0
      %512 = vmatpush1.bf16.msra.mxu0 0
      %513 = vmatprep.subr.bf16.mxu0 0
      %514 = vmatpush1.bf16.msra.mxu0 %v490
      %515 = vmatprep.subr.bf16.mxu0 0
      %516 = vmatpush2.bf16.msra.mxu0 0
      %517 = vmatprep.subr.bf16.mxu0 0
      %518 = vmatpush2.bf16.msra.mxu0 0
      %519 = vmatprep.subr.bf16.mxu0 0
      %520 = vmatpush2.bf16.msra.mxu0 0
      %521 = vmatprep.subr.bf16.mxu0 0
      %522 = vmatpush2.bf16.msra.mxu0 0
      %523 = vmatprep.subr.bf16.mxu0 0
      %524 = vmatpush2.bf16.msra.mxu0 0
      %525 = vmatprep.subr.bf16.mxu0 0
      %526 = vmatpush2.bf16.msra.mxu0 0
      %527 = vmatprep.subr.bf16.mxu0 0
      %528 = vmatpush2.bf16.msra.mxu0 0
      %529 = vmatprep.subr.bf16.mxu0 0
      %530 = vmatpush2.bf16.msra.mxu0 0
      %531 = vmatprep.mubr.bf16.mxu0 0
      %532 = vmatmul.mubr.bf16.gmra.mxu0 %v494
      %v533 = vpop.f32.mrf.mxu0
      %v534 = vadd.f32 0.0, %v533
      %v535 = vpop.f32.mrf.mxu0
      %v536 = vpop.f32.mrf.mxu0
      %v537 = vadd.f32 0.0, %v536
      %v538 = vpop.f32.mrf.mxu0
      %539 = vmatprep.mubr.bf16.mxu0 0
      %540 = vmatmul.mubr.bf16.gmra.mxu0 %v497
      %v541 = vpop.f32.mrf.mxu0
      %v542 = vadd.f32 0.0, %v541
      %v543 = vpop.f32.mrf.mxu0
      %v544 = vpop.f32.mrf.mxu0
      %v545 = vadd.f32 0.0, %v544
      %v546 = vpop.f32.mrf.mxu0
      %547 = vdwg.mxu0
      %v548 = vld [vmem:[%s6] sm:$0xf]
      %v549 = vld [vmem:[%s6 + $0x4] sm:$0xf]
      %v552 = vunpack.c.l.b16 %v548
      %v553 = vunpack.c.l.b16 %v549
      %v554 = vpack.c.b16 %v553, %v552
      %556 = vmatprep.subr.bf16.mxu0 0
      %557 = vmatpush1.bf16.msra.mxu0 0
      %558 = vmatprep.subr.bf16.mxu0 0
      %559 = vmatpush1.bf16.msra.mxu0 0
      %560 = vmatprep.subr.bf16.mxu0 0
      %561 = vmatpush1.bf16.msra.mxu0 0
      %562 = vmatprep.subr.bf16.mxu0 0
      %563 = vmatpush1.bf16.msra.mxu0 0
      %564 = vmatprep.subr.bf16.mxu0 0
      %565 = vmatpush1.bf16.msra.mxu0 0
      %566 = vmatprep.subr.bf16.mxu0 0
      %567 = vmatpush1.bf16.msra.mxu0 0
      %568 = vmatprep.subr.bf16.mxu0 0
      %569 = vmatpush1.bf16.msra.mxu0 0
      %570 = vmatprep.subr.bf16.mxu0 0
      %571 = vmatpush1.bf16.msra.mxu0 %v554
      %572 = vmatprep.subr.bf16.mxu0 0
      %573 = vmatpush2.bf16.msra.mxu0 0
      %574 = vmatprep.subr.bf16.mxu0 0
      %575 = vmatpush2.bf16.msra.mxu0 0
      %576 = vmatprep.subr.bf16.mxu0 0
      %577 = vmatpush2.bf16.msra.mxu0 0
      %578 = vmatprep.subr.bf16.mxu0 0
      %579 = vmatpush2.bf16.msra.mxu0 0
      %580 = vmatprep.subr.bf16.mxu0 0
      %581 = vmatpush2.bf16.msra.mxu0 0
      %582 = vmatprep.subr.bf16.mxu0 0
      %583 = vmatpush2.bf16.msra.mxu0 0
      %584 = vmatprep.subr.bf16.mxu0 0
      %585 = vmatpush2.bf16.msra.mxu0 0
      %586 = vmatprep.subr.bf16.mxu0 0
      %587 = vmatpush2.bf16.msra.mxu0 0
      %588 = vmatprep.mubr.bf16.mxu0 0
      %589 = vmatmul.mubr.bf16.gmra.mxu0 %v494
      %v590 = vpop.f32.mrf.mxu0
      %v591 = vadd.f32 0.0, %v590
      %v592 = vpop.f32.mrf.mxu0
      %v593 = vpop.f32.mrf.mxu0
      %v594 = vadd.f32 0.0, %v593
      %v595 = vpop.f32.mrf.mxu0
      %596 = vmatprep.mubr.bf16.mxu0 0
      %597 = vmatmul.mubr.bf16.gmra.mxu0 %v497
      %v598 = vpop.f32.mrf.mxu0
      %v599 = vadd.f32 0.0, %v598
      %v600 = vpop.f32.mrf.mxu0
      %v601 = vpop.f32.mrf.mxu0
      %v602 = vadd.f32 0.0, %v601
      %v603 = vpop.f32.mrf.mxu0
      %604 = vdwg.mxu0
      %v605 = vld [vmem:[%s7] sm:$0xf]
      %v606 = vld [vmem:[%s7 + $0x4] sm:$0xf]
      %v609 = vunpack.c.l.b16 %v605
      %v610 = vunpack.c.l.b16 %v606
      %v611 = vpack.c.b16 %v610, %v609
      %613 = vmatprep.subr.bf16.mxu0 0
      %614 = vmatpush1.bf16.msra.mxu0 0
      %615 = vmatprep.subr.bf16.mxu0 0
      %616 = vmatpush1.bf16.msra.mxu0 0
      %617 = vmatprep.subr.bf16.mxu0 0
      %618 = vmatpush1.bf16.msra.mxu0 0
      %619 = vmatprep.subr.bf16.mxu0 0
      %620 = vmatpush1.bf16.msra.mxu0 0
      %621 = vmatprep.subr.bf16.mxu0 0
      %622 = vmatpush1.bf16.msra.mxu0 0
      %623 = vmatprep.subr.bf16.mxu0 0
      %624 = vmatpush1.bf16.msra.mxu0 0
      %625 = vmatprep.subr.bf16.mxu0 0
      %626 = vmatpush1.bf16.msra.mxu0 0
      %627 = vmatprep.subr.bf16.mxu0 0
      %628 = vmatpush1.bf16.msra.mxu0 %v611
      %629 = vmatprep.subr.bf16.mxu0 0
      %630 = vmatpush2.bf16.msra.mxu0 0
      %631 = vmatprep.subr.bf16.mxu0 0
      %632 = vmatpush2.bf16.msra.mxu0 0
      %633 = vmatprep.subr.bf16.mxu0 0
      %634 = vmatpush2.bf16.msra.mxu0 0
      %635 = vmatprep.subr.bf16.mxu0 0
      %636 = vmatpush2.bf16.msra.mxu0 0
      %637 = vmatprep.subr.bf16.mxu0 0
      %638 = vmatpush2.bf16.msra.mxu0 0
      %639 = vmatprep.subr.bf16.mxu0 0
      %640 = vmatpush2.bf16.msra.mxu0 0
      %641 = vmatprep.subr.bf16.mxu0 0
      %642 = vmatpush2.bf16.msra.mxu0 0
      %643 = vmatprep.subr.bf16.mxu0 0
      %644 = vmatpush2.bf16.msra.mxu0 0
      %645 = vmatprep.mubr.bf16.mxu0 0
      %646 = vmatmul.mubr.bf16.gmra.mxu0 %v494
      %v647 = vpop.f32.mrf.mxu0
      %v648 = vadd.f32 0.0, %v647
      %v649 = vpop.f32.mrf.mxu0
      %v650 = vpop.f32.mrf.mxu0
      %v651 = vadd.f32 0.0, %v650
      %v652 = vpop.f32.mrf.mxu0
      %653 = vmatprep.mubr.bf16.mxu0 0
      %654 = vmatmul.mubr.bf16.gmra.mxu0 %v497
      %v655 = vpop.f32.mrf.mxu0
      %v656 = vadd.f32 0.0, %v655
      %v657 = vpop.f32.mrf.mxu0
      %v658 = vpop.f32.mrf.mxu0
      %v659 = vadd.f32 0.0, %v658
      %v660 = vpop.f32.mrf.mxu0
      %661 = vdwg.mxu0
      %v662 = vpack.c.bf16 %v537, %v534
      %v663 = vpack.c.bf16 %v545, %v542
      %v664 = vpack.c.bf16 %v594, %v591
      %v665 = vpack.c.bf16 %v602, %v599
      %v666 = vpack.c.bf16 %v651, %v648
      %v667 = vpack.c.bf16 %v659, %v656
      %vm668 = vcmask 64512
      %v670 = vsel %vm668, %v662, 0
      %v673 = vsel %vm668, %v664, 0
      %675 = vmatprep.subr.bf16.mxu0 0
      %676 = vmatpush1.bf16.xpose.msra.mxu0 0
      %677 = vmatprep.subr.bf16.mxu0 0
      %678 = vmatpush1.bf16.xpose.msra.mxu0 0
      %679 = vmatprep.subr.bf16.mxu0 0
      %680 = vmatpush1.bf16.xpose.msra.mxu0 0
      %681 = vmatprep.subr.bf16.mxu0 0
      %682 = vmatpush1.bf16.xpose.msra.mxu0 0
      %683 = vmatprep.subr.bf16.mxu0 0
      %684 = vmatpush1.bf16.xpose.msra.mxu0 0
      %685 = vmatprep.subr.bf16.mxu0 0
      %686 = vmatpush1.bf16.xpose.msra.mxu0 0
      %687 = vmatprep.subr.bf16.mxu0 0
      %688 = vmatpush1.bf16.xpose.msra.mxu0 0
      %689 = vmatprep.subr.bf16.mxu0 0
      %690 = vmatpush1.bf16.xpose.msra.mxu0 %v673
      %691 = vmatprep.subr.bf16.mxu0 0
      %692 = vmatpush2.bf16.xpose.msra.mxu0 0
      %693 = vmatprep.subr.bf16.mxu0 0
      %694 = vmatpush2.bf16.xpose.msra.mxu0 0
      %695 = vmatprep.subr.bf16.mxu0 0
      %696 = vmatpush2.bf16.xpose.msra.mxu0 0
      %697 = vmatprep.subr.bf16.mxu0 0
      %698 = vmatpush2.bf16.xpose.msra.mxu0 0
      %699 = vmatprep.subr.bf16.mxu0 0
      %700 = vmatpush2.bf16.xpose.msra.mxu0 0
      %701 = vmatprep.subr.bf16.mxu0 0
      %702 = vmatpush2.bf16.xpose.msra.mxu0 0
      %703 = vmatprep.subr.bf16.mxu0 0
      %704 = vmatpush2.bf16.xpose.msra.mxu0 0
      %705 = vmatprep.subr.bf16.mxu0 0
      %706 = vmatpush2.bf16.xpose.msra.mxu0 0
      %707 = vmatprep.mubr.bf16.mxu0 0
      %708 = vmatmul.mubr.bf16.gmra.mxu0 %v670
      %v709 = vpop.f32.mrf.mxu0
      %v710 = vadd.f32 %v482, %v709
      %v711 = vpop.f32.mrf.mxu0
      %v712 = vpop.f32.mrf.mxu0
      %v713 = vadd.f32 %v483, %v712
      %v714 = vpop.f32.mrf.mxu0
      %715 = vdwg.mxu0
      %v717 = vsel %vm668, %v663, 0
      %v720 = vsel %vm668, %v665, 0
      %722 = vmatprep.subr.bf16.mxu0 0
      %723 = vmatpush1.bf16.xpose.msra.mxu0 0
      %724 = vmatprep.subr.bf16.mxu0 0
      %725 = vmatpush1.bf16.xpose.msra.mxu0 0
      %726 = vmatprep.subr.bf16.mxu0 0
      %727 = vmatpush1.bf16.xpose.msra.mxu0 0
      %728 = vmatprep.subr.bf16.mxu0 0
      %729 = vmatpush1.bf16.xpose.msra.mxu0 0
      %730 = vmatprep.subr.bf16.mxu0 0
      %731 = vmatpush1.bf16.xpose.msra.mxu0 0
      %732 = vmatprep.subr.bf16.mxu0 0
      %733 = vmatpush1.bf16.xpose.msra.mxu0 0
      %734 = vmatprep.subr.bf16.mxu0 0
      %735 = vmatpush1.bf16.xpose.msra.mxu0 0
      %736 = vmatprep.subr.bf16.mxu0 0
      %737 = vmatpush1.bf16.xpose.msra.mxu0 %v720
      %738 = vmatprep.subr.bf16.mxu0 0
      %739 = vmatpush2.bf16.xpose.msra.mxu0 0
      %740 = vmatprep.subr.bf16.mxu0 0
      %741 = vmatpush2.bf16.xpose.msra.mxu0 0
      %742 = vmatprep.subr.bf16.mxu0 0
      %743 = vmatpush2.bf16.xpose.msra.mxu0 0
      %744 = vmatprep.subr.bf16.mxu0 0
      %745 = vmatpush2.bf16.xpose.msra.mxu0 0
      %746 = vmatprep.subr.bf16.mxu0 0
      %747 = vmatpush2.bf16.xpose.msra.mxu0 0
      %748 = vmatprep.subr.bf16.mxu0 0
      %749 = vmatpush2.bf16.xpose.msra.mxu0 0
      %750 = vmatprep.subr.bf16.mxu0 0
      %751 = vmatpush2.bf16.xpose.msra.mxu0 0
      %752 = vmatprep.subr.bf16.mxu0 0
      %753 = vmatpush2.bf16.xpose.msra.mxu0 0
      %754 = vmatprep.mubr.bf16.mxu0 0
      %755 = vmatmul.mubr.bf16.gmra.mxu0 %v717
      %v756 = vpop.f32.mrf.mxu0
      %v757 = vadd.f32 %v482, %v756
      %v758 = vpop.f32.mrf.mxu0
      %v759 = vpop.f32.mrf.mxu0
      %v760 = vadd.f32 %v483, %v759
      %v761 = vpop.f32.mrf.mxu0
      %762 = vdwg.mxu0
      %v763 = vsel %vm492, %v710, -inf
      %764 = vmax.xlane.f32.xlu0 %v763
      %v765 = vpop.xlane.xlu0 %764
      %v766 = vsel %vm492, %v713, -inf
      %767 = vmax.xlane.f32.xlu0 %v766
      %v768 = vpop.xlane.xlu0 %767
      %v769 = vsel %vm492, %v757, -inf
      %770 = vmax.xlane.f32.xlu0 %v769
      %v771 = vpop.xlane.xlu0 %770
      %v772 = vsel %vm492, %v760, -inf
      %773 = vmax.xlane.f32.xlu0 %v772
      %v774 = vpop.xlane.xlu0 %773
      %v775 = vsub.f32 %v710, %v765
      %v776 = vsub.f32 %v713, %v768
      %v777 = vsub.f32 %v757, %v771
      %v778 = vsub.f32 %v760, %v774
      %v779 = vmul.f32 %v775, 1.442695
      %v780 = vpow.pop %v779
      %v781 = vmul.f32 %v776, 1.442695
      %v782 = vpow.pop %v781
      %v783 = vmul.f32 %v777, 1.442695
      %v784 = vpow.pop %v783
      %v785 = vmul.f32 %v778, 1.442695
      %v786 = vpow.pop %v785
      %v787 = vsel %vm492, %v780, 0.0
      %788 = vadd.xlane.f32.xlu0 %v787
      %v789 = vpop.xlane.xlu0 %788
      %v790 = vsel %vm492, %v782, 0.0
      %791 = vadd.xlane.f32.xlu0 %v790
      %v792 = vpop.xlane.xlu0 %791
      %v793 = vsel %vm492, %v784, 0.0
      %794 = vadd.xlane.f32.xlu0 %v793
      %v795 = vpop.xlane.xlu0 %794
      %v796 = vsel %vm492, %v786, 0.0
      %797 = vadd.xlane.f32.xlu0 %v796
      %v798 = vpop.xlane.xlu0 %797
      %v799 = vrcp.pop %v789
      %v800 = vrcp.pop %v792
      %v801 = vrcp.pop %v795
      %v802 = vrcp.pop %v798
      %v803 = vmul.f32 %v780, %v799
      %v804 = vmul.f32 %v782, %v800
      %v805 = vmul.f32 %v784, %v801
      %v806 = vmul.f32 %v786, %v802
      %v807 = vpack.c.bf16 %v804, %v803
      %v808 = vpack.c.bf16 %v806, %v805
      %v810 = vsel %vm492, %v807, 0
      %812 = vmatprep.subr.bf16.mxu0 0
      %813 = vmatpush1.bf16.msra.mxu0 0
      %814 = vmatprep.subr.bf16.mxu0 0
      %815 = vmatpush1.bf16.msra.mxu0 0
      %816 = vmatprep.subr.bf16.mxu0 0
      %817 = vmatpush1.bf16.msra.mxu0 0
      %818 = vmatprep.subr.bf16.mxu0 0
      %819 = vmatpush1.bf16.msra.mxu0 0
      %820 = vmatprep.subr.bf16.mxu0 0
      %821 = vmatpush1.bf16.msra.mxu0 0
      %822 = vmatprep.subr.bf16.mxu0 0
      %823 = vmatpush1.bf16.msra.mxu0 0
      %824 = vmatprep.subr.bf16.mxu0 0
      %825 = vmatpush1.bf16.msra.mxu0 0
      %826 = vmatprep.subr.bf16.mxu0 0
      %827 = vmatpush1.bf16.msra.mxu0 %v666
      %828 = vmatprep.subr.bf16.mxu0 0
      %829 = vmatpush2.bf16.msra.mxu0 0
      %830 = vmatprep.subr.bf16.mxu0 0
      %831 = vmatpush2.bf16.msra.mxu0 0
      %832 = vmatprep.subr.bf16.mxu0 0
      %833 = vmatpush2.bf16.msra.mxu0 0
      %834 = vmatprep.subr.bf16.mxu0 0
      %835 = vmatpush2.bf16.msra.mxu0 0
      %836 = vmatprep.subr.bf16.mxu0 0
      %837 = vmatpush2.bf16.msra.mxu0 0
      %838 = vmatprep.subr.bf16.mxu0 0
      %839 = vmatpush2.bf16.msra.mxu0 0
      %840 = vmatprep.subr.bf16.mxu0 0
      %841 = vmatpush2.bf16.msra.mxu0 0
      %842 = vmatprep.subr.bf16.mxu0 0
      %843 = vmatpush2.bf16.msra.mxu0 0
      %844 = vmatprep.mubr.bf16.mxu0 0
      %845 = vmatmul.mubr.bf16.gmra.mxu0 %v810
      %v846 = vpop.f32.mrf.mxu0
      %v847 = vadd.f32 0.0, %v846
      %v848 = vpop.f32.mrf.mxu0
      %v849 = vpop.f32.mrf.mxu0
      %v850 = vadd.f32 0.0, %v849
      %v851 = vpop.f32.mrf.mxu0
      %852 = vdwg.mxu0
      %v854 = vsel %vm492, %v808, 0
      %856 = vmatprep.subr.bf16.mxu0 0
      %857 = vmatpush1.bf16.msra.mxu0 0
      %858 = vmatprep.subr.bf16.mxu0 0
      %859 = vmatpush1.bf16.msra.mxu0 0
      %860 = vmatprep.subr.bf16.mxu0 0
      %861 = vmatpush1.bf16.msra.mxu0 0
      %862 = vmatprep.subr.bf16.mxu0 0
      %863 = vmatpush1.bf16.msra.mxu0 0
      %864 = vmatprep.subr.bf16.mxu0 0
      %865 = vmatpush1.bf16.msra.mxu0 0
      %866 = vmatprep.subr.bf16.mxu0 0
      %867 = vmatpush1.bf16.msra.mxu0 0
      %868 = vmatprep.subr.bf16.mxu0 0
      %869 = vmatpush1.bf16.msra.mxu0 0
      %870 = vmatprep.subr.bf16.mxu0 0
      %871 = vmatpush1.bf16.msra.mxu0 %v667
      %872 = vmatprep.subr.bf16.mxu0 0
      %873 = vmatpush2.bf16.msra.mxu0 0
      %874 = vmatprep.subr.bf16.mxu0 0
      %875 = vmatpush2.bf16.msra.mxu0 0
      %876 = vmatprep.subr.bf16.mxu0 0
      %877 = vmatpush2.bf16.msra.mxu0 0
      %878 = vmatprep.subr.bf16.mxu0 0
      %879 = vmatpush2.bf16.msra.mxu0 0
      %880 = vmatprep.subr.bf16.mxu0 0
      %881 = vmatpush2.bf16.msra.mxu0 0
      %882 = vmatprep.subr.bf16.mxu0 0
      %883 = vmatpush2.bf16.msra.mxu0 0
      %884 = vmatprep.subr.bf16.mxu0 0
      %885 = vmatpush2.bf16.msra.mxu0 0
      %886 = vmatprep.subr.bf16.mxu0 0
      %887 = vmatpush2.bf16.msra.mxu0 0
      %888 = vmatprep.mubr.bf16.mxu0 0
      %889 = vmatmul.mubr.bf16.gmra.mxu0 %v854
      %v890 = vpop.f32.mrf.mxu0
      %v891 = vadd.f32 0.0, %v890
      %v892 = vpop.f32.mrf.mxu0
      %v893 = vpop.f32.mrf.mxu0
      %v894 = vadd.f32 0.0, %v893
      %v895 = vpop.f32.mrf.mxu0
      %896 = vdwg.mxu0
      %897 = vst.msk [vmem:[#allocation3] sm:$0xff] %vm668, %v847
      %898 = vst.msk [vmem:[#allocation3 + $0x8] sm:$0xff] %vm668, %v850
      %899 = vst.msk [vmem:[#allocation3 + $0x10] sm:$0xff] %vm668, %v891
      %900 = vst.msk [vmem:[#allocation3 + $0x18] sm:$0xff] %vm668, %v894
      %902 = vrot.lane.b32.xlu0 %v662, 120
      %v903 = vpop.permute.xlu0 %902
      %905 = vrot.lane.b32.xlu0 %v664, 120
      %v906 = vpop.permute.xlu0 %905
      %v908 = vsel %vm668, %v903, 0
      %v911 = vsel %vm668, %v906, 0
      %913 = vmatprep.subr.bf16.mxu0 0
      %914 = vmatpush1.bf16.xpose.msra.mxu0 0
      %915 = vmatprep.subr.bf16.mxu0 0
      %916 = vmatpush1.bf16.xpose.msra.mxu0 0
      %917 = vmatprep.subr.bf16.mxu0 0
      %918 = vmatpush1.bf16.xpose.msra.mxu0 0
      %919 = vmatprep.subr.bf16.mxu0 0
      %920 = vmatpush1.bf16.xpose.msra.mxu0 0
      %921 = vmatprep.subr.bf16.mxu0 0
      %922 = vmatpush1.bf16.xpose.msra.mxu0 0
      %923 = vmatprep.subr.bf16.mxu0 0
      %924 = vmatpush1.bf16.xpose.msra.mxu0 0
      %925 = vmatprep.subr.bf16.mxu0 0
      %926 = vmatpush1.bf16.xpose.msra.mxu0 0
      %927 = vmatprep.subr.bf16.mxu0 0
      %928 = vmatpush1.bf16.xpose.msra.mxu0 %v911
      %929 = vmatprep.subr.bf16.mxu0 0
      %930 = vmatpush2.bf16.xpose.msra.mxu0 0
      %931 = vmatprep.subr.bf16.mxu0 0
      %932 = vmatpush2.bf16.xpose.msra.mxu0 0
      %933 = vmatprep.subr.bf16.mxu0 0
      %934 = vmatpush2.bf16.xpose.msra.mxu0 0
      %935 = vmatprep.subr.bf16.mxu0 0
      %936 = vmatpush2.bf16.xpose.msra.mxu0 0
      %937 = vmatprep.subr.bf16.mxu0 0
      %938 = vmatpush2.bf16.xpose.msra.mxu0 0
      %939 = vmatprep.subr.bf16.mxu0 0
      %940 = vmatpush2.bf16.xpose.msra.mxu0 0
      %941 = vmatprep.subr.bf16.mxu0 0
      %942 = vmatpush2.bf16.xpose.msra.mxu0 0
      %943 = vmatprep.subr.bf16.mxu0 0
      %944 = vmatpush2.bf16.xpose.msra.mxu0 0
      %945 = vmatprep.mubr.bf16.mxu0 0
      %946 = vmatmul.mubr.bf16.gmra.mxu0 %v908
      %v947 = vpop.f32.mrf.mxu0
      %v948 = vadd.f32 %v482, %v947
      %v949 = vpop.f32.mrf.mxu0
      %v950 = vpop.f32.mrf.mxu0
      %v951 = vadd.f32 %v483, %v950
      %v952 = vpop.f32.mrf.mxu0
      %953 = vdwg.mxu0
      %955 = vrot.lane.b32.xlu0 %v663, 120
      %v956 = vpop.permute.xlu0 %955
      %958 = vrot.lane.b32.xlu0 %v665, 120
      %v959 = vpop.permute.xlu0 %958
      %v961 = vsel %vm668, %v956, 0
      %v964 = vsel %vm668, %v959, 0
      %966 = vmatprep.subr.bf16.mxu0 0
      %967 = vmatpush1.bf16.xpose.msra.mxu0 0
      %968 = vmatprep.subr.bf16.mxu0 0
      %969 = vmatpush1.bf16.xpose.msra.mxu0 0
      %970 = vmatprep.subr.bf16.mxu0 0
      %971 = vmatpush1.bf16.xpose.msra.mxu0 0
      %972 = vmatprep.subr.bf16.mxu0 0
      %973 = vmatpush1.bf16.xpose.msra.mxu0 0
      %974 = vmatprep.subr.bf16.mxu0 0
      %975 = vmatpush1.bf16.xpose.msra.mxu0 0
      %976 = vmatprep.subr.bf16.mxu0 0
      %977 = vmatpush1.bf16.xpose.msra.mxu0 0
      %978 = vmatprep.subr.bf16.mxu0 0
      %979 = vmatpush1.bf16.xpose.msra.mxu0 0
      %980 = vmatprep.subr.bf16.mxu0 0
      %981 = vmatpush1.bf16.xpose.msra.mxu0 %v964
      %982 = vmatprep.subr.bf16.mxu0 0
      %983 = vmatpush2.bf16.xpose.msra.mxu0 0
      %984 = vmatprep.subr.bf16.mxu0 0
      %985 = vmatpush2.bf16.xpose.msra.mxu0 0
      %986 = vmatprep.subr.bf16.mxu0 0
      %987 = vmatpush2.bf16.xpose.msra.mxu0 0
      %988 = vmatprep.subr.bf16.mxu0 0
      %989 = vmatpush2.bf16.xpose.msra.mxu0 0
      %990 = vmatprep.subr.bf16.mxu0 0
      %991 = vmatpush2.bf16.xpose.msra.mxu0 0
      %992 = vmatprep.subr.bf16.mxu0 0
      %993 = vmatpush2.bf16.xpose.msra.mxu0 0
      %994 = vmatprep.subr.bf16.mxu0 0
      %995 = vmatpush2.bf16.xpose.msra.mxu0 0
      %996 = vmatprep.subr.bf16.mxu0 0
      %997 = vmatpush2.bf16.xpose.msra.mxu0 0
      %998 = vmatprep.mubr.bf16.mxu0 0
      %999 = vmatmul.mubr.bf16.gmra.mxu0 %v961
      %v1000 = vpop.f32.mrf.mxu0
      %v1001 = vadd.f32 %v482, %v1000
      %v1002 = vpop.f32.mrf.mxu0
      %v1003 = vpop.f32.mrf.mxu0
      %v1004 = vadd.f32 %v483, %v1003
      %v1005 = vpop.f32.mrf.mxu0
      %1006 = vdwg.mxu0
      %v1007 = vsel %vm492, %v948, -inf
      %1008 = vmax.xlane.f32.xlu0 %v1007
      %v1009 = vpop.xlane.xlu0 %1008
      %v1010 = vsel %vm492, %v951, -inf
      %1011 = vmax.xlane.f32.xlu0 %v1010
      %v1012 = vpop.xlane.xlu0 %1011
      %v1013 = vsel %vm492, %v1001, -inf
      %1014 = vmax.xlane.f32.xlu0 %v1013
      %v1015 = vpop.xlane.xlu0 %1014
      %v1016 = vsel %vm492, %v1004, -inf
      %1017 = vmax.xlane.f32.xlu0 %v1016
      %v1018 = vpop.xlane.xlu0 %1017
      %v1019 = vsub.f32 %v948, %v1009
      %v1020 = vsub.f32 %v951, %v1012
      %v1021 = vsub.f32 %v1001, %v1015
      %v1022 = vsub.f32 %v1004, %v1018
      %v1023 = vmul.f32 %v1019, 1.442695
      %v1024 = vpow.pop %v1023
      %v1025 = vmul.f32 %v1020, 1.442695
      %v1026 = vpow.pop %v1025
      %v1027 = vmul.f32 %v1021, 1.442695
      %v1028 = vpow.pop %v1027
      %v1029 = vmul.f32 %v1022, 1.442695
      %v1030 = vpow.pop %v1029
      %v1031 = vsel %vm492, %v1024, 0.0
      %1032 = vadd.xlane.f32.xlu0 %v1031
      %v1033 = vpop.xlane.xlu0 %1032
      %v1034 = vsel %vm492, %v1026, 0.0
      %1035 = vadd.xlane.f32.xlu0 %v1034
      %v1036 = vpop.xlane.xlu0 %1035
      %v1037 = vsel %vm492, %v1028, 0.0
      %1038 = vadd.xlane.f32.xlu0 %v1037
      %v1039 = vpop.xlane.xlu0 %1038
      %v1040 = vsel %vm492, %v1030, 0.0
      %1041 = vadd.xlane.f32.xlu0 %v1040
      %v1042 = vpop.xlane.xlu0 %1041
      %v1043 = vrcp.pop %v1033
      %v1044 = vrcp.pop %v1036
      %v1045 = vrcp.pop %v1039
      %v1046 = vrcp.pop %v1042
      %v1047 = vmul.f32 %v1024, %v1043
      %v1048 = vmul.f32 %v1026, %v1044
      %v1049 = vmul.f32 %v1028, %v1045
      %v1050 = vmul.f32 %v1030, %v1046
      %v1051 = vpack.c.bf16 %v1048, %v1047
      %v1052 = vpack.c.bf16 %v1050, %v1049
      %1054 = vrot.lane.b32.xlu0 %v666, 120
      %v1055 = vpop.permute.xlu0 %1054
      %v1058 = vsel %vm492, %v1051, 0
      %1060 = vmatprep.subr.bf16.mxu0 0
      %1061 = vmatpush1.bf16.msra.mxu0 0
      %1062 = vmatprep.subr.bf16.mxu0 0
      %1063 = vmatpush1.bf16.msra.mxu0 0
      %1064 = vmatprep.subr.bf16.mxu0 0
      %1065 = vmatpush1.bf16.msra.mxu0 0
      %1066 = vmatprep.subr.bf16.mxu0 0
      %1067 = vmatpush1.bf16.msra.mxu0 0
      %1068 = vmatprep.subr.bf16.mxu0 0
      %1069 = vmatpush1.bf16.msra.mxu0 0
      %1070 = vmatprep.subr.bf16.mxu0 0
      %1071 = vmatpush1.bf16.msra.mxu0 0
      %1072 = vmatprep.subr.bf16.mxu0 0
      %1073 = vmatpush1.bf16.msra.mxu0 0
      %1074 = vmatprep.subr.bf16.mxu0 0
      %1075 = vmatpush1.bf16.msra.mxu0 %v1055
      %1076 = vmatprep.subr.bf16.mxu0 0
      %1077 = vmatpush2.bf16.msra.mxu0 0
      %1078 = vmatprep.subr.bf16.mxu0 0
      %1079 = vmatpush2.bf16.msra.mxu0 0
      %1080 = vmatprep.subr.bf16.mxu0 0
      %1081 = vmatpush2.bf16.msra.mxu0 0
      %1082 = vmatprep.subr.bf16.mxu0 0
      %1083 = vmatpush2.bf16.msra.mxu0 0
      %1084 = vmatprep.subr.bf16.mxu0 0
      %1085 = vmatpush2.bf16.msra.mxu0 0
      %1086 = vmatprep.subr.bf16.mxu0 0
      %1087 = vmatpush2.bf16.msra.mxu0 0
      %1088 = vmatprep.subr.bf16.mxu0 0
      %1089 = vmatpush2.bf16.msra.mxu0 0
      %1090 = vmatprep.subr.bf16.mxu0 0
      %1091 = vmatpush2.bf16.msra.mxu0 0
      %1092 = vmatprep.mubr.bf16.mxu0 0
      %1093 = vmatmul.mubr.bf16.gmra.mxu0 %v1058
      %v1094 = vpop.f32.mrf.mxu0
      %v1095 = vadd.f32 0.0, %v1094
      %v1096 = vpop.f32.mrf.mxu0
      %v1097 = vpop.f32.mrf.mxu0
      %v1098 = vadd.f32 0.0, %v1097
      %v1099 = vpop.f32.mrf.mxu0
      %1100 = vdwg.mxu0
      %1102 = vrot.lane.b32.xlu0 %v667, 120
      %v1103 = vpop.permute.xlu0 %1102
      %v1106 = vsel %vm492, %v1052, 0
      %1108 = vmatprep.subr.bf16.mxu0 0
      %1109 = vmatpush1.bf16.msra.mxu0 0
      %1110 = vmatprep.subr.bf16.mxu0 0
      %1111 = vmatpush1.bf16.msra.mxu0 0
      %1112 = vmatprep.subr.bf16.mxu0 0
      %1113 = vmatpush1.bf16.msra.mxu0 0
      %1114 = vmatprep.subr.bf16.mxu0 0
      %1115 = vmatpush1.bf16.msra.mxu0 0
      %1116 = vmatprep.subr.bf16.mxu0 0
      %1117 = vmatpush1.bf16.msra.mxu0 0
      %1118 = vmatprep.subr.bf16.mxu0 0
      %1119 = vmatpush1.bf16.msra.mxu0 0
      %1120 = vmatprep.subr.bf16.mxu0 0
      %1121 = vmatpush1.bf16.msra.mxu0 0
      %1122 = vmatprep.subr.bf16.mxu0 0
      %1123 = vmatpush1.bf16.msra.mxu0 %v1103
      %1124 = vmatprep.subr.bf16.mxu0 0
      %1125 = vmatpush2.bf16.msra.mxu0 0
      %1126 = vmatprep.subr.bf16.mxu0 0
      %1127 = vmatpush2.bf16.msra.mxu0 0
      %1128 = vmatprep.subr.bf16.mxu0 0
      %1129 = vmatpush2.bf16.msra.mxu0 0
      %1130 = vmatprep.subr.bf16.mxu0 0
      %1131 = vmatpush2.bf16.msra.mxu0 0
      %1132 = vmatprep.subr.bf16.mxu0 0
      %1133 = vmatpush2.bf16.msra.mxu0 0
      %1134 = vmatprep.subr.bf16.mxu0 0
      %1135 = vmatpush2.bf16.msra.mxu0 0
      %1136 = vmatprep.subr.bf16.mxu0 0
      %1137 = vmatpush2.bf16.msra.mxu0 0
      %1138 = vmatprep.subr.bf16.mxu0 0
      %1139 = vmatpush2.bf16.msra.mxu0 0
      %1140 = vmatprep.mubr.bf16.mxu0 0
      %1141 = vmatmul.mubr.bf16.gmra.mxu0 %v1106
      %v1142 = vpop.f32.mrf.mxu0
      %v1143 = vadd.f32 0.0, %v1142
      %v1144 = vpop.f32.mrf.mxu0
      %v1145 = vpop.f32.mrf.mxu0
      %v1146 = vadd.f32 0.0, %v1145
      %v1147 = vpop.f32.mrf.mxu0
      %1148 = vdwg.mxu0
      %1153 = vrot.lane.b32.xlu0 %v1095, 8
      %v1154 = vpop.permute.xlu0 %1153
      %1155 = vrot.lane.b32.xlu0 %v1098, 8
      %v1156 = vpop.permute.xlu0 %1155
      %1157 = vrot.lane.b32.xlu0 %v1143, 8
      %v1158 = vpop.permute.xlu0 %1157
      %1159 = vrot.lane.b32.xlu0 %v1146, 8
      %v1160 = vpop.permute.xlu0 %1159
      %vm1165 = vcmask 130112
      %1166 = vst.msk [vmem:[#allocation3] sm:$0xff] %vm1165, %v1154
      %1167 = vst.msk [vmem:[#allocation3 + $0x8] sm:$0xff] %vm1165, %v1156
      %1168 = vst.msk [vmem:[#allocation3 + $0x10] sm:$0xff] %vm1165, %v1158
      %1169 = vst.msk [vmem:[#allocation3 + $0x18] sm:$0xff] %vm1165, %v1160
      %v1170 = vld [vmem:[#allocation3] sm:$0xff]
      %v1171 = vld [vmem:[#allocation3 + $0x8] sm:$0xff]
      %v1172 = vld [vmem:[#allocation3 + $0x10] sm:$0xff]
      %v1173 = vld [vmem:[#allocation3 + $0x18] sm:$0xff]
      %v1174 = vpack.c.bf16 %v1171, %v1170
      %v1175 = vpack.c.bf16 %v1173, %v1172
      %v1176 = vld [vmem:[%s8] sm:$0xf]
      %v1177 = vld [vmem:[%s8 + $0x4] sm:$0xf]
      %v1178 = vld [vmem:[%s9] sm:$0x1]
      %v1180 = vlaneseq
      %v1181 = vshrl.u32 %v1180, 7
      %v1182 = vsub.s32 0, %v1181
      %v1183 = vrot.slane %v1178, %v1182
      %v1187 = vunpack.c.l.b16 %v1176
      %v1188 = vunpack.c.l.b16 %v1177
      %v1189 = vpack.c.b16 %v1188, %v1187
      %v1192 = vsel %vm492, %v1174, 0
      %v1195 = vsel %vm492, %v1175, 0
      %1197 = vmatprep.subr.bf16.mxu0 0
      %1198 = vmatpush1.bf16.msra.mxu0 0
      %1199 = vmatprep.subr.bf16.mxu0 0
      %1200 = vmatpush1.bf16.msra.mxu0 0
      %1201 = vmatprep.subr.bf16.mxu0 0
      %1202 = vmatpush1.bf16.msra.mxu0 0
      %1203 = vmatprep.subr.bf16.mxu0 0
      %1204 = vmatpush1.bf16.msra.mxu0 0
      %1205 = vmatprep.subr.bf16.mxu0 0
      %1206 = vmatpush1.bf16.msra.mxu0 0
      %1207 = vmatprep.subr.bf16.mxu0 0
      %1208 = vmatpush1.bf16.msra.mxu0 0
      %1209 = vmatprep.subr.bf16.mxu0 0
      %1210 = vmatpush1.bf16.msra.mxu0 0
      %1211 = vmatprep.subr.bf16.mxu0 0
      %1212 = vmatpush1.bf16.msra.mxu0 %v1189
      %1213 = vmatprep.subr.bf16.mxu0 0
      %1214 = vmatpush2.bf16.msra.mxu0 0
      %1215 = vmatprep.subr.bf16.mxu0 0
      %1216 = vmatpush2.bf16.msra.mxu0 0
      %1217 = vmatprep.subr.bf16.mxu0 0
      %1218 = vmatpush2.bf16.msra.mxu0 0
      %1219 = vmatprep.subr.bf16.mxu0 0
      %1220 = vmatpush2.bf16.msra.mxu0 0
      %1221 = vmatprep.subr.bf16.mxu0 0
      %1222 = vmatpush2.bf16.msra.mxu0 0
      %1223 = vmatprep.subr.bf16.mxu0 0
      %1224 = vmatpush2.bf16.msra.mxu0 0
      %1225 = vmatprep.subr.bf16.mxu0 0
      %1226 = vmatpush2.bf16.msra.mxu0 0
      %1227 = vmatprep.subr.bf16.mxu0 0
      %1228 = vmatpush2.bf16.msra.mxu0 0
      %1229 = vmatprep.mubr.bf16.mxu0 0
      %1230 = vmatmul.mubr.bf16.gmra.mxu0 %v1192
      %v1231 = vpop.f32.mrf.mxu0
      %v1232 = vadd.f32 %v1183, %v1231
      %v1233 = vpop.f32.mrf.mxu0
      %v1234 = vpop.f32.mrf.mxu0
      %v1235 = vadd.f32 %v1183, %v1234
      %v1236 = vpop.f32.mrf.mxu0
      %1237 = vmatprep.mubr.bf16.mxu0 0
      %1238 = vmatmul.mubr.bf16.gmra.mxu0 %v1195
      %v1239 = vpop.f32.mrf.mxu0
      %v1240 = vadd.f32 %v1183, %v1239
      %v1241 = vpop.f32.mrf.mxu0
      %v1242 = vpop.f32.mrf.mxu0
      %v1243 = vadd.f32 %v1183, %v1242
      %v1244 = vpop.f32.mrf.mxu0
      %1245 = vdwg.mxu0
      %v1246 = vld [vmem:[%s423] sm:$0xf]
      %v1247 = vunpack.c.l.bf16 %v1246
      %v1248 = vadd.f32 %v1232, %v1247
      %v1249 = vpack.c.bf16 %v1248, %v1248
      %vm1250 = vcmask 123904
      %1251 = vst.msk [vmem:[%s433] sm:$0x3] %vm1250, %v1249
      %v1253 = vrot.slane %v1247, 4
      %v1255 = vadd.f32 %v1240, %v1253
      %v1256 = vpack.c.bf16 %v1255, %v1255
      %v1258 = vunpack.c.l.b16 %v1256
      %v1259 = vpack.c.b16 %v1258, %v1258
      %v1260 = vrot.slane %v1259, 6
      %vm1262 = vcmask 125954
      %1263 = vst.msk [vmem:[%s433] sm:$0xc] %vm1262, %v1260
      %s1264 = scalar_lea.vmem %s423, 4
      %v1265 = vld [vmem:[%s1264] sm:$0xf]
      %v1266 = vunpack.c.l.bf16 %v1265
      %v1268 = vrot.slane %v1266, 4
      %v1270 = vadd.f32 %v1232, %v1268
      %v1271 = vpack.c.bf16 %v1270, %v1270
      %v1273 = vunpack.c.l.b16 %v1271
      %v1274 = vpack.c.b16 %v1273, %v1273
      %v1275 = vrot.slane %v1274, 6
      %v1276 = vrot.slane %v1275, 4
      %s1278 = scalar_lea.vmem %s433, 4
      %1279 = vst.msk [vmem:[%s1278] sm:$0x3] %vm1250, %v1276
      %v1280 = vadd.f32 %v1240, %v1266
      %v1281 = vpack.c.bf16 %v1280, %v1280
      %1282 = vst.msk [vmem:[%s1278] sm:$0xc] %vm1262, %v1281
      %s1283 = scalar_lea.vmem %s423, 8
      %v1284 = vld [vmem:[%s1283] sm:$0xf]
      %v1285 = vunpack.c.l.bf16 %v1284
      %v1286 = vadd.f32 %v1235, %v1285
      %v1287 = vpack.c.bf16 %v1286, %v1286
      %s1288 = scalar_lea.vmem %s433, 8
      %1289 = vst.msk [vmem:[%s1288] sm:$0x3] %vm1250, %v1287
      %v1291 = vrot.slane %v1285, 4
      %v1293 = vadd.f32 %v1243, %v1291
      %v1294 = vpack.c.bf16 %v1293, %v1293
      %v1296 = vunpack.c.l.b16 %v1294
      %v1297 = vpack.c.b16 %v1296, %v1296
      %v1298 = vrot.slane %v1297, 6
      %1300 = vst.msk [vmem:[%s1288] sm:$0xc] %vm1262, %v1298
      %s1301 = scalar_lea.vmem %s423, 12
      %v1302 = vld [vmem:[%s1301] sm:$0xf]
      %v1303 = vunpack.c.l.bf16 %v1302
      %v1305 = vrot.slane %v1303, 4
      %v1307 = vadd.f32 %v1235, %v1305
      %v1308 = vpack.c.bf16 %v1307, %v1307
      %v1310 = vunpack.c.l.b16 %v1308
      %v1311 = vpack.c.b16 %v1310, %v1310
      %v1312 = vrot.slane %v1311, 6
      %v1313 = vrot.slane %v1312, 4
      %s1315 = scalar_lea.vmem %s433, 12
      %1316 = vst.msk [vmem:[%s1315] sm:$0x3] %vm1250, %v1313
      %v1317 = vadd.f32 %v1243, %v1303
      %v1318 = vpack.c.bf16 %v1317, %v1317
      %1319 = vst.msk [vmem:[%s1315] sm:$0xc] %vm1262, %v1318
      %s1320 = smul.u32 4, %s26
      %p1321 = scmp.lt.s32.totalorder %s25, 1
      %s1322 = scalar_select %p1321, %s25, 1
      %p1323 = scmp.lt.s32.totalorder %s1320, 7
      %s1324 = scalar_select %p1323, %s1320, 7
      %s1325 = smul.addr %s1322, 8
      %s1326 = sadd.s32 %s1324, %s1325
      %s1327 = smul.addr %s1326, 4
      %s1328 = scalar_lea.vmem %s10, %s1327
      // Predicated region
      $region61: #{cct_block_forward.5} parent=59 // pred_check
        %p1329 = pneg %p277
      $region62: #{cct_block_forward.5} parent=59 // pred_check_branch
        %1331 = sbr.rel (%p1329) target = $region64
      $region63: #{cct_block_forward.5} parent=59 // pred_region
        %s1332 = smul.u32 4, %s26
      $region64: #{cct_block_forward.5} parent=59 // pred_fallthru
        _
    $region60: #{cct_block_forward.5} parent=5 // pred_fallthru
      _
    %p1333 = scmp.le.s32.totalorder 2, %s16
    // Predicated region
    $region65: #{cct_block_forward.5} parent=5 // pred_check
      %p1334 = pneg %p1333
    $region66: #{cct_block_forward.5} parent=5 // pred_check_branch
      %1336 = sbr.rel (%p1334) target = $region68
    $region67: #{cct_block_forward.5} parent=5 // pred_region
      %s1337 = ssub.s32 %s16, 2
      // Predicated region
      $region69: #{cct_block_forward.5} parent=67 // pred_check
        %p1338 = pneg %p283
      $region70: #{cct_block_forward.5} parent=67 // pred_check_branch
        %1340 = sbr.rel (%p1338) target = $region72
      $region71: #{cct_block_forward.5} parent=67 // pred_region
        %s1341 = smul.u32 4, %s28
        %p1342 = scmp.lt.s32.totalorder %s27, 1
        %s1343 = scalar_select %p1342, %s27, 1
        %p1344 = scmp.lt.s32.totalorder %s1341, 7
        %s1345 = scalar_select %p1344, %s1341, 7
        %s1346 = smul.addr %s1343, 8
        %s1347 = sadd.s32 %s1345, %s1346
        %s1348 = smul.addr %s1347, 4
        %s1349 = scalar_lea.vmem %s10, %s1348
      $region72: #{cct_block_forward.5} parent=67 // pred_fallthru
        _
    $region68: #{cct_block_forward.5} parent=5 // pred_fallthru
      _
  $region6: #{cct_block_forward.5} parent=0 // loop_footer
    %s20 = sadd.s32 1, %s16
  $region7: #{cct_block_forward.5} parent=0 // loop_footer_branch
    %15 = sbr.rel target = $region3
  $region8: #{cct_block_forward.5} parent=0 // loop_exit
    _

// kernel: cct_block_forward.3
$region0: #{cct_block_forward.3}
  #allocation0 [shape = 'u32[]', space=smem, size = 0x4, offset = 0x4, fixed_abs, tag = 'smem constant byte address 0x4 - core index']
  #allocation1 [shape = 'u32[144,128]{1,0:T(1,128)}', space=vmem, size = 0x12000, scoped, tag = 'internal scratch']
  #allocation2 [shape = 'f32[14,14,16]{2,1,0:T(8,128)}', space=vmem, size = 0x1c000, scoped, tag = 'scratch operand']
  %s0 = inlined_call_operand.vmem [shape: f32[2,8,8,16], index: 0, kind: input, shape index: {}]
  %s1 = inlined_call_operand.vmem [shape: f32[7,7,16], index: 1, kind: input, shape index: {}]
  %s2 = inlined_call_operand.vmem [shape: f32[1,16], index: 2, kind: input, shape index: {}]
  %s3 = inlined_call_operand.vmem [shape: f32[1,16], index: 3, kind: input, shape index: {}]
  %s4 = inlined_call_operand.vmem [shape: f32[1,16], index: 4, kind: input, shape index: {}]
  %s5 = inlined_call_operand.vmem [shape: bf16[16,64], index: 5, kind: input, shape index: {}]
  %s6 = inlined_call_operand.vmem [shape: f32[1,64], index: 6, kind: input, shape index: {}]
  %s7 = inlined_call_operand.vmem [shape: bf16[64,16], index: 7, kind: input, shape index: {}]
  %s8 = inlined_call_operand.vmem [shape: f32[1,16], index: 8, kind: input, shape index: {}]
  %s9 = inlined_call_operand.vmem [shape: bf16[2,8,8,16], index: 9, kind: output, shape index: {0}]
  %s10 = inlined_call_operand.vmem [shape: f32[2,1,16], index: 10, kind: output, shape index: {1}]
  %s11 = inlined_call_operand.vmem [shape: f32[2,1,16], index: 11, kind: output, shape index: {2}]
  %12 = xla_tuple %s9, %s10, %s11
  %s13 = sld [smem:[#allocation0]]
  $region92: #{cct_block_forward.3} parent=0
    _
  %s15 = ssub.s32 1, %s13
  %s16 = scalar_select 0, %s15, %s13
  loop: start=0, step=1, limit=4
  $region2: #{cct_block_forward.3} parent=0 // loop_pre_header
    _
  $region3: #{cct_block_forward.3} parent=0 // loop_header
    %s18 = sphi 0, %s22
    %p19 = scmp.ge.s32.totalorder %s18, 4
    %s28 = sphi 0, %s30
    %s31 = sphi 0, %s28
    %s32 = sphi 0, %s31
    %s48 = sphi 0, %s32
    %s52 = sphi 0, %s52
    %s54 = sphi 0, %s52
    %s55 = sphi 0, %s54
    %s69 = sphi 0, %s55
    %s73 = sphi 0, %s73
    %s75 = sphi 0, %s73
    %s76 = sphi 0, %s75
    %s90 = sphi 0, %s76
    %s94 = sphi 0, %s94
    %s96 = sphi 0, %s94
    %s97 = sphi 0, %s96
    %s111 = sphi 0, %s97
    %s115 = sphi 0, %s115
    %s117 = sphi 0, %s115
    %s118 = sphi 0, %s117
    %s132 = sphi 0, %s118
    %s136 = sphi 0, %s136
    %s138 = sphi 0, %s136
    %s139 = sphi 0, %s138
    %s153 = sphi 0, %s139
    %s157 = sphi 0, %s157
    %s159 = sphi 0, %s157
    %s160 = sphi 0, %s159
    %s174 = sphi 0, %s160
    %s178 = sphi 0, %s178
    %s180 = sphi 0, %s178
    %s181 = sphi 0, %s180
    %s195 = sphi 0, %s181
    %s199 = sphi 0, %s199
    %s201 = sphi 0, %s199
    %s202 = sphi 0, %s201
    %s216 = sphi 0, %s202
    %s222 = sphi 0, %s224
    %s225 = sphi 0, %s222
    %s226 = sphi 0, %s225
    %s242 = sphi 0, %s226
    %s248 = sphi 0, %s250
    %s251 = sphi 0, %s248
    %s252 = sphi 0, %s251
    %s268 = sphi 0, %s252
    %s274 = sphi 0, %s276
    %s277 = sphi 0, %s274
    %s278 = sphi 0, %s277
    %s294 = sphi 0, %s278
  $region4: #{cct_block_forward.3} parent=0 // loop_header_branch
    %21 = sbr.rel (%p19) target = $region8
  $region5: #{cct_block_forward.3} parent=0 // loop_body
    %s23 = ssub.s32 %s18, 1
    %s24 = ssub.s32 %s18, 2
    %s25 = sadd.s32 %s18, 1
    %s26 = ssub.s32 %s18, %s25
    %p27 = scmp.eq.s32.totalorder %s26, 0
    %s29 = sadd.s32 %s28, 1
    %s30 = scalar_select %p27, %s28, %s29
    %p33 = pneg %p27
    %p34 = scmp.eq.s32.totalorder %s18, 1
    %p35 = por %p33, %p34
    %p36 = scmp.ne.s32.totalorder %s28, %s31
    %p37 = scmp.eq.s32.totalorder %s18, 0
    %p38 = por %p36, %p37
    %p39 = scmp.ne.s32.totalorder %s28, %s31
    %p40 = scmp.eq.s32.totalorder %s23, 1
    %p41 = por %p39, %p40
    %p42 = scmp.ne.s32.totalorder %s31, %s32
    %p43 = scmp.eq.s32.totalorder %s23, 0
    %p44 = por %p42, %p43
    %p45 = scmp.ne.s32.totalorder %s31, %s32
    %p46 = scmp.eq.s32.totalorder %s24, 1
    %p47 = por %p45, %p46
    %p49 = scmp.ne.s32.totalorder %s32, %s48
    %p50 = scmp.eq.s32.totalorder %s24, 0
    %p51 = por %p49, %p50
    %s53 = sadd.s32 %s52, 1
    %p56 = scmp.eq.s32.totalorder %s18, 1
    %p57 = scmp.ne.s32.totalorder %s52, %s54
    %p58 = scmp.eq.s32.totalorder %s18, 0
    %p59 = por %p57, %p58
    %p60 = scmp.ne.s32.totalorder %s52, %s54
    %p61 = scmp.eq.s32.totalorder %s23, 1
    %p62 = por %p60, %p61
    %p63 = scmp.ne.s32.totalorder %s54, %s55
    %p64 = scmp.eq.s32.totalorder %s23, 0
    %p65 = por %p63, %p64
    %p66 = scmp.ne.s32.totalorder %s54, %s55
    %p67 = scmp.eq.s32.totalorder %s24, 1
    %p68 = por %p66, %p67
    %p70 = scmp.ne.s32.totalorder %s55, %s69
    %p71 = scmp.eq.s32.totalorder %s24, 0
    %p72 = por %p70, %p71
    %s74 = sadd.s32 %s73, 1
    %p77 = scmp.eq.s32.totalorder %s18, 1
    %p78 = scmp.ne.s32.totalorder %s73, %s75
    %p79 = scmp.eq.s32.totalorder %s18, 0
    %p80 = por %p78, %p79
    %p81 = scmp.ne.s32.totalorder %s73, %s75
    %p82 = scmp.eq.s32.totalorder %s23, 1
    %p83 = por %p81, %p82
    %p84 = scmp.ne.s32.totalorder %s75, %s76
    %p85 = scmp.eq.s32.totalorder %s23, 0
    %p86 = por %p84, %p85
    %p87 = scmp.ne.s32.totalorder %s75, %s76
    %p88 = scmp.eq.s32.totalorder %s24, 1
    %p89 = por %p87, %p88
    %p91 = scmp.ne.s32.totalorder %s76, %s90
    %p92 = scmp.eq.s32.totalorder %s24, 0
    %p93 = por %p91, %p92
    %s95 = sadd.s32 %s94, 1
    %p98 = scmp.eq.s32.totalorder %s18, 1
    %p99 = scmp.ne.s32.totalorder %s94, %s96
    %p100 = scmp.eq.s32.totalorder %s18, 0
    %p101 = por %p99, %p100
    %p102 = scmp.ne.s32.totalorder %s94, %s96
    %p103 = scmp.eq.s32.totalorder %s23, 1
    %p104 = por %p102, %p103
    %p105 = scmp.ne.s32.totalorder %s96, %s97
    %p106 = scmp.eq.s32.totalorder %s23, 0
    %p107 = por %p105, %p106
    %p108 = scmp.ne.s32.totalorder %s96, %s97
    %p109 = scmp.eq.s32.totalorder %s24, 1
    %p110 = por %p108, %p109
    %p112 = scmp.ne.s32.totalorder %s97, %s111
    %p113 = scmp.eq.s32.totalorder %s24, 0
    %p114 = por %p112, %p113
    %s116 = sadd.s32 %s115, 1
    %p119 = scmp.eq.s32.totalorder %s18, 1
    %p120 = scmp.ne.s32.totalorder %s115, %s117
    %p121 = scmp.eq.s32.totalorder %s18, 0
    %p122 = por %p120, %p121
    %p123 = scmp.ne.s32.totalorder %s115, %s117
    %p124 = scmp.eq.s32.totalorder %s23, 1
    %p125 = por %p123, %p124
    %p126 = scmp.ne.s32.totalorder %s117, %s118
    %p127 = scmp.eq.s32.totalorder %s23, 0
    %p128 = por %p126, %p127
    %p129 = scmp.ne.s32.totalorder %s117, %s118
    %p130 = scmp.eq.s32.totalorder %s24, 1
    %p131 = por %p129, %p130
    %p133 = scmp.ne.s32.totalorder %s118, %s132
    %p134 = scmp.eq.s32.totalorder %s24, 0
    %p135 = por %p133, %p134
    %s137 = sadd.s32 %s136, 1
    %p140 = scmp.eq.s32.totalorder %s18, 1
    %p141 = scmp.ne.s32.totalorder %s136, %s138
    %p142 = scmp.eq.s32.totalorder %s18, 0
    %p143 = por %p141, %p142
    %p144 = scmp.ne.s32.totalorder %s136, %s138
    %p145 = scmp.eq.s32.totalorder %s23, 1
    %p146 = por %p144, %p145
    %p147 = scmp.ne.s32.totalorder %s138, %s139
    %p148 = scmp.eq.s32.totalorder %s23, 0
    %p149 = por %p147, %p148
    %p150 = scmp.ne.s32.totalorder %s138, %s139
    %p151 = scmp.eq.s32.totalorder %s24, 1
    %p152 = por %p150, %p151
    %p154 = scmp.ne.s32.totalorder %s139, %s153
    %p155 = scmp.eq.s32.totalorder %s24, 0
    %p156 = por %p154, %p155
    %s158 = sadd.s32 %s157, 1
    %p161 = scmp.eq.s32.totalorder %s18, 1
    %p162 = scmp.ne.s32.totalorder %s157, %s159
    %p163 = scmp.eq.s32.totalorder %s18, 0
    %p164 = por %p162, %p163
    %p165 = scmp.ne.s32.totalorder %s157, %s159
    %p166 = scmp.eq.s32.totalorder %s23, 1
    %p167 = por %p165, %p166
    %p168 = scmp.ne.s32.totalorder %s159, %s160
    %p169 = scmp.eq.s32.totalorder %s23, 0
    %p170 = por %p168, %p169
    %p171 = scmp.ne.s32.totalorder %s159, %s160
    %p172 = scmp.eq.s32.totalorder %s24, 1
    %p173 = por %p171, %p172
    %p175 = scmp.ne.s32.totalorder %s160, %s174
    %p176 = scmp.eq.s32.totalorder %s24, 0
    %p177 = por %p175, %p176
    %s179 = sadd.s32 %s178, 1
    %p182 = scmp.eq.s32.totalorder %s18, 1
    %p183 = scmp.ne.s32.totalorder %s178, %s180
    %p184 = scmp.eq.s32.totalorder %s18, 0
    %p185 = por %p183, %p184
    %p186 = scmp.ne.s32.totalorder %s178, %s180
    %p187 = scmp.eq.s32.totalorder %s23, 1
    %p188 = por %p186, %p187
    %p189 = scmp.ne.s32.totalorder %s180, %s181
    %p190 = scmp.eq.s32.totalorder %s23, 0
    %p191 = por %p189, %p190
    %p192 = scmp.ne.s32.totalorder %s180, %s181
    %p193 = scmp.eq.s32.totalorder %s24, 1
    %p194 = por %p192, %p193
    %p196 = scmp.ne.s32.totalorder %s181, %s195
    %p197 = scmp.eq.s32.totalorder %s24, 0
    %p198 = por %p196, %p197
    %s200 = sadd.s32 %s199, 1
    %p203 = scmp.eq.s32.totalorder %s18, 1
    %p204 = scmp.ne.s32.totalorder %s199, %s201
    %p205 = scmp.eq.s32.totalorder %s18, 0
    %p206 = por %p204, %p205
    %p207 = scmp.ne.s32.totalorder %s199, %s201
    %p208 = scmp.eq.s32.totalorder %s23, 1
    %p209 = por %p207, %p208
    %p210 = scmp.ne.s32.totalorder %s201, %s202
    %p211 = scmp.eq.s32.totalorder %s23, 0
    %p212 = por %p210, %p211
    %p213 = scmp.ne.s32.totalorder %s201, %s202
    %p214 = scmp.eq.s32.totalorder %s24, 1
    %p215 = por %p213, %p214
    %p217 = scmp.ne.s32.totalorder %s202, %s216
    %p218 = scmp.eq.s32.totalorder %s24, 0
    %p219 = por %p217, %p218
    %s220 = ssub.s32 %s18, %s25
    %p221 = scmp.eq.s32.totalorder %s220, 0
    %s223 = sadd.s32 %s222, 1
    %s224 = scalar_select %p221, %s222, %s223
    %p227 = pneg %p221
    %p228 = scmp.eq.s32.totalorder %s18, 1
    %p229 = por %p227, %p228
    %p230 = scmp.ne.s32.totalorder %s222, %s225
    %p231 = scmp.eq.s32.totalorder %s18, 0
    %p232 = por %p230, %p231
    %p233 = scmp.ne.s32.totalorder %s222, %s225
    %p234 = scmp.eq.s32.totalorder %s23, 1
    %p235 = por %p233, %p234
    %p236 = scmp.ne.s32.totalorder %s225, %s226
    %p237 = scmp.eq.s32.totalorder %s23, 0
    %p238 = por %p236, %p237
    %p239 = scmp.ne.s32.totalorder %s225, %s226
    %p240 = scmp.eq.s32.totalorder %s24, 1
    %p241 = por %p239, %p240
    %p243 = scmp.ne.s32.totalorder %s226, %s242
    %p244 = scmp.eq.s32.totalorder %s24, 0
    %p245 = por %p243, %p244
    %s246 = ssub.s32 %s18, %s25
    %p247 = scmp.eq.s32.totalorder %s246, 0
    %s249 = sadd.s32 %s248, 1
    %s250 = scalar_select %p247, %s248, %s249
    %p253 = pneg %p247
    %p254 = scmp.eq.s32.totalorder %s18, 1
    %p255 = por %p253, %p254
    %p256 = scmp.ne.s32.totalorder %s248, %s251
    %p257 = scmp.eq.s32.totalorder %s18, 0
    %p258 = por %p256, %p257
    %p259 = scmp.ne.s32.totalorder %s248, %s251
    %p260 = scmp.eq.s32.totalorder %s23, 1
    %p261 = por %p259, %p260
    %p262 = scmp.ne.s32.totalorder %s251, %s252
    %p263 = scmp.eq.s32.totalorder %s23, 0
    %p264 = por %p262, %p263
    %p265 = scmp.ne.s32.totalorder %s251, %s252
    %p266 = scmp.eq.s32.totalorder %s24, 1
    %p267 = por %p265, %p266
    %p269 = scmp.ne.s32.totalorder %s252, %s268
    %p270 = scmp.eq.s32.totalorder %s24, 0
    %p271 = por %p269, %p270
    %s272 = ssub.s32 %s18, %s25
    %p273 = scmp.eq.s32.totalorder %s272, 0
    %s275 = sadd.s32 %s274, 1
    %s276 = scalar_select %p273, %s274, %s275
    %p279 = pneg %p273
    %p280 = scmp.eq.s32.totalorder %s18, 1
    %p281 = por %p279, %p280
    %p282 = scmp.ne.s32.totalorder %s274, %s277
    %p283 = scmp.eq.s32.totalorder %s18, 0
    %p284 = por %p282, %p283
    %p285 = scmp.ne.s32.totalorder %s274, %s277
    %p286 = scmp.eq.s32.totalorder %s23, 1
    %p287 = por %p285, %p286
    %p288 = scmp.ne.s32.totalorder %s277, %s278
    %p289 = scmp.eq.s32.totalorder %s23, 0
    %p290 = por %p288, %p289
    %p291 = scmp.ne.s32.totalorder %s277, %s278
    %p292 = scmp.eq.s32.totalorder %s24, 1
    %p293 = por %p291, %p292
    %p295 = scmp.ne.s32.totalorder %s278, %s294
    %p296 = scmp.eq.s32.totalorder %s24, 0
    %p297 = por %p295, %p296
    %p298 = scmp.le.s32.totalorder 1, %s18
    %p299 = scmp.lt.s32.totalorder %s18, 3
    %p300 = pnand %p298, %p299
    %p301 = pneg %p300
    // Predicated region
    $region9: #{cct_block_forward.3} parent=5 // pred_check
      _
    $region10: #{cct_block_forward.3} parent=5 // pred_check_branch
      %303 = sbr.rel (%p300) target = $region12
    $region11: #{cct_block_forward.3} parent=5 // pred_region
      %s304 = ssub.s32 %s18, 1
      // Predicated region
      $region13: #{cct_block_forward.3} parent=11 // pred_check
        %p305 = pneg %p65
      $region14: #{cct_block_forward.3} parent=11 // pred_check_branch
        %307 = sbr.rel (%p305) target = $region16
      $region15: #{cct_block_forward.3} parent=11 // pred_region
        _
      $region16: #{cct_block_forward.3} parent=11 // pred_fallthru
        _
      // Predicated region
      $region17: #{cct_block_forward.3} parent=11 // pred_check
        %p308 = pneg %p86
      $region18: #{cct_block_forward.3} parent=11 // pred_check_branch
        %310 = sbr.rel (%p308) target = $region20
      $region19: #{cct_block_forward.3} parent=11 // pred_region
        _
      $region20: #{cct_block_forward.3} parent=11 // pred_fallthru
        _
      // Predicated region
      $region21: #{cct_block_forward.3} parent=11 // pred_check
        %p311 = pneg %p107
      $region22: #{cct_block_forward.3} parent=11 // pred_check_branch
        %313 = sbr.rel (%p311) target = $region24
      $region23: #{cct_block_forward.3} parent=11 // pred_region
        _
      $region24: #{cct_block_forward.3} parent=11 // pred_fallthru
        _
      // Predicated region
      $region25: #{cct_block_forward.3} parent=11 // pred_check
        %p314 = pneg %p128
      $region26: #{cct_block_forward.3} parent=11 // pred_check_branch
        %316 = sbr.rel (%p314) target = $region28
      $region27: #{cct_block_forward.3} parent=11 // pred_region
        _
      $region28: #{cct_block_forward.3} parent=11 // pred_fallthru
        _
      // Predicated region
      $region29: #{cct_block_forward.3} parent=11 // pred_check
        %p317 = pneg %p149
      $region30: #{cct_block_forward.3} parent=11 // pred_check_branch
        %319 = sbr.rel (%p317) target = $region32
      $region31: #{cct_block_forward.3} parent=11 // pred_region
        _
      $region32: #{cct_block_forward.3} parent=11 // pred_fallthru
        _
      // Predicated region
      $region33: #{cct_block_forward.3} parent=11 // pred_check
        %p320 = pneg %p170
      $region34: #{cct_block_forward.3} parent=11 // pred_check_branch
        %322 = sbr.rel (%p320) target = $region36
      $region35: #{cct_block_forward.3} parent=11 // pred_region
        _
      $region36: #{cct_block_forward.3} parent=11 // pred_fallthru
        _
      // Predicated region
      $region37: #{cct_block_forward.3} parent=11 // pred_check
        %p323 = pneg %p191
      $region38: #{cct_block_forward.3} parent=11 // pred_check_branch
        %325 = sbr.rel (%p323) target = $region40
      $region39: #{cct_block_forward.3} parent=11 // pred_region
        _
      $region40: #{cct_block_forward.3} parent=11 // pred_fallthru
        _
      // Predicated region
      $region41: #{cct_block_forward.3} parent=11 // pred_check
        %p326 = pneg %p212
      $region42: #{cct_block_forward.3} parent=11 // pred_check_branch
        %328 = sbr.rel (%p326) target = $region44
      $region43: #{cct_block_forward.3} parent=11 // pred_region
        _
      $region44: #{cct_block_forward.3} parent=11 // pred_fallthru
        _
    $region12: #{cct_block_forward.3} parent=5 // pred_fallthru
      _
    %p329 = scmp.lt.s32.totalorder %s18, 2
    // Predicated region
    $region45: #{cct_block_forward.3} parent=5 // pred_check
      %p330 = pneg %p329
    $region46: #{cct_block_forward.3} parent=5 // pred_check_branch
      %332 = sbr.rel (%p330) target = $region48
    $region47: #{cct_block_forward.3} parent=5 // pred_region
      // Predicated region
      $region49: #{cct_block_forward.3} parent=47 // pred_check
        %p333 = pneg %p38
      $region50: #{cct_block_forward.3} parent=47 // pred_check_branch
        %335 = sbr.rel (%p333) target = $region52
      $region51: #{cct_block_forward.3} parent=47 // pred_region
        %p336 = scmp.lt.s32.totalorder %s18, 1
        %s337 = scalar_select %p336, %s18, 1
        %s338 = smul.addr %s337, 8
        %s339 = smul.addr %s338, 8
        %s340 = scalar_lea.vmem %s0, %s339
      $region52: #{cct_block_forward.3} parent=47 // pred_fallthru
        _
    $region48: #{cct_block_forward.3} parent=5 // pred_fallthru
      _
    %p341 = scmp.le.s32.totalorder 1, %s18
    %p342 = scmp.lt.s32.totalorder %s18, 3
    %p343 = pnand %p341, %p342
    %p344 = pneg %p343
    // Predicated region
    $region53: #{cct_block_forward.3} parent=5 // pred_check
      _
    $region54: #{cct_block_forward.3} parent=5 // pred_check_branch
      %346 = sbr.rel (%p343) target = $region56
    $region55: #{cct_block_forward.3} parent=5 // pred_region
      %s347 = ssub.s32 %s18, 1
      %p348 = scmp.lt.s32.totalorder %s23, 1
      %s349 = scalar_select %p348, %s23, 1
      %s350 = smul.addr %s349, 8
      %s351 = smul.addr %s350, 8
      %s352 = scalar_lea.vmem %s0, %s351
      %p353 = pneg %p44
      %p354 = pneg %p41
      %p355 = pneg %p65
      %p356 = pneg %p62
      %p357 = pneg %p86
      %p358 = pneg %p83
      %p359 = pneg %p107
      %p360 = pneg %p104
      %p361 = pneg %p128
      %p362 = pneg %p125
      %p363 = pneg %p149
      %p364 = pneg %p146
      %p365 = pneg %p170
      %p366 = pneg %p167
      %p367 = pneg %p191
      %p368 = pneg %p188
      %p369 = pneg %p212
      %p370 = pneg %p209
      %p371 = pneg %p238
      %p372 = pneg %p235
      %p373 = scmp.lt.s32.totalorder %s23, 1
      %s374 = scalar_select %p373, %s23, 1
      %s375 = smul.addr %s374, 8
      %s376 = smul.addr %s375, 4
      %s377 = scalar_lea.vmem %s9, %s376
      %p378 = pneg %p264
      %p379 = pneg %p261
      %p380 = scmp.lt.s32.totalorder %s23, 1
      %s381 = scalar_select %p380, %s23, 1
      %s382 = scalar_lea.vmem %s10, %s381
      %p383 = pneg %p290
      %p384 = pneg %p287
      %p385 = scmp.lt.s32.totalorder %s23, 1
      %s386 = scalar_select %p385, %s23, 1
      %s387 = scalar_lea.vmem %s11, %s386
      %p388 = scmp.lt.s32.totalorder %s23, 1
      %s389 = scalar_select %p388, %s23, 1
      %s390 = smul.addr %s389, 8
      %s391 = smul.addr %s390, 8
      %s392 = scalar_lea.vmem %s0, %s391
      %p393 = scmp.lt.s32.totalorder %s23, 1
      %s394 = scalar_select %p393, %s23, 1
      %s395 = smul.addr %s394, 8
      %s396 = smul.addr %s395, 4
      %s397 = scalar_lea.vmem %s9, %s396
      %p398 = scmp.lt.s32.totalorder %s23, 1
      %s399 = scalar_select %p398, %s23, 1
      %s400 = scalar_lea.vmem %s10, %s399
      %p401 = scmp.lt.s32.totalorder %s23, 1
      %s402 = scalar_select %p401, %s23, 1
      %s403 = scalar_lea.vmem %s11, %s402
      %vm405 = vcmask 130048
      %406 = vst.msk [vmem:[#allocation2] sm:$0xff] %vm405, 0.0
      %vm407 = vcmask 128000
      %408 = vst.msk [vmem:[#allocation2 + $0x8] sm:$0x3f] %vm407, 0.0
      %409 = vst.msk [vmem:[#allocation2 + $0x10] sm:$0xff] %vm405, 0.0
      %410 = vst.msk [vmem:[#allocation2 + $0x18] sm:$0x3f] %vm407, 0.0
      %411 = vst.msk [vmem:[#allocation2 + $0x20] sm:$0xff] %vm405, 0.0
      %412 = vst.msk [vmem:[#allocation2 + $0x28] sm:$0x3f] %vm407, 0.0
      %413 = vst.msk [vmem:[#allocation2 + $0x30] sm:$0xff] %vm405, 0.0
      %414 = vst.msk [vmem:[#allocation2 + $0x38] sm:$0x3f] %vm407, 0.0
      %415 = vst.msk [vmem:[#allocation2 + $0x40] sm:$0xff] %vm405, 0.0
      %416 = vst.msk [vmem:[#allocation2 + $0x48] sm:$0x3f] %vm407, 0.0
      %417 = vst.msk [vmem:[#allocation2 + $0x50] sm:$0xff] %vm405, 0.0
      %418 = vst.msk [vmem:[#allocation2 + $0x58] sm:$0x3f] %vm407, 0.0
      %419 = vst.msk [vmem:[#allocation2 + $0x60] sm:$0xff] %vm405, 0.0
      %420 = vst.msk [vmem:[#allocation2 + $0x68] sm:$0x3f] %vm407, 0.0
      %421 = vst.msk [vmem:[#allocation2 + $0x70] sm:$0xff] %vm405, 0.0
      %422 = vst.msk [vmem:[#allocation2 + $0x78] sm:$0x3f] %vm407, 0.0
      %423 = vst.msk [vmem:[#allocation2 + $0x80] sm:$0xff] %vm405, 0.0
      %424 = vst.msk [vmem:[#allocation2 + $0x88] sm:$0x3f] %vm407, 0.0
      %425 = vst.msk [vmem:[#allocation2 + $0x90] sm:$0xff] %vm405, 0.0
      %426 = vst.msk [vmem:[#allocation2 + $0x98] sm:$0x3f] %vm407, 0.0
      %427 = vst.msk [vmem:[#allocation2 + $0xa0] sm:$0xff] %vm405, 0.0
      %428 = vst.msk [vmem:[#allocation2 + $0xa8] sm:$0x3f] %vm407, 0.0
      %429 = vst.msk [vmem:[#allocation2 + $0xb0] sm:$0xff] %vm405, 0.0
      %430 = vst.msk [vmem:[#allocation2 + $0xb8] sm:$0x3f] %vm407, 0.0
      %431 = vst.msk [vmem:[#allocation2 + $0xc0] sm:$0xff] %vm405, 0.0
      %432 = vst.msk [vmem:[#allocation2 + $0xc8] sm:$0x3f] %vm407, 0.0
      %433 = vst.msk [vmem:[#allocation2 + $0xd0] sm:$0xff] %vm405, 0.0
      %434 = vst.msk [vmem:[#allocation2 + $0xd8] sm:$0x3f] %vm407, 0.0
      %v435 = vld [vmem:[%s392] sm:$0xff]
      %v436 = vld [vmem:[%s392 + $0x8] sm:$0xff]
      %v437 = vld [vmem:[%s392 + $0x10] sm:$0xff]
      %v438 = vld [vmem:[%s392 + $0x18] sm:$0xff]
      %v439 = vld [vmem:[%s392 + $0x20] sm:$0xff]
      %v440 = vld [vmem:[%s392 + $0x28] sm:$0xff]
      %v441 = vld [vmem:[%s392 + $0x30] sm:$0xff]
      %v442 = vld [vmem:[%s392 + $0x38] sm:$0xff]
      %s443 = scalar_lea.vmem [#allocation2], 48
      %444 = vst.msk [vmem:[%s443 + $0x3] sm:$0xff] %vm405, %v435
      %445 = vst.msk [vmem:[%s443 + $0x13] sm:$0xff] %vm405, %v436
      %446 = vst.msk [vmem:[%s443 + $0x23] sm:$0xff] %vm405, %v437
      %447 = vst.msk [vmem:[%s443 + $0x33] sm:$0xff] %vm405, %v438
      %448 = vst.msk [vmem:[%s443 + $0x43] sm:$0xff] %vm405, %v439
      %449 = vst.msk [vmem:[%s443 + $0x53] sm:$0xff] %vm405, %v440
      %450 = vst.msk [vmem:[%s443 + $0x63] sm:$0xff] %vm405, %v441
      %451 = vst.msk [vmem:[%s443 + $0x73] sm:$0xff] %vm405, %v442
      loop: start=0, step=1, limit=7
      $region57: #{cct_block_forward.3} parent=55 // loop_pre_header
        _
      $region58: #{cct_block_forward.3} parent=55 // loop_header
        %s453 = sphi 0, %s457
        %p454 = scmp.ge.s32.totalorder %s453, 7
        %v458 = vphi 0.0, %v621
        %v459 = vphi 0.0, %v622
        %v460 = vphi 0.0, %v623
        %v461 = vphi 0.0, %v624
        %v462 = vphi 0.0, %v625
        %v463 = vphi 0.0, %v626
        %v464 = vphi 0.0, %v627
        %v465 = vphi 0.0, %v628
      $region59: #{cct_block_forward.3} parent=55 // loop_header_branch
        %456 = sbr.rel (%p454) target = $region63
      $region60: #{cct_block_forward.3} parent=55 // loop_body
        %s466 = scalar_lea.vmem [#allocation2], %s453
        %v467 = vld [vmem:[%s466] sm:$0xff]
        %v468 = vld [vmem:[%s466 + $0x10] sm:$0xff]
        %v469 = vld [vmem:[%s466 + $0x20] sm:$0xff]
        %v470 = vld [vmem:[%s466 + $0x30] sm:$0xff]
        %v471 = vld [vmem:[%s466 + $0x40] sm:$0xff]
        %v472 = vld [vmem:[%s466 + $0x50] sm:$0xff]
        %v473 = vld [vmem:[%s466 + $0x60] sm:$0xff]
        %v474 = vld [vmem:[%s466 + $0x70] sm:$0xff]
        %v475 = vld [vmem:[%s466 + $0x80] sm:$0xff]
        %v476 = vld [vmem:[%s466 + $0x90] sm:$0xff]
        %v477 = vld [vmem:[%s466 + $0xa0] sm:$0xff]
        %v478 = vld [vmem:[%s466 + $0xb0] sm:$0xff]
        %v479 = vld [vmem:[%s466 + $0xc0] sm:$0xff]
        %v480 = vld [vmem:[%s466 + $0xd0] sm:$0xff]
        %s481 = scalar_lea.vmem %s1, %s453
        %v482 = vld [vmem:[%s481] sm:$0x1]
        %v483 = vld [vmem:[%s481 + $0x8] sm:$0x1]
        %v484 = vld [vmem:[%s481 + $0x10] sm:$0x1]
        %v485 = vld [vmem:[%s481 + $0x18] sm:$0x1]
        %v486 = vld [vmem:[%s481 + $0x20] sm:$0x1]
        %v487 = vld [vmem:[%s481 + $0x28] sm:$0x1]
        %v488 = vld [vmem:[%s481 + $0x30] sm:$0x1]
        %v489 = vlaneseq
        %v490 = vshrl.u32 %v489, 7
        %v491 = vsub.s32 0, %v490
        %v492 = vrot.slane %v482, %v491
        %v493 = vmul.f32 %v467, %v492
        %v494 = vmul.f32 %v468, %v492
        %v495 = vmul.f32 %v469, %v492
        %v496 = vmul.f32 %v470, %v492
        %v497 = vmul.f32 %v471, %v492
        %v498 = vmul.f32 %v472, %v492
        %v499 = vmul.f32 %v473, %v492
        %v500 = vmul.f32 %v474, %v492
        %v501 = vadd.f32 %v458, %v493
        %v502 = vadd.f32 %v459, %v494
        %v503 = vadd.f32 %v460, %v495
        %v504 = vadd.f32 %v461, %v496
        %v505 = vadd.f32 %v462, %v497
        %v506 = vadd.f32 %v463, %v498
        %v507 = vadd.f32 %v464, %v499
        %v508 = vadd.f32 %v465, %v500
        %v509 = vlaneseq
        %v510 = vshrl.u32 %v509, 7
        %v511 = vsub.s32 0, %v510
        %v512 = vrot.slane %v483, %v511
        %v513 = vmul.f32 %v468, %v512
        %v514 = vmul.f32 %v469, %v512
        %v515 = vmul.f32 %v470, %v512
        %v516 = vmul.f32 %v471, %v512
        %v517 = vmul.f32 %v472, %v512
        %v518 = vmul.f32 %v473, %v512
        %v519 = vmul.f32 %v474, %v512
        %v520 = vmul.f32 %v475, %v512
        %v521 = vadd.f32 %v501, %v513
        %v522 = vadd.f32 %v502, %v514
        %v523 = vadd.f32 %v503, %v515
        %v524 = vadd.f32 %v504, %v516
        %v525 = vadd.f32 %v505, %v517
        %v526 = vadd.f32 %v506, %v518
        %v527 = vadd.f32 %v507, %v519
        %v528 = vadd.f32 %v508, %v520
        %v529 = vlaneseq
        %v530 = vshrl.u32 %v529, 7
        %v531 = vsub.s32 0, %v530
        %v532 = vrot.slane %v484, %v531
        %v533 = vmul.f32 %v469, %v532
        %v534 = vmul.f32 %v470, %v532
        %v535 = vmul.f32 %v471, %v532
        %v536 = vmul.f32 %v472, %v532
        %v537 = vmul.f32 %v473, %v532
        %v538 = vmul.f32 %v474, %v532
        %v539 = vmul.f32 %v475, %v532
        %v540 = vmul.f32 %v476, %v532
        %v541 = vadd.f32 %v521, %v533
        %v542 = vadd.f32 %v522, %v534
        %v543 = vadd.f32 %v523, %v535
        %v544 = vadd.f32 %v524, %v536
        %v545 = vadd.f32 %v525, %v537
        %v546 = vadd.f32 %v526, %v538
        %v547 = vadd.f32 %v527, %v539
        %v548 = vadd.f32 %v528, %v540
        %v549 = vlaneseq
        %v550 = vshrl.u32 %v549, 7
        %v551 = vsub.s32 0, %v550
        %v552 = vrot.slane %v485, %v551
        %v553 = vmul.f32 %v470, %v552
        %v554 = vmul.f32 %v471, %v552
        %v555 = vmul.f32 %v472, %v552
        %v556 = vmul.f32 %v473, %v552
        %v557 = vmul.f32 %v474, %v552
        %v558 = vmul.f32 %v475, %v552
        %v559 = vmul.f32 %v476, %v552
        %v560 = vmul.f32 %v477, %v552
        %v561 = vadd.f32 %v541, %v553
        %v562 = vadd.f32 %v542, %v554
        %v563 = vadd.f32 %v543, %v555
        %v564 = vadd.f32 %v544, %v556
        %v565 = vadd.f32 %v545, %v557
        %v566 = vadd.f32 %v546, %v558
        %v567 = vadd.f32 %v547, %v559
        %v568 = vadd.f32 %v548, %v560
        %v569 = vlaneseq
        %v570 = vshrl.u32 %v569, 7
        %v571 = vsub.s32 0, %v570
        %v572 = vrot.slane %v486, %v571
        %v573 = vmul.f32 %v471, %v572
        %v574 = vmul.f32 %v472, %v572
        %v575 = vmul.f32 %v473, %v572
        %v576 = vmul.f32 %v474, %v572
        %v577 = vmul.f32 %v475, %v572
        %v578 = vmul.f32 %v476, %v572
        %v579 = vmul.f32 %v477, %v572
        %v580 = vmul.f32 %v478, %v572
        %v581 = vadd.f32 %v561, %v573
        %v582 = vadd.f32 %v562, %v574
        %v583 = vadd.f32 %v563, %v575
        %v584 = vadd.f32 %v564, %v576
        %v585 = vadd.f32 %v565, %v577
        %v586 = vadd.f32 %v566, %v578
        %v587 = vadd.f32 %v567, %v579
        %v588 = vadd.f32 %v568, %v580
        %v589 = vlaneseq
        %v590 = vshrl.u32 %v589, 7
        %v591 = vsub.s32 0, %v590
        %v592 = vrot.slane %v487, %v591
        %v593 = vmul.f32 %v472, %v592
        %v594 = vmul.f32 %v473, %v592
        %v595 = vmul.f32 %v474, %v592
        %v596 = vmul.f32 %v475, %v592
        %v597 = vmul.f32 %v476, %v592
        %v598 = vmul.f32 %v477, %v592
        %v599 = vmul.f32 %v478, %v592
        %v600 = vmul.f32 %v479, %v592
        %v601 = vadd.f32 %v581, %v593
        %v602 = vadd.f32 %v582, %v594
        %v603 = vadd.f32 %v583, %v595
        %v604 = vadd.f32 %v584, %v596
        %v605 = vadd.f32 %v585, %v597
        %v606 = vadd.f32 %v586, %v598
        %v607 = vadd.f32 %v587, %v599
        %v608 = vadd.f32 %v588, %v600
        %v609 = vlaneseq
        %v610 = vshrl.u32 %v609, 7
        %v611 = vsub.s32 0, %v610
        %v612 = vrot.slane %v488, %v611
        %v613 = vmul.f32 %v473, %v612
        %v614 = vmul.f32 %v474, %v612
        %v615 = vmul.f32 %v475, %v612
        %v616 = vmul.f32 %v476, %v612
        %v617 = vmul.f32 %v477, %v612
        %v618 = vmul.f32 %v478, %v612
        %v619 = vmul.f32 %v479, %v612
        %v620 = vmul.f32 %v480, %v612
        %v621 = vadd.f32 %v601, %v613
        %v622 = vadd.f32 %v602, %v614
        %v623 = vadd.f32 %v603, %v615
        %v624 = vadd.f32 %v604, %v616
        %v625 = vadd.f32 %v605, %v617
        %v626 = vadd.f32 %v606, %v618
        %v627 = vadd.f32 %v607, %v619
        %v628 = vadd.f32 %v608, %v620
      $region61: #{cct_block_forward.3} parent=55 // loop_footer
        %s457 = sadd.s32 1, %s453
      $region62: #{cct_block_forward.3} parent=55 // loop_footer_branch
        %452 = sbr.rel target = $region58
      $region63: #{cct_block_forward.3} parent=55 // loop_exit
        _
      %v629 = vld [vmem:[%s2] sm:$0x1]
      %v631 = vlaneseq
      %v632 = vshrl.u32 %v631, 7
      %v633 = vsub.s32 0, %v632
      %v634 = vrot.slane %v629, %v633
      %v636 = vadd.f32 %v458, %v634
      %v637 = vadd.f32 %v459, %v634
      %v638 = vadd.f32 %v460, %v634
      %v639 = vadd.f32 %v461, %v634
      %v640 = vadd.f32 %v462, %v634
      %v641 = vadd.f32 %v463, %v634
      %v642 = vadd.f32 %v464, %v634
      %v643 = vadd.f32 %v465, %v634
      %v644 = vld [vmem:[%s3] sm:$0x1]
      %v645 = vld [vmem:[%s4] sm:$0x1]
      %v646 = vld [vmem:[%s5] sm:$0xf]
      %v647 = vld [vmem:[%s5 + $0x4] sm:$0xf]
      %v648 = vld [vmem:[%s6] sm:$0x1]
      %v649 = vld [vmem:[%s7] sm:$0xf]
      %v650 = vld [vmem:[%s7 + $0x4] sm:$0xf]
      %v651 = vld [vmem:[%s7 + $0x8] sm:$0xf]
      %v652 = vld [vmem:[%s7 + $0xc] sm:$0xf]
      %v653 = vld [vmem:[%s7 + $0x10] sm:$0xf]
      %v654 = vld [vmem:[%s7 + $0x14] sm:$0xf]
      %v655 = vld [vmem:[%s7 + $0x18] sm:$0xf]
      %v656 = vld [vmem:[%s7 + $0x1c] sm:$0xf]
      %v657 = vld [vmem:[%s8] sm:$0x1]
      %v658 = vsel %vm405, %v636, 0.0
      %659 = vadd.xlane.f32.xlu0 %v658
      %v660 = vpop.xlane.xlu0 %659
      %v661 = vsel %vm405, %v637, 0.0
      %662 = vadd.xlane.f32.xlu0 %v661
      %v663 = vpop.xlane.xlu0 %662
      %v664 = vsel %vm405, %v638, 0.0
      %665 = vadd.xlane.f32.xlu0 %v664
      %v666 = vpop.xlane.xlu0 %665
      %v667 = vsel %vm405, %v639, 0.0
      %668 = vadd.xlane.f32.xlu0 %v667
      %v669 = vpop.xlane.xlu0 %668
      %v670 = vsel %vm405, %v640, 0.0
      %671 = vadd.xlane.f32.xlu0 %v670
      %v672 = vpop.xlane.xlu0 %671
      %v673 = vsel %vm405, %v641, 0.0
      %674 = vadd.xlane.f32.xlu0 %v673
      %v675 = vpop.xlane.xlu0 %674
      %v676 = vsel %vm405, %v642, 0.0
      %677 = vadd.xlane.f32.xlu0 %v676
      %v678 = vpop.xlane.xlu0 %677
      %v679 = vsel %vm405, %v643, 0.0
      %680 = vadd.xlane.f32.xlu0 %v679
      %v681 = vpop.xlane.xlu0 %680
      %v682 = vrcp.pop 16.0
      %v683 = vmul.f32 %v660, %v682
      %v684 = vmul.f32 %v663, %v682
      %v685 = vmul.f32 %v666, %v682
      %v686 = vmul.f32 %v669, %v682
      %v687 = vmul.f32 %v672, %v682
      %v688 = vmul.f32 %v675, %v682
      %v689 = vmul.f32 %v678, %v682
      %v690 = vmul.f32 %v681, %v682
      %v691 = vsub.f32 %v636, %v683
      %v692 = vsub.f32 %v637, %v684
      %v693 = vsub.f32 %v638, %v685
      %v694 = vsub.f32 %v639, %v686
      %v695 = vsub.f32 %v640, %v687
      %v696 = vsub.f32 %v641, %v688
      %v697 = vsub.f32 %v642, %v689
      %v698 = vsub.f32 %v643, %v690
      %v699 = vmul.f32 %v691, %v691
      %v700 = vmul.f32 %v692, %v692
      %v701 = vmul.f32 %v693, %v693
      %v702 = vmul.f32 %v694, %v694
      %v703 = vmul.f32 %v695, %v695
      %v704 = vmul.f32 %v696, %v696
      %v705 = vmul.f32 %v697, %v697
      %v706 = vmul.f32 %v698, %v698
      %v707 = vsel %vm405, %v699, 0.0
      %708 = vadd.xlane.f32.xlu0 %v707
      %v709 = vpop.xlane.xlu0 %708
      %v710 = vsel %vm405, %v700, 0.0
      %711 = vadd.xlane.f32.xlu0 %v710
      %v712 = vpop.xlane.xlu0 %711
      %v713 = vsel %vm405, %v701, 0.0
      %714 = vadd.xlane.f32.xlu0 %v713
      %v715 = vpop.xlane.xlu0 %714
      %v716 = vsel %vm405, %v702, 0.0
      %717 = vadd.xlane.f32.xlu0 %v716
      %v718 = vpop.xlane.xlu0 %717
      %v719 = vsel %vm405, %v703, 0.0
      %720 = vadd.xlane.f32.xlu0 %v719
      %v721 = vpop.xlane.xlu0 %720
      %v722 = vsel %vm405, %v704, 0.0
      %723 = vadd.xlane.f32.xlu0 %v722
      %v724 = vpop.xlane.xlu0 %723
      %v725 = vsel %vm405, %v705, 0.0
      %726 = vadd.xlane.f32.xlu0 %v725
      %v727 = vpop.xlane.xlu0 %726
      %v728 = vsel %vm405, %v706, 0.0
      %729 = vadd.xlane.f32.xlu0 %v728
      %v730 = vpop.xlane.xlu0 %729
      %v731 = vmul.f32 %v709, %v682
      %v732 = vmul.f32 %v712, %v682
      %v733 = vmul.f32 %v715, %v682
      %v734 = vmul.f32 %v718, %v682
      %v735 = vmul.f32 %v721, %v682
      %v736 = vmul.f32 %v724, %v682
      %v737 = vmul.f32 %v727, %v682
      %v738 = vmul.f32 %v730, %v682
      %v739 = vadd.f32 %v731, 1e-06
      %v740 = vadd.f32 %v732, 1e-06
      %v741 = vadd.f32 %v733, 1e-06
      %v742 = vadd.f32 %v734, 1e-06
      %v743 = vadd.f32 %v735, 1e-06
      %v744 = vadd.f32 %v736, 1e-06
      %v745 = vadd.f32 %v737, 1e-06
      %v746 = vadd.f32 %v738, 1e-06
      %v747 = vrsqrt.pop %v739
      %v748 = vrsqrt.pop %v740
      %v749 = vrsqrt.pop %v741
      %v750 = vrsqrt.pop %v742
      %v751 = vrsqrt.pop %v743
      %v752 = vrsqrt.pop %v744
      %v753 = vrsqrt.pop %v745
      %v754 = vrsqrt.pop %v746
      %v755 = vmul.f32 %v691, %v747
      %v756 = vmul.f32 %v692, %v748
      %v757 = vmul.f32 %v693, %v749
      %v758 = vmul.f32 %v694, %v750
      %v759 = vmul.f32 %v695, %v751
      %v760 = vmul.f32 %v696, %v752
      %v761 = vmul.f32 %v697, %v753
      %v762 = vmul.f32 %v698, %v754
      %v764 = vlaneseq
      %v765 = vshrl.u32 %v764, 7
      %v766 = vsub.s32 0, %v765
      %v767 = vrot.slane %v644, %v766
      %v769 = vmul.f32 %v755, %v767
      %v770 = vmul.f32 %v756, %v767
      %v771 = vmul.f32 %v757, %v767
      %v772 = vmul.f32 %v758, %v767
      %v773 = vmul.f32 %v759, %v767
      %v774 = vmul.f32 %v760, %v767
      %v775 = vmul.f32 %v761, %v767
      %v776 = vmul.f32 %v762, %v767
      %v778 = vlaneseq
      %v779 = vshrl.u32 %v778, 7
      %v780 = vsub.s32 0, %v779
      %v781 = vrot.slane %v645, %v780
      %v783 = vadd.f32 %v769, %v781
      %v784 = vadd.f32 %v770, %v781
      %v785 = vadd.f32 %v771, %v781
      %v786 = vadd.f32 %v772, %v781
      %v787 = vadd.f32 %v773, %v781
      %v788 = vadd.f32 %v774, %v781
      %v789 = vadd.f32 %v775, %v781
      %v790 = vadd.f32 %v776, %v781
      %v791 = vpack.c.bf16 %v784, %v783
      %v792 = vpack.c.bf16 %v786, %v785
      %v793 = vpack.c.bf16 %v788, %v787
      %v794 = vpack.c.bf16 %v790, %v789
      %v796 = vlaneseq
      %v797 = vshrl.u32 %v796, 7
      %v798 = vsub.s32 0, %v797
      %v799 = vrot.slane %v648, %v798
      %v803 = vunpack.c.l.b16 %v646
      %v804 = vunpack.c.l.b16 %v647
      %v805 = vpack.c.b16 %v804, %v803
      %v808 = vsel %vm405, %v791, 0
      %v811 = vsel %vm405, %v792, 0
      %v814 = vsel %vm405, %v793, 0
      %v817 = vsel %vm405, %v794, 0
      %819 = vmatprep.subr.bf16.mxu0 0
      %820 = vmatpush1.bf16.msra.mxu0 0
      %821 = vmatprep.subr.bf16.mxu0 0
      %822 = vmatpush1.bf16.msra.mxu0 0
      %823 = vmatprep.subr.bf16.mxu0 0
      %824 = vmatpush1.bf16.msra.mxu0 0
      %825 = vmatprep.subr.bf16.mxu0 0
      %826 = vmatpush1.bf16.msra.mxu0 0
      %827 = vmatprep.subr.bf16.mxu0 0
      %828 = vmatpush1.bf16.msra.mxu0 0
      %829 = vmatprep.subr.bf16.mxu0 0
      %830 = vmatpush1.bf16.msra.mxu0 0
      %831 = vmatprep.subr.bf16.mxu0 0
      %832 = vmatpush1.bf16.msra.mxu0 0
      %833 = vmatprep.subr.bf16.mxu0 0
      %834 = vmatpush1.bf16.msra.mxu0 %v805
      %835 = vmatprep.subr.bf16.mxu0 0
      %836 = vmatpush2.bf16.msra.mxu0 0
      %837 = vmatprep.subr.bf16.mxu0 0
      %838 = vmatpush2.bf16.msra.mxu0 0
      %839 = vmatprep.subr.bf16.mxu0 0
      %840 = vmatpush2.bf16.msra.mxu0 0
      %841 = vmatprep.subr.bf16.mxu0 0
      %842 = vmatpush2.bf16.msra.mxu0 0
      %843 = vmatprep.subr.bf16.mxu0 0
      %844 = vmatpush2.bf16.msra.mxu0 0
      %845 = vmatprep.subr.bf16.mxu0 0
      %846 = vmatpush2.bf16.msra.mxu0 0
      %847 = vmatprep.subr.bf16.mxu0 0
      %848 = vmatpush2.bf16.msra.mxu0 0
      %849 = vmatprep.subr.bf16.mxu0 0
      %850 = vmatpush2.bf16.msra.mxu0 0
      %851 = vmatprep.mubr.bf16.mxu0 0
      %852 = vmatmul.mubr.bf16.gmra.mxu0 %v808
      %v853 = vpop.f32.mrf.mxu0
      %v854 = vadd.f32 %v799, %v853
      %v855 = vpop.f32.mrf.mxu0
      %v856 = vpop.f32.mrf.mxu0
      %v857 = vadd.f32 %v799, %v856
      %v858 = vpop.f32.mrf.mxu0
      %859 = vmatprep.mubr.bf16.mxu0 0
      %860 = vmatmul.mubr.bf16.gmra.mxu0 %v811
      %v861 = vpop.f32.mrf.mxu0
      %v862 = vadd.f32 %v799, %v861
      %v863 = vpop.f32.mrf.mxu0
      %v864 = vpop.f32.mrf.mxu0
      %v865 = vadd.f32 %v799, %v864
      %v866 = vpop.f32.mrf.mxu0
      %867 = vmatprep.mubr.bf16.mxu0 0
      %868 = vmatmul.mubr.bf16.gmra.mxu0 %v814
      %v869 = vpop.f32.mrf.mxu0
      %v870 = vadd.f32 %v799, %v869
      %v871 = vpop.f32.mrf.mxu0
      %v872 = vpop.f32.mrf.mxu0
      %v873 = vadd.f32 %v799, %v872
      %v874 = vpop.f32.mrf.mxu0
      %875 = vmatprep.mubr.bf16.mxu0 0
      %876 = vmatmul.mubr.bf16.gmra.mxu0 %v817
      %v877 = vpop.f32.mrf.mxu0
      %v878 = vadd.f32 %v799, %v877
      %v879 = vpop.f32.mrf.mxu0
      %v880 = vpop.f32.mrf.mxu0
      %v881 = vadd.f32 %v799, %v880
      %v882 = vpop.f32.mrf.mxu0
      %883 = vdwg.mxu0
      %v884 = vmul.f32 %v854, %v854
      %v885 = vmul.f32 %v857, %v857
      %v886 = vmul.f32 %v862, %v862
      %v887 = vmul.f32 %v865, %v865
      %v888 = vmul.f32 %v870, %v870
      %v889 = vmul.f32 %v873, %v873
      %v890 = vmul.f32 %v878, %v878
      %v891 = vmul.f32 %v881, %v881
      %v892 = vmul.f32 %v854, %v884
      %v893 = vmul.f32 %v857, %v885
      %v894 = vmul.f32 %v862, %v886
      %v895 = vmul.f32 %v865, %v887
      %v896 = vmul.f32 %v870, %v888
      %v897 = vmul.f32 %v873, %v889
      %v898 = vmul.f32 %v878, %v890
      %v899 = vmul.f32 %v881, %v891
      %v900 = vmul.f32 %v892, 0.044715
      %v901 = vmul.f32 %v893, 0.044715
      %v902 = vmul.f32 %v894, 0.044715
      %v903 = vmul.f32 %v895, 0.044715
      %v904 = vmul.f32 %v896, 0.044715
      %v905 = vmul.f32 %v897, 0.044715
      %v906 = vmul.f32 %v898, 0.044715
      %v907 = vmul.f32 %v899, 0.044715
      %v908 = vadd.f32 %v854, %v900
      %v909 = vadd.f32 %v857, %v901
      %v910 = vadd.f32 %v862, %v902
      %v911 = vadd.f32 %v865, %v903
      %v912 = vadd.f32 %v870, %v904
      %v913 = vadd.f32 %v873, %v905
      %v914 = vadd.f32 %v878, %v906
      %v915 = vadd.f32 %v881, %v907
      %v916 = vmul.f32 %v908, 0.7978846
      %v917 = vmul.f32 %v909, 0.7978846
      %v918 = vmul.f32 %v910, 0.7978846
      %v919 = vmul.f32 %v911, 0.7978846
      %v920 = vmul.f32 %v912, 0.7978846
      %v921 = vmul.f32 %v913, 0.7978846
      %v922 = vmul.f32 %v914, 0.7978846
      %v923 = vmul.f32 %v915, 0.7978846
      %v924 = vtanh.pop %v916
      %v925 = vtanh.pop %v917
      %v926 = vtanh.pop %v918
      %v927 = vtanh.pop %v919
      %v928 = vtanh.pop %v920
      %v929 = vtanh.pop %v921
      %v930 = vtanh.pop %v922
      %v931 = vtanh.pop %v923
      %v932 = vadd.f32 %v924, 1.0
      %v933 = vadd.f32 %v925, 1.0
      %v934 = vadd.f32 %v926, 1.0
      %v935 = vadd.f32 %v927, 1.0
      %v936 = vadd.f32 %v928, 1.0
      %v937 = vadd.f32 %v929, 1.0
      %v938 = vadd.f32 %v930, 1.0
      %v939 = vadd.f32 %v931, 1.0
      %v940 = vmul.f32 %v932, 0.5
      %v941 = vmul.f32 %v933, 0.5
      %v942 = vmul.f32 %v934, 0.5
      %v943 = vmul.f32 %v935, 0.5
      %v944 = vmul.f32 %v936, 0.5
      %v945 = vmul.f32 %v937, 0.5
      %v946 = vmul.f32 %v938, 0.5
      %v947 = vmul.f32 %v939, 0.5
      %v948 = vmul.f32 %v854, %v940
      %v949 = vmul.f32 %v857, %v941
      %v950 = vmul.f32 %v862, %v942
      %v951 = vmul.f32 %v865, %v943
      %v952 = vmul.f32 %v870, %v944
      %v953 = vmul.f32 %v873, %v945
      %v954 = vmul.f32 %v878, %v946
      %v955 = vmul.f32 %v881, %v947
      %v956 = vpack.c.bf16 %v949, %v948
      %v957 = vpack.c.bf16 %v951, %v950
      %v958 = vpack.c.bf16 %v953, %v952
      %v959 = vpack.c.bf16 %v955, %v954
      %v961 = vlaneseq
      %v962 = vshrl.u32 %v961, 7
      %v963 = vsub.s32 0, %v962
      %v964 = vrot.slane %v657, %v963
      %v974 = vunpack.c.l.b16 %v649
      %v975 = vunpack.c.l.b16 %v650
      %v976 = vunpack.c.l.b16 %v651
      %v977 = vunpack.c.l.b16 %v652
      %v978 = vunpack.c.l.b16 %v653
      %v979 = vunpack.c.l.b16 %v654
      %v980 = vunpack.c.l.b16 %v655
      %v981 = vunpack.c.l.b16 %v656
      %v982 = vpack.c.b16 %v975, %v974
      %v983 = vpack.c.b16 %v977, %v976
      %v984 = vpack.c.b16 %v979, %v978
      %v985 = vpack.c.b16 %v981, %v980
      %vm990 = vcmask 523264
      %v992 = vsel %vm990, %v956, 0
      %v995 = vsel %vm990, %v957, 0
      %v998 = vsel %vm990, %v958, 0
      %v1001 = vsel %vm990, %v959, 0
      %1003 = vmatprep.subr.bf16.mxu0 0
      %1004 = vmatpush1.bf16.msra.mxu0 0
      %1005 = vmatprep.subr.bf16.mxu0 0
      %1006 = vmatpush1.bf16.msra.mxu0 0
      %1007 = vmatprep.subr.bf16.mxu0 0
      %1008 = vmatpush1.bf16.msra.mxu0 0
      %1009 = vmatprep.subr.bf16.mxu0 0
      %1010 = vmatpush1.bf16.msra.mxu0 0
      %1011 = vmatprep.subr.bf16.mxu0 0
      %1012 = vmatpush1.bf16.msra.mxu0 %v985
      %1013 = vmatprep.subr.bf16.mxu0 0
      %1014 = vmatpush1.bf16.msra.mxu0 %v984
      %1015 = vmatprep.subr.bf16.mxu0 0
      %1016 = vmatpush1.bf16.msra.mxu0 %v983
      %1017 = vmatprep.subr.bf16.mxu0 0
      %1018 = vmatpush1.bf16.msra.mxu0 %v982
      %1019 = vmatprep.subr.bf16.mxu0 0
      %1020 = vmatpush2.bf16.msra.mxu0 0
      %1021 = vmatprep.subr.bf16.mxu0 0
      %1022 = vmatpush2.bf16.msra.mxu0 0
      %1023 = vmatprep.subr.bf16.mxu0 0
      %1024 = vmatpush2.bf16.msra.mxu0 0
      %1025 = vmatprep.subr.bf16.mxu0 0
      %1026 = vmatpush2.bf16.msra.mxu0 0
      %1027 = vmatprep.subr.bf16.mxu0 0
      %1028 = vmatpush2.bf16.msra.mxu0 0
      %1029 = vmatprep.subr.bf16.mxu0 0
      %1030 = vmatpush2.bf16.msra.mxu0 0
      %1031 = vmatprep.subr.bf16.mxu0 0
      %1032 = vmatpush2.bf16.msra.mxu0 0
      %1033 = vmatprep.subr.bf16.mxu0 0
      %1034 = vmatpush2.bf16.msra.mxu0 0
      %1035 = vmatprep.mubr.bf16.mxu0 0
      %1036 = vmatmul.mubr.bf16.gmra.mxu0 %v992
      %v1037 = vpop.f32.mrf.mxu0
      %v1038 = vadd.f32 %v964, %v1037
      %v1039 = vpop.f32.mrf.mxu0
      %v1040 = vpop.f32.mrf.mxu0
      %v1041 = vadd.f32 %v964, %v1040
      %v1042 = vpop.f32.mrf.mxu0
      %1043 = vmatprep.mubr.bf16.mxu0 0
      %1044 = vmatmul.mubr.bf16.gmra.mxu0 %v995
      %v1045 = vpop.f32.mrf.mxu0
      %v1046 = vadd.f32 %v964, %v1045
      %v1047 = vpop.f32.mrf.mxu0
      %v1048 = vpop.f32.mrf.mxu0
      %v1049 = vadd.f32 %v964, %v1048
      %v1050 = vpop.f32.mrf.mxu0
      %1051 = vmatprep.mubr.bf16.mxu0 0
      %1052 = vmatmul.mubr.bf16.gmra.mxu0 %v998
      %v1053 = vpop.f32.mrf.mxu0
      %v1054 = vadd.f32 %v964, %v1053
      %v1055 = vpop.f32.mrf.mxu0
      %v1056 = vpop.f32.mrf.mxu0
      %v1057 = vadd.f32 %v964, %v1056
      %v1058 = vpop.f32.mrf.mxu0
      %1059 = vmatprep.mubr.bf16.mxu0 0
      %1060 = vmatmul.mubr.bf16.gmra.mxu0 %v1001
      %v1061 = vpop.f32.mrf.mxu0
      %v1062 = vadd.f32 %v964, %v1061
      %v1063 = vpop.f32.mrf.mxu0
      %v1064 = vpop.f32.mrf.mxu0
      %v1065 = vadd.f32 %v964, %v1064
      %v1066 = vpop.f32.mrf.mxu0
      %1067 = vdwg.mxu0
      %v1068 = vld [vmem:[%s392] sm:$0xff]
      %v1069 = vld [vmem:[%s392 + $0x8] sm:$0xff]
      %v1070 = vld [vmem:[%s392 + $0x10] sm:$0xff]
      %v1071 = vld [vmem:[%s392 + $0x18] sm:$0xff]
      %v1072 = vld [vmem:[%s392 + $0x20] sm:$0xff]
      %v1073 = vld [vmem:[%s392 + $0x28] sm:$0xff]
      %v1074 = vld [vmem:[%s392 + $0x30] sm:$0xff]
      %v1075 = vld [vmem:[%s392 + $0x38] sm:$0xff]
      %v1076 = vadd.f32 %v1068, %v1038
      %v1077 = vadd.f32 %v1069, %v1041
      %v1078 = vadd.f32 %v1070, %v1046
      %v1079 = vadd.f32 %v1071, %v1049
      %v1080 = vadd.f32 %v1072, %v1054
      %v1081 = vadd.f32 %v1073, %v1057
      %v1082 = vadd.f32 %v1074, %v1062
      %v1083 = vadd.f32 %v1075, %v1065
      %v1084 = vpack.c.bf16 %v1076, %v1076
      %v1085 = vpack.c.bf16 %v1077, %v1077
      %v1086 = vpack.c.bf16 %v1078, %v1078
      %v1087 = vpack.c.bf16 %v1079, %v1079
      %v1088 = vpack.c.bf16 %v1080, %v1080
      %v1089 = vpack.c.bf16 %v1081, %v1081
      %v1090 = vpack.c.bf16 %v1082, %v1082
      %v1091 = vpack.c.bf16 %v1083, %v1083
      %vm1092 = vcmask 125952
      %1093 = vst.msk [vmem:[%s397] sm:$0xf] %vm1092, %v1084
      %1094 = vst.msk [vmem:[%s397 + $0x4] sm:$0xf] %vm1092, %v1085
      %1095 = vst.msk [vmem:[%s397 + $0x8] sm:$0xf] %vm1092, %v1086
      %1096 = vst.msk [vmem:[%s397 + $0xc] sm:$0xf] %vm1092, %v1087
      %1097 = vst.msk [vmem:[%s397 + $0x10] sm:$0xf] %vm1092, %v1088
      %1098 = vst.msk [vmem:[%s397 + $0x14] sm:$0xf] %vm1092, %v1089
      %1099 = vst.msk [vmem:[%s397 + $0x18] sm:$0xf] %vm1092, %v1090
      %1100 = vst.msk [vmem:[%s397 + $0x1c] sm:$0xf] %vm1092, %v1091
      %v1101 = vsel %vm405, %v1076, 0.0
      %v1102 = vsel %vm405, %v1077, 0.0
      %v1103 = vadd.f32 %v1101, %v1102
      %v1104 = vsel %vm405, %v1078, 0.0
      %v1105 = vadd.f32 %v1103, %v1104
      %v1106 = vsel %vm405, %v1079, 0.0
      %v1107 = vadd.f32 %v1105, %v1106
      %v1108 = vsel %vm405, %v1080, 0.0
      %v1109 = vadd.f32 %v1107, %v1108
      %v1110 = vsel %vm405, %v1081, 0.0
      %v1111 = vadd.f32 %v1109, %v1110
      %v1112 = vsel %vm405, %v1082, 0.0
      %v1113 = vadd.f32 %v1111, %v1112
      %v1114 = vsel %vm405, %v1083, 0.0
      %v1115 = vadd.f32 %v1113, %v1114
      %v1116 = vrot.slane %v1115, 4
      %v1117 = vadd.f32 %v1115, %v1116
      %v1118 = vrot.slane %v1117, 2
      %v1119 = vadd.f32 %v1117, %v1118
      %v1120 = vrot.slane %v1119, 1
      %v1121 = vadd.f32 %v1119, %v1120
      %v1122 = vadd.f32 %v1121, 0.0
      %v1123 = vmul.f32 %v1076, %v1076
      %v1124 = vmul.f32 %v1077, %v1077
      %v1125 = vmul.f32 %v1078, %v1078
      %v1126 = vmul.f32 %v1079, %v1079
      %v1127 = vmul.f32 %v1080, %v1080
      %v1128 = vmul.f32 %v1081, %v1081
      %v1129 = vmul.f32 %v1082, %v1082
      %v1130 = vmul.f32 %v1083, %v1083
      %v1131 = vsel %vm405, %v1123, 0.0
      %v1132 = vsel %vm405, %v1124, 0.0
      %v1133 = vadd.f32 %v1131, %v1132
      %v1134 = vsel %vm405, %v1125, 0.0
      %v1135 = vadd.f32 %v1133, %v1134
      %v1136 = vsel %vm405, %v1126, 0.0
      %v1137 = vadd.f32 %v1135, %v1136
      %v1138 = vsel %vm405, %v1127, 0.0
      %v1139 = vadd.f32 %v1137, %v1138
      %v1140 = vsel %vm405, %v1128, 0.0
      %v1141 = vadd.f32 %v1139, %v1140
      %v1142 = vsel %vm405, %v1129, 0.0
      %v1143 = vadd.f32 %v1141, %v1142
      %v1144 = vsel %vm405, %v1130, 0.0
      %v1145 = vadd.f32 %v1143, %v1144
      %v1146 = vrot.slane %v1145, 4
      %v1147 = vadd.f32 %v1145, %v1146
      %v1148 = vrot.slane %v1147, 2
      %v1149 = vadd.f32 %v1147, %v1148
      %v1150 = vrot.slane %v1149, 1
      %v1151 = vadd.f32 %v1149, %v1150
      %v1152 = vadd.f32 %v1151, 0.0
      %vm1153 = vcmask 122880
      %1154 = vst.msk [vmem:[%s400] sm:$0x1] %vm1153, %v1122
      %1155 = vst.msk [vmem:[%s403] sm:$0x1] %vm1153, %v1152
      %p1156 = scmp.lt.s32.totalorder %s23, 1
      %s1157 = scalar_select %p1156, %s23, 1
      %s1158 = smul.addr %s1157, 8
      %s1159 = smul.addr %s1158, 4
      %s1160 = scalar_lea.vmem %s9, %s1159
      %p1161 = scmp.lt.s32.totalorder %s23, 1
      %s1162 = scalar_select %p1161, %s23, 1
      %s1163 = scalar_lea.vmem %s10, %s1162
      %p1164 = scmp.lt.s32.totalorder %s23, 1
      %s1165 = scalar_select %p1164, %s23, 1
      %s1166 = scalar_lea.vmem %s11, %s1165
      // Predicated region
      $region64: #{cct_block_forward.3} parent=55 // pred_check
        %p1167 = pneg %p235
      $region65: #{cct_block_forward.3} parent=55 // pred_check_branch
        %1169 = sbr.rel (%p1167) target = $region67
      $region66: #{cct_block_forward.3} parent=55 // pred_region
        _
      $region67: #{cct_block_forward.3} parent=55 // pred_fallthru
        _
      // Predicated region
      $region68: #{cct_block_forward.3} parent=55 // pred_check
        %p1170 = pneg %p261
      $region69: #{cct_block_forward.3} parent=55 // pred_check_branch
        %1172 = sbr.rel (%p1170) target = $region71
      $region70: #{cct_block_forward.3} parent=55 // pred_region
        _
      $region71: #{cct_block_forward.3} parent=55 // pred_fallthru
        _
      // Predicated region
      $region72: #{cct_block_forward.3} parent=55 // pred_check
        %p1173 = pneg %p287
      $region73: #{cct_block_forward.3} parent=55 // pred_check_branch
        %1175 = sbr.rel (%p1173) target = $region75
      $region74: #{cct_block_forward.3} parent=55 // pred_region
        _
      $region75: #{cct_block_forward.3} parent=55 // pred_fallthru
        _
    $region56: #{cct_block_forward.3} parent=5 // pred_fallthru
      _
    %p1176 = scmp.le.s32.totalorder 2, %s18
    // Predicated region
    $region76: #{cct_block_forward.3} parent=5 // pred_check
      %p1177 = pneg %p1176
    $region77: #{cct_block_forward.3} parent=5 // pred_check_branch
      %1179 = sbr.rel (%p1177) target = $region79
    $region78: #{cct_block_forward.3} parent=5 // pred_region
      %s1180 = ssub.s32 %s18, 2
      // Predicated region
      $region80: #{cct_block_forward.3} parent=78 // pred_check
        %p1181 = pneg %p241
      $region81: #{cct_block_forward.3} parent=78 // pred_check_branch
        %1183 = sbr.rel (%p1181) target = $region83
      $region82: #{cct_block_forward.3} parent=78 // pred_region
        %p1184 = scmp.lt.s32.totalorder %s24, 1
        %s1185 = scalar_select %p1184, %s24, 1
        %s1186 = smul.addr %s1185, 8
        %s1187 = smul.addr %s1186, 4
        %s1188 = scalar_lea.vmem %s9, %s1187
      $region83: #{cct_block_forward.3} parent=78 // pred_fallthru
        _
      // Predicated region
      $region84: #{cct_block_forward.3} parent=78 // pred_check
        %p1189 = pneg %p267
      $region85: #{cct_block_forward.3} parent=78 // pred_check_branch
        %1191 = sbr.rel (%p1189) target = $region87
      $region86: #{cct_block_forward.3} parent=78 // pred_region
        %p1192 = scmp.lt.s32.totalorder %s24, 1
        %s1193 = scalar_select %p1192, %s24, 1
        %s1194 = scalar_lea.vmem %s10, %s1193
      $region87: #{cct_block_forward.3} parent=78 // pred_fallthru
        _
      // Predicated region
      $region88: #{cct_block_forward.3} parent=78 // pred_check
        %p1195 = pneg %p293
      $region89: #{cct_block_forward.3} parent=78 // pred_check_branch
        %1197 = sbr.rel (%p1195) target = $region91
      $region90: #{cct_block_forward.3} parent=78 // pred_region
        %p1198 = scmp.lt.s32.totalorder %s24, 1
        %s1199 = scalar_select %p1198, %s24, 1
        %s1200 = scalar_lea.vmem %s11, %s1199
      $region91: #{cct_block_forward.3} parent=78 // pred_fallthru
        _
    $region79: #{cct_block_forward.3} parent=5 // pred_fallthru
      _
  $region6: #{cct_block_forward.3} parent=0 // loop_footer
    %s22 = sadd.s32 1, %s18
  $region7: #{cct_block_forward.3} parent=0 // loop_footer_branch
    %17 = sbr.rel target = $region3
  $region8: #{cct_block_forward.3} parent=0 // loop_exit
    _

</llo_original>
